<compile_context>
chip_gen: v7x
topology: tpu7x:2x2x1
jax: 0.10.0
libtpu: 0.0.40
codegen_flags: <defaults>
</compile_context>

<pallas_src>
import functools
import math

import jax
import jax.numpy as jnp
from jax import lax
from jax.experimental import pallas as pl
from jax.experimental.pallas import tpu as pltpu


# ----------------------------- sizing helpers -------------------------------

@functools.lru_cache(maxsize=None)
def _vmem_limit_bytes():
    """Generation-aware scoped-VMEM limit: ~45% of per-core VMEM, capped at
    48 MiB (=> ~28 MiB on v7x's 64 MiB parts, 48 MiB on 128 MiB v5e/v6e)."""
    total = 64 * 1024 * 1024          # conservative default (v7x per-core)
    try:
        cap = getattr(pltpu.get_tpu_info(), "vmem_capacity_bytes", None)
        if cap:
            total = int(cap)
    except Exception:
        pass
    return int(min(total * 0.45, 48 * 1024 * 1024))


def _pick_tile_rows(dim, target, align=16):
    """Largest multiple-of-`align` divisor of dim <= target (sublane axis).
    Falls back to 8-alignment, then the full dim (a full dim is always a
    legal Pallas block; only costs VMEM for pathological prime-ish sizes)."""
    if dim <= target:
        return dim
    for a in (align, 8):
        t = (target // a) * a
        while t >= a:
            if dim % t == 0:
                return t
            t -= a
    return dim


def _pick_tile_lane(dim, target):
    """Largest multiple-of-128 divisor of dim <= target (lane axis), else the
    full dim (always a legal block)."""
    if dim <= target:
        return dim
    t = (target // 128) * 128
    while t >= 128:
        if dim % t == 0:
            return t
        t -= 128
    return dim


def _tile_rows(dim, target, align=16, min_steps=2):
    """Row tile that also tries to guarantee >= min_steps grid steps so both
    TensorCores get work on v7x."""
    t = _pick_tile_rows(dim, target, align)
    if dim // t < min_steps and dim > 2 * align:
        t2 = _pick_tile_rows(dim, max(align, dim // min_steps), align)
        if t2 < dim and dim // t2 >= min_steps:
            t = t2
    return t


# ----------------------------- matmul kernels -------------------------------

def _matmul_bias_kernel(x_ref, w_ref, b_ref, o_ref, *, relu):
    """Single-K-step y = x @ w + b — no f32 accumulator scratch needed."""
    y = jnp.dot(x_ref[...], w_ref[...], preferred_element_type=jnp.float32)
    y = y + b_ref[...].astype(jnp.float32)
    if relu:
        y = jnp.maximum(y, 0.0)
    o_ref[...] = y.astype(o_ref.dtype)


def _matmul_acc_kernel(x_ref, w_ref, b_ref, o_ref, acc_ref, *, relu):
    """K-tiled y = x @ w + b with f32 VMEM accumulator (general path)."""
    @pl.when(pl.program_id(2) == 0)
    def _():
        acc_ref[...] = jnp.zeros_like(acc_ref)

    acc_ref[...] += jnp.dot(x_ref[...], w_ref[...],
                            preferred_element_type=jnp.float32)

    @pl.when(pl.program_id(2) == pl.num_programs(2) - 1)
    def _():
        y = acc_ref[...] + b_ref[...].astype(jnp.float32)
        if relu:
            y = jnp.maximum(y, 0.0)
        o_ref[...] = y.astype(o_ref.dtype)


def linear(x2d, w_t, b, *, relu=False, out_dtype=None,
           tm=512, tn=1024, tk=512, n_major=False):
    """y = x2d @ w_t + b.  w_t pre-transposed to (K, N) bf16; b is f32 (N,).
    n_major=True puts the N axis outermost so a large weight (e.g. the
    512x32000 vocab projection) streams through VMEM exactly once."""
    M, K = x2d.shape
    N = w_t.shape[1]
    out_dtype = out_dtype or x2d.dtype
    tm = _tile_rows(M, tm)
    tn = _pick_tile_lane(N, tn)
    tk = _pick_tile_lane(K, tk)
    b2 = b.reshape(1, N)
    nbytes = int(x2d.size * x2d.dtype.itemsize + w_t.size * w_t.dtype.itemsize
                 + N * 4 + M * N * jnp.dtype(out_dtype).itemsize)
    cost = pl.CostEstimate(flops=2 * M * N * K, transcendentals=0,
                           bytes_accessed=nbytes)

    if K == tk:                          # single K step: skip the accumulator
        if n_major:
            grid = (N // tn, M // tm)
            in_specs = [pl.BlockSpec((tm, K), lambda j, i: (i, 0)),
                        pl.BlockSpec((K, tn), lambda j, i: (0, j)),
                        pl.BlockSpec((1, tn), lambda j, i: (0, j))]
            out_spec = pl.BlockSpec((tm, tn), lambda j, i: (i, j))
        else:
            grid = (M // tm, N // tn)
            in_specs = [pl.BlockSpec((tm, K), lambda i, j: (i, 0)),
                        pl.BlockSpec((K, tn), lambda i, j: (0, j)),
                        pl.BlockSpec((1, tn), lambda i, j: (0, j))]
            out_spec = pl.BlockSpec((tm, tn), lambda i, j: (i, j))
        return pl.pallas_call(
            functools.partial(_matmul_bias_kernel, relu=relu),
            grid=grid,
            out_shape=jax.ShapeDtypeStruct((M, N), out_dtype),
            in_specs=in_specs, out_specs=out_spec,
            compiler_params=pltpu.CompilerParams(
                dimension_semantics=("parallel", "parallel"),
                vmem_limit_bytes=_vmem_limit_bytes()),
            cost_estimate=cost,
        )(x2d, w_t, b2)

    grid = (M // tm, N // tn, K // tk)
    return pl.pallas_call(
        functools.partial(_matmul_acc_kernel, relu=relu),
        grid=grid,
        out_shape=jax.ShapeDtypeStruct((M, N), out_dtype),
        in_specs=[pl.BlockSpec((tm, tk), lambda i, j, k: (i, k)),
                  pl.BlockSpec((tk, tn), lambda i, j, k: (k, j)),
                  pl.BlockSpec((1, tn), lambda i, j, k: (0, j))],
        out_specs=pl.BlockSpec((tm, tn), lambda i, j, k: (i, j)),
        scratch_shapes=[pltpu.VMEM((tm, tn), jnp.float32)],
        compiler_params=pltpu.CompilerParams(
            dimension_semantics=("parallel", "parallel", "arbitrary"),
            vmem_limit_bytes=_vmem_limit_bytes()),
        cost_estimate=cost,
    )(x2d, w_t, b2)


# ----------------------------- layernorm kernels -----------------------------

def _ln_rows(y, g_ref, b_ref, o_ref, eps):
    mean = jnp.mean(y, axis=-1, keepdims=True)
    var = jnp.mean(jnp.square(y - mean), axis=-1, keepdims=True)
    y = (y - mean) * lax.rsqrt(var + eps)
    o_ref[...] = (y * g_ref[...] + b_ref[...]).astype(o_ref.dtype)


def _ln_kernel(x_ref, g_ref, b_ref, o_ref, *, eps):
    _ln_rows(x_ref[...].astype(jnp.float32), g_ref, b_ref, o_ref, eps)


def layer_norm(x2d, gamma, beta, *, eps=1e-5, tm=1024):
    M, D = x2d.shape
    tm = _tile_rows(M, tm)
    return pl.pallas_call(
        functools.partial(_ln_kernel, eps=eps),
        grid=(M // tm,),
        out_shape=jax.ShapeDtypeStruct((M, D), x2d.dtype),
        in_specs=[pl.BlockSpec((tm, D), lambda i: (i, 0)),
                  pl.BlockSpec((1, D), lambda i: (0, 0)),
                  pl.BlockSpec((1, D), lambda i: (0, 0))],
        out_specs=pl.BlockSpec((tm, D), lambda i: (i, 0)),
        compiler_params=pltpu.CompilerParams(
            dimension_semantics=("parallel",),
            vmem_limit_bytes=_vmem_limit_bytes()),
    )(x2d, gamma.reshape(1, D), beta.reshape(1, D))


# ----------------------- fused FFN + residual + LN ---------------------------

def _ffn_ln_kernel(x_ref, w1_ref, b1_ref, w2_ref, b2_ref, g_ref, b_ref,
                   o_ref, *, eps):
    """LayerNorm(x + Linear2(ReLU(Linear1(x)))) — fully fused per M-tile."""
    x = x_ref[...]                                          # (tm, D) bf16
    h = jnp.dot(x, w1_ref[...], preferred_element_type=jnp.float32)
    h = jnp.maximum(h + b1_ref[...].astype(jnp.float32), 0.0)
    h = jnp.dot(h.astype(w2_ref.dtype), w2_ref[...],
                preferred_element_type=jnp.float32)
    h = h + b2_ref[...].astype(jnp.float32)
    _ln_rows(x.astype(jnp.float32) + h, g_ref, b_ref, o_ref, eps)


def ffn_add_layer_norm(x2d, w1_t, b1, w2_t, b2, gamma, beta,
                       *, eps=1e-5, tm=256):
    M, D = x2d.shape
    F = w1_t.shape[1]
    tm = _tile_rows(M, tm)
    nbytes = int(x2d.size * x2d.dtype.itemsize
                 + w1_t.size * w1_t.dtype.itemsize
                 + w2_t.size * w2_t.dtype.itemsize
                 + M * D * x2d.dtype.itemsize)
    return pl.pallas_call(
        functools.partial(_ffn_ln_kernel, eps=eps),
        grid=(M // tm,),
        out_shape=jax.ShapeDtypeStruct((M, D), x2d.dtype),
        in_specs=[pl.BlockSpec((tm, D), lambda i: (i, 0)),
                  pl.BlockSpec((D, F), lambda i: (0, 0)),
                  pl.BlockSpec((1, F), lambda i: (0, 0)),
                  pl.BlockSpec((F, D), lambda i: (0, 0)),
                  pl.BlockSpec((1, D), lambda i: (0, 0)),
                  pl.BlockSpec((1, D), lambda i: (0, 0)),
                  pl.BlockSpec((1, D), lambda i: (0, 0))],
        out_specs=pl.BlockSpec((tm, D), lambda i: (i, 0)),
        compiler_params=pltpu.CompilerParams(
            dimension_semantics=("parallel",),
            vmem_limit_bytes=_vmem_limit_bytes()),
        cost_estimate=pl.CostEstimate(flops=4 * M * D * F, transcendentals=0,
                                      bytes_accessed=nbytes),
    )(x2d, w1_t, b1.reshape(1, F), w2_t, b2.reshape(1, D),
      gamma.reshape(1, D), beta.reshape(1, D))


# -------------- fused multi-head attention + out_proj + add + LN -------------

def _attn_ln_kernel(q_ref, k_ref, v_ref, res_ref, w_out_ref, b_out_ref,
                    g_ref, beta_ref, o_ref, *, nhead, scale, eps):
    """Per (batch, q-tile): MHA + out_proj + residual add + LayerNorm.

    Heads are an unrolled loop over lane slices of the packed projections;
    the out_proj is accumulated per head (attn @ W_out ==
    sum_h o_h @ W_out[h*Dh:(h+1)*Dh, :]) so the merged-head tensor is never
    materialized or transposed — output is written lane-dense (tq, D)."""
    tq, D = o_ref.shape
    Dh = D // nhead
    acc = jnp.zeros((tq, D), jnp.float32)
    for h in range(nhead):
        qh = q_ref[:, pl.ds(h * Dh, Dh)]                   # (tq, Dh) bf16
        kh = k_ref[:, pl.ds(h * Dh, Dh)]                   # (Sk, Dh)
        vh = v_ref[:, pl.ds(h * Dh, Dh)]                   # (Sk, Dh)
        s = lax.dot_general(qh, kh, (((1,), (1,)), ((), ())),
                            preferred_element_type=jnp.float32) * scale
        s = s - jnp.max(s, axis=-1, keepdims=True)
        prob = jnp.exp(s)
        prob = prob * pl.reciprocal(jnp.sum(prob, axis=-1, keepdims=True),
                                    approx=True)           # EUP, free slot
        oh = jnp.dot(prob.astype(vh.dtype), vh,
                     preferred_element_type=jnp.float32)   # (tq, Dh)
        woh = w_out_ref[pl.ds(h * Dh, Dh), :]              # (Dh, D) bf16
        acc = acc + jnp.dot(oh.astype(woh.dtype), woh,
                            preferred_element_type=jnp.float32)
    y = (acc + b_out_ref[...].astype(jnp.float32)
         + res_ref[...].astype(jnp.float32))
    _ln_rows(y, g_ref, beta_ref, o_ref, eps)


def _col_map_q(col):
    def idx(b, qi):
        return (b, qi, col)
    return idx


def _col_map_kv(col):
    def idx(b, qi):
        return (b, 0, col)
    return idx


def attn_out_residual_ln(q_arr, q_col, kv_arr, k_col, v_col, residual,
                         w_out_t, b_out, gamma, beta, nhead,
                         *, eps=1e-5, tq_target=256):
    """Fused MHA + out_proj + residual + LayerNorm.
    q lives in q_arr at column-block q_col; k / v live in kv_arr at column
    blocks k_col / v_col (block width = d_model), so packed QKV / KV
    projections are consumed directly with no XLA slicing or head transposes."""
    B, Sq, D = residual.shape
    Sk = kv_arr.shape[1]
    Dh = D // nhead
    scale = 1.0 / math.sqrt(Dh)

    if D % 128 != 0:
        # Packed column blocks need 128-lane alignment; fall back to XLA slices.
        q_arr = lax.slice_in_dim(q_arr, q_col * D, (q_col + 1) * D, axis=2)
        k_arr = lax.slice_in_dim(kv_arr, k_col * D, (k_col + 1) * D, axis=2)
        v_arr = lax.slice_in_dim(kv_arr, v_col * D, (v_col + 1) * D, axis=2)
        q_col = k_col = v_col = 0
    else:
        k_arr = v_arr = kv_arr

    tq = _tile_rows(Sq, tq_target, min_steps=(1 if B >= 2 else 2))
    grid = (B, Sq // tq)

    # TODO(synk): switch to online-softmax (flash) tiling over Sk for very long
    # sequences; full-Sk k/v blocks and (tq, Sk) f32 scores are fine here.
    flops = int(4 * B * nhead * Sq * Sk * Dh + 2 * B * Sq * D * D)
    nbytes = int(2 * (3 * B * Sq * D + 2 * B * Sk * D + D * D))
    return pl.pallas_call(
        functools.partial(_attn_ln_kernel, nhead=nhead, scale=scale, eps=eps),
        grid=grid,
        out_shape=jax.ShapeDtypeStruct((B, Sq, D), residual.dtype),
        in_specs=[
            pl.BlockSpec((None, tq, D), _col_map_q(q_col)),
            pl.BlockSpec((None, Sk, D), _col_map_kv(k_col)),
            pl.BlockSpec((None, Sk, D), _col_map_kv(v_col)),
            pl.BlockSpec((None, tq, D), lambda b, qi: (b, qi, 0)),
            pl.BlockSpec((D, D), lambda b, qi: (0, 0)),
            pl.BlockSpec((1, D), lambda b, qi: (0, 0)),
            pl.BlockSpec((1, D), lambda b, qi: (0, 0)),
            pl.BlockSpec((1, D), lambda b, qi: (0, 0)),
        ],
        out_specs=pl.BlockSpec((None, tq, D), lambda b, qi: (b, qi, 0)),
        compiler_params=pltpu.CompilerParams(
            dimension_semantics=("parallel", "parallel"),
            vmem_limit_bytes=_vmem_limit_bytes()),
        cost_estimate=pl.CostEstimate(flops=flops,
                                      transcendentals=int(B * nhead * Sq * Sk),
                                      bytes_accessed=nbytes),
    )(q_arr, k_arr, v_arr, residual, w_out_t, b_out.reshape(1, D),
      gamma.reshape(1, D), beta.reshape(1, D))


# ------------------------------- model glue ---------------------------------

def encoder_layer(x, p, nhead):
    # post-norm (PyTorch default norm_first=False); dropout = identity (eval)
    B, S, D = x.shape
    sa = p["self_attn"]
    qkv = linear(x.reshape(B * S, D), sa["w_in_t"], sa["b_in"]
                 ).reshape(B, S, 3 * D)
    x1 = attn_out_residual_ln(qkv, 0, qkv, 1, 2, x, sa["w_out_t"], sa["b_out"],
                              p["norm1_w"], p["norm1_b"], nhead)
    x2 = ffn_add_layer_norm(x1.reshape(B * S, D), p["w1_t"], p["b1"],
                            p["w2_t"], p["b2"], p["norm2_w"], p["norm2_b"])
    return x2.reshape(B, S, D)


def decoder_layer(x, memory, p, nhead):
    B, S, D = x.shape
    Sk = memory.shape[1]
    sa, ca = p["self_attn"], p["cross_attn"]
    # Self-attention (NOT causal: the PyTorch module passes no tgt_mask).
    qkv = linear(x.reshape(B * S, D), sa["w_in_t"], sa["b_in"]
                 ).reshape(B, S, 3 * D)
    x1 = attn_out_residual_ln(qkv, 0, qkv, 1, 2, x, sa["w_out_t"], sa["b_out"],
                              p["norm1_w"], p["norm1_b"], nhead)
    # Cross-attention over encoder memory (packed KV projection).
    q = linear(x1.reshape(B * S, D), ca["w_q_t"], ca["b_q"]).reshape(B, S, D)
    kv = linear(memory.reshape(B * Sk, D), ca["w_kv_t"], ca["b_kv"]
                ).reshape(B, Sk, 2 * D)
    x2 = attn_out_residual_ln(q, 0, kv, 0, 1, x1, ca["w_out_t"], ca["b_out"],
                              p["norm2_w"], p["norm2_b"], nhead)
    x3 = ffn_add_layer_norm(x2.reshape(B * S, D), p["w1_t"], p["b1"],
                            p["w2_t"], p["b2"], p["norm3_w"], p["norm3_b"])
    return x3.reshape(B, S, D)


def translation_transformer_forward(params, src, tgt, *, d_model, nhead):
    B, Ss = src.shape
    _, St = tgt.shape
    # Embedding gather stays in XLA; tables are pre-scaled by sqrt(d_model)
    # and stored in bf16 (halves gather HBM traffic).
    x = params["src_embedding"][src]
    y = params["tgt_embedding"][tgt]

    # Encoder stack + final norm (nn.Transformer attaches a final LayerNorm).
    for lp in params["encoder_layers"]:
        x = encoder_layer(x, lp, nhead)
    memory = layer_norm(x.reshape(B * Ss, d_model),
                        params["encoder_norm_w"], params["encoder_norm_b"]
                        ).reshape(B, Ss, d_model)

    # Decoder stack + final norm.
    for lp in params["decoder_layers"]:
        y = decoder_layer(y, memory, lp, nhead)
    y = layer_norm(y.reshape(B * St, d_model),
                   params["decoder_norm_w"], params["decoder_norm_b"])

    # Vocab projection: N-major grid streams the (d_model, vocab) weight
    # through VMEM exactly once.  Logits kept f32 (bf16 store would halve the
    # largest HBM write but is numerics-dependent downstream).
    logits = linear(y, params["fc_w_t"], params["fc_b"],
                    out_dtype=jnp.float32, tm=512, tn=1024, n_major=True)
    return logits.reshape(B, St, -1)


# --------------------------- deterministic params ---------------------------

def init_torch_style_params(key, vocab_size, d_model, nhead, num_layers, dim_ff):
    """Parameters in PyTorch layout: Linear weights are (out, in)."""
    keys = iter(jax.random.split(key, 256))

    def w(shape, scale=0.02):
        return jax.random.normal(next(keys), shape, jnp.float32) * scale

    def attn_params():
        return {
            "in_proj_weight": w((3 * d_model, d_model)),
            "in_proj_bias": w((3 * d_model,)),
            "out_proj_weight": w((d_model, d_model)),
            "out_proj_bias": w((d_model,)),
        }

    def enc_layer():
        return {
            "self_attn": attn_params(),
            "linear1_w": w((dim_ff, d_model)), "linear1_b": w((dim_ff,)),
            "linear2_w": w((d_model, dim_ff)), "linear2_b": w((d_model,)),
            "norm1_w": jnp.ones((d_model,), jnp.float32),
            "norm1_b": jnp.zeros((d_model,), jnp.float32),
            "norm2_w": jnp.ones((d_model,), jnp.float32),
            "norm2_b": jnp.zeros((d_model,), jnp.float32),
        }

    def dec_layer():
        d = enc_layer()
        d["cross_attn"] = attn_params()
        d["norm3_w"] = jnp.ones((d_model,), jnp.float32)
        d["norm3_b"] = jnp.zeros((d_model,), jnp.float32)
        return d

    return {
        "src_embedding": w((vocab_size, d_model)),
        "tgt_embedding": w((vocab_size, d_model)),
        "encoder_layers": [enc_layer() for _ in range(num_layers)],
        "decoder_layers": [dec_layer() for _ in range(num_layers)],
        "encoder_norm_w": jnp.ones((d_model,), jnp.float32),
        "encoder_norm_b": jnp.zeros((d_model,), jnp.float32),
        "decoder_norm_w": jnp.ones((d_model,), jnp.float32),
        "decoder_norm_b": jnp.zeros((d_model,), jnp.float32),
        "fc_w": w((vocab_size, d_model)),
        "fc_b": w((vocab_size,)),
    }


def prepare_params(raw, d_model):
    """One-time prep: transpose matmul weights to (K, N), pack QKV / KV,
    cast MXU weights and embeddings to bf16, fold sqrt(d_model) into the
    embedding tables.  Biases / LN params stay f32."""
    bf = lambda a: a.astype(jnp.bfloat16)
    D = d_model
    emb_scale = math.sqrt(float(d_model))

    def prep_self_attn(a):
        return {
            "w_in_t": bf(a["in_proj_weight"].T),           # (D, 3D) packed QKV
            "b_in": a["in_proj_bias"],
            "w_out_t": bf(a["out_proj_weight"].T),
            "b_out": a["out_proj_bias"],
        }

    def prep_cross_attn(a):
        wq, wk, wv = (a["in_proj_weight"][:D], a["in_proj_weight"][D:2 * D],
                      a["in_proj_weight"][2 * D:])
        bq, bk, bv = (a["in_proj_bias"][:D], a["in_proj_bias"][D:2 * D],
                      a["in_proj_bias"][2 * D:])
        return {
            "w_q_t": bf(wq.T), "b_q": bq,
            "w_kv_t": bf(jnp.concatenate([wk, wv], axis=0).T),   # (D, 2D)
            "b_kv": jnp.concatenate([bk, bv]),
            "w_out_t": bf(a["out_proj_weight"].T),
            "b_out": a["out_proj_bias"],
        }

    def prep_common(lp):
        return {
            "self_attn": prep_self_attn(lp["self_attn"]),
            "w1_t": bf(lp["linear1_w"].T), "b1": lp["linear1_b"],
            "w2_t": bf(lp["linear2_w"].T), "b2": lp["linear2_b"],
            "norm1_w": lp["norm1_w"], "norm1_b": lp["norm1_b"],
            "norm2_w": lp["norm2_w"], "norm2_b": lp["norm2_b"],
        }

    def prep_dec(lp):
        d = prep_common(lp)
        d["cross_attn"] = prep_cross_attn(lp["cross_attn"])
        d["norm3_w"] = lp["norm3_w"]
        d["norm3_b"] = lp["norm3_b"]
        return d

    return {
        "src_embedding": bf(raw["src_embedding"] * emb_scale),
        "tgt_embedding": bf(raw["tgt_embedding"] * emb_scale),
        "encoder_layers": [prep_common(lp) for lp in raw["encoder_layers"]],
        "decoder_layers": [prep_dec(lp) for lp in raw["decoder_layers"]],
        "encoder_norm_w": raw["encoder_norm_w"],
        "encoder_norm_b": raw["encoder_norm_b"],
        "decoder_norm_w": raw["decoder_norm_w"],
        "decoder_norm_b": raw["decoder_norm_b"],
        "fc_w_t": bf(raw["fc_w"].T),                        # (D, vocab)
        "fc_b": raw["fc_b"],
    }


# ---------------------------------- main -------------------------------------

if __name__ == "__main__":
    # Small forward-consistent config (module defaults are 32000/512/8/6/2048).
    # d_model is kept a multiple of 128 so packed QKV column blocks are
    # lane-aligned (true for the real d_model=512 as well).
    VOCAB, D_MODEL, NHEAD, NUM_LAYERS, DIM_FF = 256, 128, 4, 2, 256
    B, S_SRC, S_TGT = 2, 8, 8

    key = jax.random.PRNGKey(0)
    pkey, skey, tkey = jax.random.split(key, 3)
    raw = init_torch_style_params(pkey, VOCAB, D_MODEL, NHEAD, NUM_LAYERS, DIM_FF)
    params = prepare_params(raw, D_MODEL)
    src = jax.random.randint(skey, (B, S_SRC), 0, VOCAB, dtype=jnp.int32)
    tgt = jax.random.randint(tkey, (B, S_TGT), 0, VOCAB, dtype=jnp.int32)

    fwd = jax.jit(functools.partial(
        translation_transformer_forward, d_model=D_MODEL, nhead=NHEAD))
    out = fwd(params, src, tgt)
    jax.block_until_ready(out)
    assert out.shape == (B, S_TGT, VOCAB) and out.dtype == jnp.float32
    assert bool(jnp.all(jnp.isfinite(out)))
    # TODO(synk): dropout omitted (eval-mode / deterministic inference semantics).
    print("KERNEL_OK")
</pallas_src>

<mosaic_0001>
module attributes {stable_mosaic.version = 11 : i64} {
  func.func @_attn_ln_kernel(%arg0: i32, %arg1: i32, %arg2: memref<1x8x128xbf16, #tpu.memory_space<vmem>>, %arg3: memref<1x8x128xbf16, #tpu.memory_space<vmem>>, %arg4: memref<1x8x128xbf16, #tpu.memory_space<vmem>>, %arg5: memref<1x8x128xbf16, #tpu.memory_space<vmem>>, %arg6: memref<128x128xbf16, #tpu.memory_space<vmem>>, %arg7: memref<1x128xf32, #tpu.memory_space<vmem>>, %arg8: memref<1x128xf32, #tpu.memory_space<vmem>>, %arg9: memref<1x128xf32, #tpu.memory_space<vmem>>, %arg10: memref<1x8x128xbf16, #tpu.memory_space<vmem>>) attributes {dimension_semantics = [#tpu.dimension_semantics<parallel>, #tpu.dimension_semantics<parallel>], iteration_bounds = array<i64: 2, 1>, scalar_prefetch = 0 : i64, scratch_operands = 0 : i64, tpu.core_type = #tpu.core_type<tc>, window_params = [{transform_indices = @transform_0, window_bounds = array<i64: 1, 8, 128>}, {transform_indices = @transform_1, window_bounds = array<i64: 1, 8, 128>}, {transform_indices = @transform_2, window_bounds = array<i64: 1, 8, 128>}, {transform_indices = @transform_3, window_bounds = array<i64: 1, 8, 128>}, {pipeline_mode = #tpu.pipeline_mode<synchronous>, transform_indices = @transform_4, window_bounds = array<i64: 128, 128>}, {pipeline_mode = #tpu.pipeline_mode<synchronous>, transform_indices = @transform_5, window_bounds = array<i64: 1, 128>}, {pipeline_mode = #tpu.pipeline_mode<synchronous>, transform_indices = @transform_6, window_bounds = array<i64: 1, 128>}, {pipeline_mode = #tpu.pipeline_mode<synchronous>, transform_indices = @transform_7, window_bounds = array<i64: 1, 128>}, {transform_indices = @transform_8, window_bounds = array<i64: 1, 8, 128>}]} {
    %cst = arith.constant 0.000000e+00 : f32
    %0 = vector.broadcast %cst : f32 to vector<8x128xf32>
    %c0 = arith.constant 0 : index
    %c0_0 = arith.constant 0 : index
    %c0_1 = arith.constant 0 : index
    %1 = vector.load %arg2[%c0, %c0_0, %c0_1] : memref<1x8x128xbf16, #tpu.memory_space<vmem>>, vector<1x8x32xbf16>
    %2 = vector.shape_cast %1 : vector<1x8x32xbf16> to vector<8x32xbf16>
    %c0_2 = arith.constant 0 : index
    %c0_3 = arith.constant 0 : index
    %c0_4 = arith.constant 0 : index
    %3 = vector.load %arg3[%c0_2, %c0_3, %c0_4] : memref<1x8x128xbf16, #tpu.memory_space<vmem>>, vector<1x8x32xbf16>
    %4 = vector.shape_cast %3 : vector<1x8x32xbf16> to vector<8x32xbf16>
    %c0_5 = arith.constant 0 : index
    %c0_6 = arith.constant 0 : index
    %c0_7 = arith.constant 0 : index
    %5 = vector.load %arg4[%c0_5, %c0_6, %c0_7] : memref<1x8x128xbf16, #tpu.memory_space<vmem>>, vector<1x8x32xbf16>
    %6 = vector.shape_cast %5 : vector<1x8x32xbf16> to vector<8x32xbf16>
    %cst_8 = arith.constant dense<0.000000e+00> : vector<8x8xf32>
    %7 = tpu.matmul %2, %4, %cst_8 {dimension_numbers = #tpu.dot_dimension_numbers<[1], [1], [0], [0], [0, 0, 1, 0], [], []>} : vector<8x32xbf16>, vector<8x32xbf16>, vector<8x8xf32> -> vector<8x8xf32>
    %cst_9 = arith.constant 0.176776692 : f32
    %8 = vector.broadcast %cst_9 : f32 to vector<8x8xf32>
    %9 = arith.mulf %7, %8 : vector<8x8xf32>
    %cst_10 = arith.constant dense<0xFF800000> : vector<8xf32>
    %10 = vector.multi_reduction <maximumf>, %9, %cst_10 [1] : vector<8x8xf32> to vector<8xf32>
    %11 = vector.shape_cast %10 : vector<8xf32> to vector<8x1xf32>
    %12 = vector.broadcast %11 : vector<8x1xf32> to vector<8x8xf32>
    %13 = arith.subf %9, %12 : vector<8x8xf32>
    %14 = math.exp %13 : vector<8x8xf32>
    %cst_11 = arith.constant dense<0.000000e+00> : vector<8xf32>
    %15 = vector.multi_reduction <add>, %14, %cst_11 [1] : vector<8x8xf32> to vector<8xf32>
    %16 = vector.shape_cast %15 : vector<8xf32> to vector<8x1xf32>
    %17 = tpu.reciprocal %16 {approx = true} : vector<8x1xf32> -> vector<8x1xf32>
    %18 = vector.broadcast %17 : vector<8x1xf32> to vector<8x8xf32>
    %19 = arith.mulf %14, %18 : vector<8x8xf32>
    %20 = arith.truncf %19 : vector<8x8xf32> to vector<8x8xbf16>
    %cst_12 = arith.constant dense<0.000000e+00> : vector<8x32xf32>
    %21 = tpu.matmul %20, %6, %cst_12 {dimension_numbers = #tpu.dot_dimension_numbers<[1], [0], [0], [1], [0, 0, 1, 1], [], []>} : vector<8x8xbf16>, vector<8x32xbf16>, vector<8x32xf32> -> vector<8x32xf32>
    %c0_13 = arith.constant 0 : index
    %c0_14 = arith.constant 0 : index
    %22 = vector.load %arg6[%c0_13, %c0_14] : memref<128x128xbf16, #tpu.memory_space<vmem>>, vector<32x128xbf16>
    %23 = arith.truncf %21 : vector<8x32xf32> to vector<8x32xbf16>
    %cst_15 = arith.constant dense<0.000000e+00> : vector<8x128xf32>
    %24 = tpu.matmul %23, %22, %cst_15 {dimension_numbers = #tpu.dot_dimension_numbers<[1], [0], [0], [1], [0, 0, 1, 1], [], []>} : vector<8x32xbf16>, vector<32x128xbf16>, vector<8x128xf32> -> vector<8x128xf32>
    %25 = arith.addf %0, %24 : vector<8x128xf32>
    %c0_16 = arith.constant 0 : index
    %c0_17 = arith.constant 0 : index
    %c32 = arith.constant 32 : index
    %26 = vector.load %arg2[%c0_16, %c0_17, %c32] : memref<1x8x128xbf16, #tpu.memory_space<vmem>>, vector<1x8x32xbf16>
    %27 = vector.shape_cast %26 : vector<1x8x32xbf16> to vector<8x32xbf16>
    %c0_18 = arith.constant 0 : index
    %c0_19 = arith.constant 0 : index
    %c32_20 = arith.constant 32 : index
    %28 = vector.load %arg3[%c0_18, %c0_19, %c32_20] : memref<1x8x128xbf16, #tpu.memory_space<vmem>>, vector<1x8x32xbf16>
    %29 = vector.shape_cast %28 : vector<1x8x32xbf16> to vector<8x32xbf16>
    %c0_21 = arith.constant 0 : index
    %c0_22 = arith.constant 0 : index
    %c32_23 = arith.constant 32 : index
    %30 = vector.load %arg4[%c0_21, %c0_22, %c32_23] : memref<1x8x128xbf16, #tpu.memory_space<vmem>>, vector<1x8x32xbf16>
    %31 = vector.shape_cast %30 : vector<1x8x32xbf16> to vector<8x32xbf16>
    %cst_24 = arith.constant dense<0.000000e+00> : vector<8x8xf32>
    %32 = tpu.matmul %27, %29, %cst_24 {dimension_numbers = #tpu.dot_dimension_numbers<[1], [1], [0], [0], [0, 0, 1, 0], [], []>} : vector<8x32xbf16>, vector<8x32xbf16>, vector<8x8xf32> -> vector<8x8xf32>
    %cst_25 = arith.constant 0.176776692 : f32
    %33 = vector.broadcast %cst_25 : f32 to vector<8x8xf32>
    %34 = arith.mulf %32, %33 : vector<8x8xf32>
    %cst_26 = arith.constant dense<0xFF800000> : vector<8xf32>
    %35 = vector.multi_reduction <maximumf>, %34, %cst_26 [1] : vector<8x8xf32> to vector<8xf32>
    %36 = vector.shape_cast %35 : vector<8xf32> to vector<8x1xf32>
    %37 = vector.broadcast %36 : vector<8x1xf32> to vector<8x8xf32>
    %38 = arith.subf %34, %37 : vector<8x8xf32>
    %39 = math.exp %38 : vector<8x8xf32>
    %cst_27 = arith.constant dense<0.000000e+00> : vector<8xf32>
    %40 = vector.multi_reduction <add>, %39, %cst_27 [1] : vector<8x8xf32> to vector<8xf32>
    %41 = vector.shape_cast %40 : vector<8xf32> to vector<8x1xf32>
    %42 = tpu.reciprocal %41 {approx = true} : vector<8x1xf32> -> vector<8x1xf32>
    %43 = vector.broadcast %42 : vector<8x1xf32> to vector<8x8xf32>
    %44 = arith.mulf %39, %43 : vector<8x8xf32>
    %45 = arith.truncf %44 : vector<8x8xf32> to vector<8x8xbf16>
    %cst_28 = arith.constant dense<0.000000e+00> : vector<8x32xf32>
    %46 = tpu.matmul %45, %31, %cst_28 {dimension_numbers = #tpu.dot_dimension_numbers<[1], [0], [0], [1], [0, 0, 1, 1], [], []>} : vector<8x8xbf16>, vector<8x32xbf16>, vector<8x32xf32> -> vector<8x32xf32>
    %c32_29 = arith.constant 32 : index
    %c0_30 = arith.constant 0 : index
    %47 = vector.load %arg6[%c32_29, %c0_30] : memref<128x128xbf16, #tpu.memory_space<vmem>>, vector<32x128xbf16>
    %48 = arith.truncf %46 : vector<8x32xf32> to vector<8x32xbf16>
    %cst_31 = arith.constant dense<0.000000e+00> : vector<8x128xf32>
    %49 = tpu.matmul %48, %47, %cst_31 {dimension_numbers = #tpu.dot_dimension_numbers<[1], [0], [0], [1], [0, 0, 1, 1], [], []>} : vector<8x32xbf16>, vector<32x128xbf16>, vector<8x128xf32> -> vector<8x128xf32>
    %50 = arith.addf %25, %49 : vector<8x128xf32>
    %c0_32 = arith.constant 0 : index
    %c0_33 = arith.constant 0 : index
    %c64 = arith.constant 64 : index
    %51 = vector.load %arg2[%c0_32, %c0_33, %c64] : memref<1x8x128xbf16, #tpu.memory_space<vmem>>, vector<1x8x32xbf16>
    %52 = vector.shape_cast %51 : vector<1x8x32xbf16> to vector<8x32xbf16>
    %c0_34 = arith.constant 0 : index
    %c0_35 = arith.constant 0 : index
    %c64_36 = arith.constant 64 : index
    %53 = vector.load %arg3[%c0_34, %c0_35, %c64_36] : memref<1x8x128xbf16, #tpu.memory_space<vmem>>, vector<1x8x32xbf16>
    %54 = vector.shape_cast %53 : vector<1x8x32xbf16> to vector<8x32xbf16>
    %c0_37 = arith.constant 0 : index
    %c0_38 = arith.constant 0 : index
    %c64_39 = arith.constant 64 : index
    %55 = vector.load %arg4[%c0_37, %c0_38, %c64_39] : memref<1x8x128xbf16, #tpu.memory_space<vmem>>, vector<1x8x32xbf16>
    %56 = vector.shape_cast %55 : vector<1x8x32xbf16> to vector<8x32xbf16>
    %cst_40 = arith.constant dense<0.000000e+00> : vector<8x8xf32>
    %57 = tpu.matmul %52, %54, %cst_40 {dimension_numbers = #tpu.dot_dimension_numbers<[1], [1], [0], [0], [0, 0, 1, 0], [], []>} : vector<8x32xbf16>, vector<8x32xbf16>, vector<8x8xf32> -> vector<8x8xf32>
    %cst_41 = arith.constant 0.176776692 : f32
    %58 = vector.broadcast %cst_41 : f32 to vector<8x8xf32>
    %59 = arith.mulf %57, %58 : vector<8x8xf32>
    %cst_42 = arith.constant dense<0xFF800000> : vector<8xf32>
    %60 = vector.multi_reduction <maximumf>, %59, %cst_42 [1] : vector<8x8xf32> to vector<8xf32>
    %61 = vector.shape_cast %60 : vector<8xf32> to vector<8x1xf32>
    %62 = vector.broadcast %61 : vector<8x1xf32> to vector<8x8xf32>
    %63 = arith.subf %59, %62 : vector<8x8xf32>
    %64 = math.exp %63 : vector<8x8xf32>
    %cst_43 = arith.constant dense<0.000000e+00> : vector<8xf32>
    %65 = vector.multi_reduction <add>, %64, %cst_43 [1] : vector<8x8xf32> to vector<8xf32>
    %66 = vector.shape_cast %65 : vector<8xf32> to vector<8x1xf32>
    %67 = tpu.reciprocal %66 {approx = true} : vector<8x1xf32> -> vector<8x1xf32>
    %68 = vector.broadcast %67 : vector<8x1xf32> to vector<8x8xf32>
    %69 = arith.mulf %64, %68 : vector<8x8xf32>
    %70 = arith.truncf %69 : vector<8x8xf32> to vector<8x8xbf16>
    %cst_44 = arith.constant dense<0.000000e+00> : vector<8x32xf32>
    %71 = tpu.matmul %70, %56, %cst_44 {dimension_numbers = #tpu.dot_dimension_numbers<[1], [0], [0], [1], [0, 0, 1, 1], [], []>} : vector<8x8xbf16>, vector<8x32xbf16>, vector<8x32xf32> -> vector<8x32xf32>
    %c64_45 = arith.constant 64 : index
    %c0_46 = arith.constant 0 : index
    %72 = vector.load %arg6[%c64_45, %c0_46] : memref<128x128xbf16, #tpu.memory_space<vmem>>, vector<32x128xbf16>
    %73 = arith.truncf %71 : vector<8x32xf32> to vector<8x32xbf16>
    %cst_47 = arith.constant dense<0.000000e+00> : vector<8x128xf32>
    %74 = tpu.matmul %73, %72, %cst_47 {dimension_numbers = #tpu.dot_dimension_numbers<[1], [0], [0], [1], [0, 0, 1, 1], [], []>} : vector<8x32xbf16>, vector<32x128xbf16>, vector<8x128xf32> -> vector<8x128xf32>
    %75 = arith.addf %50, %74 : vector<8x128xf32>
    %c0_48 = arith.constant 0 : index
    %c0_49 = arith.constant 0 : index
    %c96 = arith.constant 96 : index
    %76 = vector.load %arg2[%c0_48, %c0_49, %c96] : memref<1x8x128xbf16, #tpu.memory_space<vmem>>, vector<1x8x32xbf16>
    %77 = vector.shape_cast %76 : vector<1x8x32xbf16> to vector<8x32xbf16>
    %c0_50 = arith.constant 0 : index
    %c0_51 = arith.constant 0 : index
    %c96_52 = arith.constant 96 : index
    %78 = vector.load %arg3[%c0_50, %c0_51, %c96_52] : memref<1x8x128xbf16, #tpu.memory_space<vmem>>, vector<1x8x32xbf16>
    %79 = vector.shape_cast %78 : vector<1x8x32xbf16> to vector<8x32xbf16>
    %c0_53 = arith.constant 0 : index
    %c0_54 = arith.constant 0 : index
    %c96_55 = arith.constant 96 : index
    %80 = vector.load %arg4[%c0_53, %c0_54, %c96_55] : memref<1x8x128xbf16, #tpu.memory_space<vmem>>, vector<1x8x32xbf16>
    %81 = vector.shape_cast %80 : vector<1x8x32xbf16> to vector<8x32xbf16>
    %cst_56 = arith.constant dense<0.000000e+00> : vector<8x8xf32>
    %82 = tpu.matmul %77, %79, %cst_56 {dimension_numbers = #tpu.dot_dimension_numbers<[1], [1], [0], [0], [0, 0, 1, 0], [], []>} : vector<8x32xbf16>, vector<8x32xbf16>, vector<8x8xf32> -> vector<8x8xf32>
    %cst_57 = arith.constant 0.176776692 : f32
    %83 = vector.broadcast %cst_57 : f32 to vector<8x8xf32>
    %84 = arith.mulf %82, %83 : vector<8x8xf32>
    %cst_58 = arith.constant dense<0xFF800000> : vector<8xf32>
    %85 = vector.multi_reduction <maximumf>, %84, %cst_58 [1] : vector<8x8xf32> to vector<8xf32>
    %86 = vector.shape_cast %85 : vector<8xf32> to vector<8x1xf32>
    %87 = vector.broadcast %86 : vector<8x1xf32> to vector<8x8xf32>
    %88 = arith.subf %84, %87 : vector<8x8xf32>
    %89 = math.exp %88 : vector<8x8xf32>
    %cst_59 = arith.constant dense<0.000000e+00> : vector<8xf32>
    %90 = vector.multi_reduction <add>, %89, %cst_59 [1] : vector<8x8xf32> to vector<8xf32>
    %91 = vector.shape_cast %90 : vector<8xf32> to vector<8x1xf32>
    %92 = tpu.reciprocal %91 {approx = true} : vector<8x1xf32> -> vector<8x1xf32>
    %93 = vector.broadcast %92 : vector<8x1xf32> to vector<8x8xf32>
    %94 = arith.mulf %89, %93 : vector<8x8xf32>
    %95 = arith.truncf %94 : vector<8x8xf32> to vector<8x8xbf16>
    %cst_60 = arith.constant dense<0.000000e+00> : vector<8x32xf32>
    %96 = tpu.matmul %95, %81, %cst_60 {dimension_numbers = #tpu.dot_dimension_numbers<[1], [0], [0], [1], [0, 0, 1, 1], [], []>} : vector<8x8xbf16>, vector<8x32xbf16>, vector<8x32xf32> -> vector<8x32xf32>
    %c96_61 = arith.constant 96 : index
    %c0_62 = arith.constant 0 : index
    %97 = vector.load %arg6[%c96_61, %c0_62] : memref<128x128xbf16, #tpu.memory_space<vmem>>, vector<32x128xbf16>
    %98 = arith.truncf %96 : vector<8x32xf32> to vector<8x32xbf16>
    %cst_63 = arith.constant dense<0.000000e+00> : vector<8x128xf32>
    %99 = tpu.matmul %98, %97, %cst_63 {dimension_numbers = #tpu.dot_dimension_numbers<[1], [0], [0], [1], [0, 0, 1, 1], [], []>} : vector<8x32xbf16>, vector<32x128xbf16>, vector<8x128xf32> -> vector<8x128xf32>
    %100 = arith.addf %75, %99 : vector<8x128xf32>
    %c0_64 = arith.constant 0 : index
    %c0_65 = arith.constant 0 : index
    %101 = vector.load %arg7[%c0_64, %c0_65] : memref<1x128xf32, #tpu.memory_space<vmem>>, vector<1x128xf32>
    %102 = vector.broadcast %101 : vector<1x128xf32> to vector<8x128xf32>
    %103 = arith.addf %100, %102 : vector<8x128xf32>
    %c0_66 = arith.constant 0 : index
    %c0_67 = arith.constant 0 : index
    %c0_68 = arith.constant 0 : index
    %104 = vector.load %arg5[%c0_66, %c0_67, %c0_68] : memref<1x8x128xbf16, #tpu.memory_space<vmem>>, vector<1x8x128xbf16>
    %105 = vector.shape_cast %104 : vector<1x8x128xbf16> to vector<8x128xbf16>
    %106 = arith.extf %105 : vector<8x128xbf16> to vector<8x128xf32>
    %107 = arith.addf %103, %106 : vector<8x128xf32>
    %cst_69 = arith.constant dense<0.000000e+00> : vector<8xf32>
    %108 = vector.multi_reduction <add>, %107, %cst_69 [1] : vector<8x128xf32> to vector<8xf32>
    %109 = vector.shape_cast %108 : vector<8xf32> to vector<8x1xf32>
    %cst_70 = arith.constant 1.280000e+02 : f32
    %110 = vector.broadcast %cst_70 : f32 to vector<8x1xf32>
    %111 = arith.divf %109, %110 : vector<8x1xf32>
    %112 = vector.broadcast %111 : vector<8x1xf32> to vector<8x128xf32>
    %113 = arith.subf %107, %112 : vector<8x128xf32>
    %114 = arith.mulf %113, %113 : vector<8x128xf32>
    %cst_71 = arith.constant dense<0.000000e+00> : vector<8xf32>
    %115 = vector.multi_reduction <add>, %114, %cst_71 [1] : vector<8x128xf32> to vector<8xf32>
    %116 = vector.shape_cast %115 : vector<8xf32> to vector<8x1xf32>
    %cst_72 = arith.constant 1.280000e+02 : f32
    %117 = vector.broadcast %cst_72 : f32 to vector<8x1xf32>
    %118 = arith.divf %116, %117 : vector<8x1xf32>
    %119 = vector.broadcast %111 : vector<8x1xf32> to vector<8x128xf32>
    %120 = arith.subf %107, %119 : vector<8x128xf32>
    %cst_73 = arith.constant 9.99999974E-6 : f32
    %121 = vector.broadcast %cst_73 : f32 to vector<8x1xf32>
    %122 = arith.addf %118, %121 : vector<8x1xf32>
    %123 = math.rsqrt %122 : vector<8x1xf32>
    %124 = vector.broadcast %123 : vector<8x1xf32> to vector<8x128xf32>
    %125 = arith.mulf %120, %124 : vector<8x128xf32>
    %c0_74 = arith.constant 0 : index
    %c0_75 = arith.constant 0 : index
    %126 = vector.load %arg8[%c0_74, %c0_75] : memref<1x128xf32, #tpu.memory_space<vmem>>, vector<1x128xf32>
    %127 = vector.broadcast %126 : vector<1x128xf32> to vector<8x128xf32>
    %128 = arith.mulf %125, %127 : vector<8x128xf32>
    %c0_76 = arith.constant 0 : index
    %c0_77 = arith.constant 0 : index
    %129 = vector.load %arg9[%c0_76, %c0_77] : memref<1x128xf32, #tpu.memory_space<vmem>>, vector<1x128xf32>
    %130 = vector.broadcast %129 : vector<1x128xf32> to vector<8x128xf32>
    %131 = arith.addf %128, %130 : vector<8x128xf32>
    %132 = arith.truncf %131 : vector<8x128xf32> to vector<8x128xbf16>
    %c0_78 = arith.constant 0 : index
    %c0_79 = arith.constant 0 : index
    %c0_80 = arith.constant 0 : index
    %133 = vector.load %arg10[%c0_78, %c0_79, %c0_80] : memref<1x8x128xbf16, #tpu.memory_space<vmem>>, vector<1x8x128xbf16>
    %134 = vector.shape_cast %133 : vector<1x8x128xbf16> to vector<8x128xbf16>
    %135 = vector.shape_cast %132 : vector<8x128xbf16> to vector<1x8x128xbf16>
    tpu.vector_store %arg10[%c0_78, %c0_79, %c0_80], %135 {strides = array<i32>} : memref<1x8x128xbf16, #tpu.memory_space<vmem>>, vector<1x8x128xbf16>,
    return
  }
  func.func @transform_0(%arg0: i32, %arg1: i32) -> (i32, i32, i32) {
    %c0_i32 = arith.constant 0 : i32
    %c0_i32_0 = arith.constant 0 : i32
    return %arg0, %arg1, %c0_i32 : i32, i32, i32
  }
  func.func @transform_1(%arg0: i32, %arg1: i32) -> (i32, i32, i32) {
    %c0_i32 = arith.constant 0 : i32
    %c1_i32 = arith.constant 1 : i32
    %c0_i32_0 = arith.constant 0 : i32
    return %arg0, %c0_i32, %c1_i32 : i32, i32, i32
  }
  func.func @transform_2(%arg0: i32, %arg1: i32) -> (i32, i32, i32) {
    %c0_i32 = arith.constant 0 : i32
    %c2_i32 = arith.constant 2 : i32
    %c0_i32_0 = arith.constant 0 : i32
    return %arg0, %c0_i32, %c2_i32 : i32, i32, i32
  }
  func.func @transform_3(%arg0: i32, %arg1: i32) -> (i32, i32, i32) {
    %c0_i32 = arith.constant 0 : i32
    %c0_i32_0 = arith.constant 0 : i32
    return %arg0, %arg1, %c0_i32 : i32, i32, i32
  }
  func.func @transform_4(%arg0: i32, %arg1: i32) -> (i32, i32) {
    %c0_i32 = arith.constant 0 : i32
    %c0_i32_0 = arith.constant 0 : i32
    %c0_i32_1 = arith.constant 0 : i32
    return %c0_i32, %c0_i32_0 : i32, i32
  }
  func.func @transform_5(%arg0: i32, %arg1: i32) -> (i32, i32) {
    %c0_i32 = arith.constant 0 : i32
    %c0_i32_0 = arith.constant 0 : i32
    %c0_i32_1 = arith.constant 0 : i32
    return %c0_i32, %c0_i32_0 : i32, i32
  }
  func.func @transform_6(%arg0: i32, %arg1: i32) -> (i32, i32) {
    %c0_i32 = arith.constant 0 : i32
    %c0_i32_0 = arith.constant 0 : i32
    %c0_i32_1 = arith.constant 0 : i32
    return %c0_i32, %c0_i32_0 : i32, i32
  }
  func.func @transform_7(%arg0: i32, %arg1: i32) -> (i32, i32) {
    %c0_i32 = arith.constant 0 : i32
    %c0_i32_0 = arith.constant 0 : i32
    %c0_i32_1 = arith.constant 0 : i32
    return %c0_i32, %c0_i32_0 : i32, i32
  }
  func.func @transform_8(%arg0: i32, %arg1: i32) -> (i32, i32, i32) {
    %c0_i32 = arith.constant 0 : i32
    %c0_i32_0 = arith.constant 0 : i32
    return %arg0, %arg1, %c0_i32 : i32, i32, i32
  }
}

module attributes {stable_mosaic.version = 11 : i64} {
  func.func @_matmul_bias_kernel(%arg0: i32, %arg1: i32, %arg2: memref<16x128xbf16, #tpu.memory_space<vmem>>, %arg3: memref<128x128xbf16, #tpu.memory_space<vmem>>, %arg4: memref<1x128xf32, #tpu.memory_space<vmem>>, %arg5: memref<16x128xbf16, #tpu.memory_space<vmem>>) attributes {dimension_semantics = [#tpu.dimension_semantics<parallel>, #tpu.dimension_semantics<parallel>], iteration_bounds = array<i64: 1, 1>, scalar_prefetch = 0 : i64, scratch_operands = 0 : i64, tpu.core_type = #tpu.core_type<tc>, window_params = [{transform_indices = @transform_0, window_bounds = array<i64: 16, 128>}, {transform_indices = @transform_1, window_bounds = array<i64: 128, 128>}, {transform_indices = @transform_2, window_bounds = array<i64: 1, 128>}, {transform_indices = @transform_3, window_bounds = array<i64: 16, 128>}]} {
    %c0 = arith.constant 0 : index
    %c0_0 = arith.constant 0 : index
    %0 = vector.load %arg2[%c0, %c0_0] : memref<16x128xbf16, #tpu.memory_space<vmem>>, vector<16x128xbf16>
    %c0_1 = arith.constant 0 : index
    %c0_2 = arith.constant 0 : index
    %1 = vector.load %arg3[%c0_1, %c0_2] : memref<128x128xbf16, #tpu.memory_space<vmem>>, vector<128x128xbf16>
    %cst = arith.constant dense<0.000000e+00> : vector<16x128xf32>
    %2 = tpu.matmul %0, %1, %cst {dimension_numbers = #tpu.dot_dimension_numbers<[1], [0], [0], [1], [0, 0, 1, 1], [], []>} : vector<16x128xbf16>, vector<128x128xbf16>, vector<16x128xf32> -> vector<16x128xf32>
    %c0_3 = arith.constant 0 : index
    %c0_4 = arith.constant 0 : index
    %3 = vector.load %arg4[%c0_3, %c0_4] : memref<1x128xf32, #tpu.memory_space<vmem>>, vector<1x128xf32>
    %4 = vector.broadcast %3 : vector<1x128xf32> to vector<16x128xf32>
    %5 = arith.addf %2, %4 : vector<16x128xf32>
    %6 = arith.truncf %5 : vector<16x128xf32> to vector<16x128xbf16>
    %c0_5 = arith.constant 0 : index
    %c0_6 = arith.constant 0 : index
    %7 = vector.load %arg5[%c0_5, %c0_6] : memref<16x128xbf16, #tpu.memory_space<vmem>>, vector<16x128xbf16>
    tpu.vector_store %arg5[%c0_5, %c0_6], %6 {strides = array<i32>} : memref<16x128xbf16, #tpu.memory_space<vmem>>, vector<16x128xbf16>,
    return
  }
  func.func @transform_0(%arg0: i32, %arg1: i32) -> (i32, i32) {
    %c0_i32 = arith.constant 0 : i32
    %c0_i32_0 = arith.constant 0 : i32
    return %arg0, %c0_i32 : i32, i32
  }
  func.func @transform_1(%arg0: i32, %arg1: i32) -> (i32, i32) {
    %c0_i32 = arith.constant 0 : i32
    %c0_i32_0 = arith.constant 0 : i32
    return %c0_i32, %arg1 : i32, i32
  }
  func.func @transform_2(%arg0: i32, %arg1: i32) -> (i32, i32) {
    %c0_i32 = arith.constant 0 : i32
    %c0_i32_0 = arith.constant 0 : i32
    return %c0_i32, %arg1 : i32, i32
  }
  func.func @transform_3(%arg0: i32, %arg1: i32) -> (i32, i32) {
    %c0_i32 = arith.constant 0 : i32
    return %arg0, %arg1 : i32, i32
  }
}

module attributes {stable_mosaic.version = 11 : i64} {
  func.func @_ffn_ln_kernel(%arg0: i32, %arg1: memref<16x128xbf16, #tpu.memory_space<vmem>>, %arg2: memref<128x256xbf16, #tpu.memory_space<vmem>>, %arg3: memref<1x256xf32, #tpu.memory_space<vmem>>, %arg4: memref<256x128xbf16, #tpu.memory_space<vmem>>, %arg5: memref<1x128xf32, #tpu.memory_space<vmem>>, %arg6: memref<1x128xf32, #tpu.memory_space<vmem>>, %arg7: memref<1x128xf32, #tpu.memory_space<vmem>>, %arg8: memref<16x128xbf16, #tpu.memory_space<vmem>>) attributes {dimension_semantics = [#tpu.dimension_semantics<parallel>], iteration_bounds = array<i64: 1>, scalar_prefetch = 0 : i64, scratch_operands = 0 : i64, tpu.core_type = #tpu.core_type<tc>, window_params = [{transform_indices = @transform_0, window_bounds = array<i64: 16, 128>}, {pipeline_mode = #tpu.pipeline_mode<synchronous>, transform_indices = @transform_1, window_bounds = array<i64: 128, 256>}, {pipeline_mode = #tpu.pipeline_mode<synchronous>, transform_indices = @transform_2, window_bounds = array<i64: 1, 256>}, {pipeline_mode = #tpu.pipeline_mode<synchronous>, transform_indices = @transform_3, window_bounds = array<i64: 256, 128>}, {pipeline_mode = #tpu.pipeline_mode<synchronous>, transform_indices = @transform_4, window_bounds = array<i64: 1, 128>}, {pipeline_mode = #tpu.pipeline_mode<synchronous>, transform_indices = @transform_5, window_bounds = array<i64: 1, 128>}, {pipeline_mode = #tpu.pipeline_mode<synchronous>, transform_indices = @transform_6, window_bounds = array<i64: 1, 128>}, {transform_indices = @transform_7, window_bounds = array<i64: 16, 128>}]} {
    %c0 = arith.constant 0 : index
    %c0_0 = arith.constant 0 : index
    %0 = vector.load %arg1[%c0, %c0_0] : memref<16x128xbf16, #tpu.memory_space<vmem>>, vector<16x128xbf16>
    %c0_1 = arith.constant 0 : index
    %c0_2 = arith.constant 0 : index
    %1 = vector.load %arg2[%c0_1, %c0_2] : memref<128x256xbf16, #tpu.memory_space<vmem>>, vector<128x256xbf16>
    %cst = arith.constant dense<0.000000e+00> : vector<16x256xf32>
    %2 = tpu.matmul %0, %1, %cst {dimension_numbers = #tpu.dot_dimension_numbers<[1], [0], [0], [1], [0, 0, 1, 1], [], []>} : vector<16x128xbf16>, vector<128x256xbf16>, vector<16x256xf32> -> vector<16x256xf32>
    %c0_3 = arith.constant 0 : index
    %c0_4 = arith.constant 0 : index
    %3 = vector.load %arg3[%c0_3, %c0_4] : memref<1x256xf32, #tpu.memory_space<vmem>>, vector<1x256xf32>
    %4 = vector.broadcast %3 : vector<1x256xf32> to vector<16x256xf32>
    %5 = arith.addf %2, %4 : vector<16x256xf32>
    %cst_5 = arith.constant 0.000000e+00 : f32
    %6 = vector.broadcast %cst_5 : f32 to vector<16x256xf32>
    %7 = arith.maximumf %5, %6 : vector<16x256xf32>
    %8 = arith.truncf %7 : vector<16x256xf32> to vector<16x256xbf16>
    %c0_6 = arith.constant 0 : index
    %c0_7 = arith.constant 0 : index
    %9 = vector.load %arg4[%c0_6, %c0_7] : memref<256x128xbf16, #tpu.memory_space<vmem>>, vector<256x128xbf16>
    %cst_8 = arith.constant dense<0.000000e+00> : vector<16x128xf32>
    %10 = tpu.matmul %8, %9, %cst_8 {dimension_numbers = #tpu.dot_dimension_numbers<[1], [0], [0], [1], [0, 0, 1, 1], [], []>} : vector<16x256xbf16>, vector<256x128xbf16>, vector<16x128xf32> -> vector<16x128xf32>
    %c0_9 = arith.constant 0 : index
    %c0_10 = arith.constant 0 : index
    %11 = vector.load %arg5[%c0_9, %c0_10] : memref<1x128xf32, #tpu.memory_space<vmem>>, vector<1x128xf32>
    %12 = vector.broadcast %11 : vector<1x128xf32> to vector<16x128xf32>
    %13 = arith.addf %10, %12 : vector<16x128xf32>
    %14 = arith.extf %0 : vector<16x128xbf16> to vector<16x128xf32>
    %15 = arith.addf %14, %13 : vector<16x128xf32>
    %cst_11 = arith.constant dense<0.000000e+00> : vector<16xf32>
    %16 = vector.multi_reduction <add>, %15, %cst_11 [1] : vector<16x128xf32> to vector<16xf32>
    %17 = vector.shape_cast %16 : vector<16xf32> to vector<16x1xf32>
    %cst_12 = arith.constant 1.280000e+02 : f32
    %18 = vector.broadcast %cst_12 : f32 to vector<16x1xf32>
    %19 = arith.divf %17, %18 : vector<16x1xf32>
    %20 = vector.broadcast %19 : vector<16x1xf32> to vector<16x128xf32>
    %21 = arith.subf %15, %20 : vector<16x128xf32>
    %22 = arith.mulf %21, %21 : vector<16x128xf32>
    %cst_13 = arith.constant dense<0.000000e+00> : vector<16xf32>
    %23 = vector.multi_reduction <add>, %22, %cst_13 [1] : vector<16x128xf32> to vector<16xf32>
    %24 = vector.shape_cast %23 : vector<16xf32> to vector<16x1xf32>
    %cst_14 = arith.constant 1.280000e+02 : f32
    %25 = vector.broadcast %cst_14 : f32 to vector<16x1xf32>
    %26 = arith.divf %24, %25 : vector<16x1xf32>
    %27 = vector.broadcast %19 : vector<16x1xf32> to vector<16x128xf32>
    %28 = arith.subf %15, %27 : vector<16x128xf32>
    %cst_15 = arith.constant 9.99999974E-6 : f32
    %29 = vector.broadcast %cst_15 : f32 to vector<16x1xf32>
    %30 = arith.addf %26, %29 : vector<16x1xf32>
    %31 = math.rsqrt %30 : vector<16x1xf32>
    %32 = vector.broadcast %31 : vector<16x1xf32> to vector<16x128xf32>
    %33 = arith.mulf %28, %32 : vector<16x128xf32>
    %c0_16 = arith.constant 0 : index
    %c0_17 = arith.constant 0 : index
    %34 = vector.load %arg6[%c0_16, %c0_17] : memref<1x128xf32, #tpu.memory_space<vmem>>, vector<1x128xf32>
    %35 = vector.broadcast %34 : vector<1x128xf32> to vector<16x128xf32>
    %36 = arith.mulf %33, %35 : vector<16x128xf32>
    %c0_18 = arith.constant 0 : index
    %c0_19 = arith.constant 0 : index
    %37 = vector.load %arg7[%c0_18, %c0_19] : memref<1x128xf32, #tpu.memory_space<vmem>>, vector<1x128xf32>
    %38 = vector.broadcast %37 : vector<1x128xf32> to vector<16x128xf32>
    %39 = arith.addf %36, %38 : vector<16x128xf32>
    %40 = arith.truncf %39 : vector<16x128xf32> to vector<16x128xbf16>
    %c0_20 = arith.constant 0 : index
    %c0_21 = arith.constant 0 : index
    %41 = vector.load %arg8[%c0_20, %c0_21] : memref<16x128xbf16, #tpu.memory_space<vmem>>, vector<16x128xbf16>
    tpu.vector_store %arg8[%c0_20, %c0_21], %40 {strides = array<i32>} : memref<16x128xbf16, #tpu.memory_space<vmem>>, vector<16x128xbf16>,
    return
  }
  func.func @transform_0(%arg0: i32) -> (i32, i32) {
    %c0_i32 = arith.constant 0 : i32
    %c0_i32_0 = arith.constant 0 : i32
    return %arg0, %c0_i32 : i32, i32
  }
  func.func @transform_1(%arg0: i32) -> (i32, i32) {
    %c0_i32 = arith.constant 0 : i32
    %c0_i32_0 = arith.constant 0 : i32
    %c0_i32_1 = arith.constant 0 : i32
    return %c0_i32, %c0_i32_0 : i32, i32
  }
  func.func @transform_2(%arg0: i32) -> (i32, i32) {
    %c0_i32 = arith.constant 0 : i32
    %c0_i32_0 = arith.constant 0 : i32
    %c0_i32_1 = arith.constant 0 : i32
    return %c0_i32, %c0_i32_0 : i32, i32
  }
  func.func @transform_3(%arg0: i32) -> (i32, i32) {
    %c0_i32 = arith.constant 0 : i32
    %c0_i32_0 = arith.constant 0 : i32
    %c0_i32_1 = arith.constant 0 : i32
    return %c0_i32, %c0_i32_0 : i32, i32
  }
  func.func @transform_4(%arg0: i32) -> (i32, i32) {
    %c0_i32 = arith.constant 0 : i32
    %c0_i32_0 = arith.constant 0 : i32
    %c0_i32_1 = arith.constant 0 : i32
    return %c0_i32, %c0_i32_0 : i32, i32
  }
  func.func @transform_5(%arg0: i32) -> (i32, i32) {
    %c0_i32 = arith.constant 0 : i32
    %c0_i32_0 = arith.constant 0 : i32
    %c0_i32_1 = arith.constant 0 : i32
    return %c0_i32, %c0_i32_0 : i32, i32
  }
  func.func @transform_6(%arg0: i32) -> (i32, i32) {
    %c0_i32 = arith.constant 0 : i32
    %c0_i32_0 = arith.constant 0 : i32
    %c0_i32_1 = arith.constant 0 : i32
    return %c0_i32, %c0_i32_0 : i32, i32
  }
  func.func @transform_7(%arg0: i32) -> (i32, i32) {
    %c0_i32 = arith.constant 0 : i32
    %c0_i32_0 = arith.constant 0 : i32
    return %arg0, %c0_i32 : i32, i32
  }
}

module attributes {stable_mosaic.version = 11 : i64} {
  func.func @_matmul_bias_kernel(%arg0: i32, %arg1: i32, %arg2: memref<16x128xbf16, #tpu.memory_space<vmem>>, %arg3: memref<128x384xbf16, #tpu.memory_space<vmem>>, %arg4: memref<1x384xf32, #tpu.memory_space<vmem>>, %arg5: memref<16x384xbf16, #tpu.memory_space<vmem>>) attributes {dimension_semantics = [#tpu.dimension_semantics<parallel>, #tpu.dimension_semantics<parallel>], iteration_bounds = array<i64: 1, 1>, scalar_prefetch = 0 : i64, scratch_operands = 0 : i64, tpu.core_type = #tpu.core_type<tc>, window_params = [{transform_indices = @transform_0, window_bounds = array<i64: 16, 128>}, {transform_indices = @transform_1, window_bounds = array<i64: 128, 384>}, {transform_indices = @transform_2, window_bounds = array<i64: 1, 384>}, {transform_indices = @transform_3, window_bounds = array<i64: 16, 384>}]} {
    %c0 = arith.constant 0 : index
    %c0_0 = arith.constant 0 : index
    %0 = vector.load %arg2[%c0, %c0_0] : memref<16x128xbf16, #tpu.memory_space<vmem>>, vector<16x128xbf16>
    %c0_1 = arith.constant 0 : index
    %c0_2 = arith.constant 0 : index
    %1 = vector.load %arg3[%c0_1, %c0_2] : memref<128x384xbf16, #tpu.memory_space<vmem>>, vector<128x384xbf16>
    %cst = arith.constant dense<0.000000e+00> : vector<16x384xf32>
    %2 = tpu.matmul %0, %1, %cst {dimension_numbers = #tpu.dot_dimension_numbers<[1], [0], [0], [1], [0, 0, 1, 1], [], []>} : vector<16x128xbf16>, vector<128x384xbf16>, vector<16x384xf32> -> vector<16x384xf32>
    %c0_3 = arith.constant 0 : index
    %c0_4 = arith.constant 0 : index
    %3 = vector.load %arg4[%c0_3, %c0_4] : memref<1x384xf32, #tpu.memory_space<vmem>>, vector<1x384xf32>
    %4 = vector.broadcast %3 : vector<1x384xf32> to vector<16x384xf32>
    %5 = arith.addf %2, %4 : vector<16x384xf32>
    %6 = arith.truncf %5 : vector<16x384xf32> to vector<16x384xbf16>
    %c0_5 = arith.constant 0 : index
    %c0_6 = arith.constant 0 : index
    %7 = vector.load %arg5[%c0_5, %c0_6] : memref<16x384xbf16, #tpu.memory_space<vmem>>, vector<16x384xbf16>
    tpu.vector_store %arg5[%c0_5, %c0_6], %6 {strides = array<i32>} : memref<16x384xbf16, #tpu.memory_space<vmem>>, vector<16x384xbf16>,
    return
  }
  func.func @transform_0(%arg0: i32, %arg1: i32) -> (i32, i32) {
    %c0_i32 = arith.constant 0 : i32
    %c0_i32_0 = arith.constant 0 : i32
    return %arg0, %c0_i32 : i32, i32
  }
  func.func @transform_1(%arg0: i32, %arg1: i32) -> (i32, i32) {
    %c0_i32 = arith.constant 0 : i32
    %c0_i32_0 = arith.constant 0 : i32
    return %c0_i32, %arg1 : i32, i32
  }
  func.func @transform_2(%arg0: i32, %arg1: i32) -> (i32, i32) {
    %c0_i32 = arith.constant 0 : i32
    %c0_i32_0 = arith.constant 0 : i32
    return %c0_i32, %arg1 : i32, i32
  }
  func.func @transform_3(%arg0: i32, %arg1: i32) -> (i32, i32) {
    %c0_i32 = arith.constant 0 : i32
    return %arg0, %arg1 : i32, i32
  }
}

module attributes {stable_mosaic.version = 11 : i64} {
  func.func @_ln_kernel(%arg0: i32, %arg1: memref<16x128xbf16, #tpu.memory_space<vmem>>, %arg2: memref<1x128xf32, #tpu.memory_space<vmem>>, %arg3: memref<1x128xf32, #tpu.memory_space<vmem>>, %arg4: memref<16x128xbf16, #tpu.memory_space<vmem>>) attributes {dimension_semantics = [#tpu.dimension_semantics<parallel>], iteration_bounds = array<i64: 1>, scalar_prefetch = 0 : i64, scratch_operands = 0 : i64, tpu.core_type = #tpu.core_type<tc>, window_params = [{transform_indices = @transform_0, window_bounds = array<i64: 16, 128>}, {pipeline_mode = #tpu.pipeline_mode<synchronous>, transform_indices = @transform_1, window_bounds = array<i64: 1, 128>}, {pipeline_mode = #tpu.pipeline_mode<synchronous>, transform_indices = @transform_2, window_bounds = array<i64: 1, 128>}, {transform_indices = @transform_3, window_bounds = array<i64: 16, 128>}]} {
    %c0 = arith.constant 0 : index
    %c0_0 = arith.constant 0 : index
    %0 = vector.load %arg1[%c0, %c0_0] : memref<16x128xbf16, #tpu.memory_space<vmem>>, vector<16x128xbf16>
    %1 = arith.extf %0 : vector<16x128xbf16> to vector<16x128xf32>
    %cst = arith.constant dense<0.000000e+00> : vector<16xf32>
    %2 = vector.multi_reduction <add>, %1, %cst [1] : vector<16x128xf32> to vector<16xf32>
    %3 = vector.shape_cast %2 : vector<16xf32> to vector<16x1xf32>
    %cst_1 = arith.constant 1.280000e+02 : f32
    %4 = vector.broadcast %cst_1 : f32 to vector<16x1xf32>
    %5 = arith.divf %3, %4 : vector<16x1xf32>
    %6 = vector.broadcast %5 : vector<16x1xf32> to vector<16x128xf32>
    %7 = arith.subf %1, %6 : vector<16x128xf32>
    %8 = arith.mulf %7, %7 : vector<16x128xf32>
    %cst_2 = arith.constant dense<0.000000e+00> : vector<16xf32>
    %9 = vector.multi_reduction <add>, %8, %cst_2 [1] : vector<16x128xf32> to vector<16xf32>
    %10 = vector.shape_cast %9 : vector<16xf32> to vector<16x1xf32>
    %cst_3 = arith.constant 1.280000e+02 : f32
    %11 = vector.broadcast %cst_3 : f32 to vector<16x1xf32>
    %12 = arith.divf %10, %11 : vector<16x1xf32>
    %13 = vector.broadcast %5 : vector<16x1xf32> to vector<16x128xf32>
    %14 = arith.subf %1, %13 : vector<16x128xf32>
    %cst_4 = arith.constant 9.99999974E-6 : f32
    %15 = vector.broadcast %cst_4 : f32 to vector<16x1xf32>
    %16 = arith.addf %12, %15 : vector<16x1xf32>
    %17 = math.rsqrt %16 : vector<16x1xf32>
    %18 = vector.broadcast %17 : vector<16x1xf32> to vector<16x128xf32>
    %19 = arith.mulf %14, %18 : vector<16x128xf32>
    %c0_5 = arith.constant 0 : index
    %c0_6 = arith.constant 0 : index
    %20 = vector.load %arg2[%c0_5, %c0_6] : memref<1x128xf32, #tpu.memory_space<vmem>>, vector<1x128xf32>
    %21 = vector.broadcast %20 : vector<1x128xf32> to vector<16x128xf32>
    %22 = arith.mulf %19, %21 : vector<16x128xf32>
    %c0_7 = arith.constant 0 : index
    %c0_8 = arith.constant 0 : index
    %23 = vector.load %arg3[%c0_7, %c0_8] : memref<1x128xf32, #tpu.memory_space<vmem>>, vector<1x128xf32>
    %24 = vector.broadcast %23 : vector<1x128xf32> to vector<16x128xf32>
    %25 = arith.addf %22, %24 : vector<16x128xf32>
    %26 = arith.truncf %25 : vector<16x128xf32> to vector<16x128xbf16>
    %c0_9 = arith.constant 0 : index
    %c0_10 = arith.constant 0 : index
    %27 = vector.load %arg4[%c0_9, %c0_10] : memref<16x128xbf16, #tpu.memory_space<vmem>>, vector<16x128xbf16>
    tpu.vector_store %arg4[%c0_9, %c0_10], %26 {strides = array<i32>} : memref<16x128xbf16, #tpu.memory_space<vmem>>, vector<16x128xbf16>,
    return
  }
  func.func @transform_0(%arg0: i32) -> (i32, i32) {
    %c0_i32 = arith.constant 0 : i32
    %c0_i32_0 = arith.constant 0 : i32
    return %arg0, %c0_i32 : i32, i32
  }
  func.func @transform_1(%arg0: i32) -> (i32, i32) {
    %c0_i32 = arith.constant 0 : i32
    %c0_i32_0 = arith.constant 0 : i32
    %c0_i32_1 = arith.constant 0 : i32
    return %c0_i32, %c0_i32_0 : i32, i32
  }
  func.func @transform_2(%arg0: i32) -> (i32, i32) {
    %c0_i32 = arith.constant 0 : i32
    %c0_i32_0 = arith.constant 0 : i32
    %c0_i32_1 = arith.constant 0 : i32
    return %c0_i32, %c0_i32_0 : i32, i32
  }
  func.func @transform_3(%arg0: i32) -> (i32, i32) {
    %c0_i32 = arith.constant 0 : i32
    %c0_i32_0 = arith.constant 0 : i32
    return %arg0, %c0_i32 : i32, i32
  }
}

module attributes {stable_mosaic.version = 11 : i64} {
  func.func @_matmul_bias_kernel(%arg0: i32, %arg1: i32, %arg2: memref<16x128xbf16, #tpu.memory_space<vmem>>, %arg3: memref<128x256xbf16, #tpu.memory_space<vmem>>, %arg4: memref<1x256xf32, #tpu.memory_space<vmem>>, %arg5: memref<16x256xbf16, #tpu.memory_space<vmem>>) attributes {dimension_semantics = [#tpu.dimension_semantics<parallel>, #tpu.dimension_semantics<parallel>], iteration_bounds = array<i64: 1, 1>, scalar_prefetch = 0 : i64, scratch_operands = 0 : i64, tpu.core_type = #tpu.core_type<tc>, window_params = [{transform_indices = @transform_0, window_bounds = array<i64: 16, 128>}, {transform_indices = @transform_1, window_bounds = array<i64: 128, 256>}, {transform_indices = @transform_2, window_bounds = array<i64: 1, 256>}, {transform_indices = @transform_3, window_bounds = array<i64: 16, 256>}]} {
    %c0 = arith.constant 0 : index
    %c0_0 = arith.constant 0 : index
    %0 = vector.load %arg2[%c0, %c0_0] : memref<16x128xbf16, #tpu.memory_space<vmem>>, vector<16x128xbf16>
    %c0_1 = arith.constant 0 : index
    %c0_2 = arith.constant 0 : index
    %1 = vector.load %arg3[%c0_1, %c0_2] : memref<128x256xbf16, #tpu.memory_space<vmem>>, vector<128x256xbf16>
    %cst = arith.constant dense<0.000000e+00> : vector<16x256xf32>
    %2 = tpu.matmul %0, %1, %cst {dimension_numbers = #tpu.dot_dimension_numbers<[1], [0], [0], [1], [0, 0, 1, 1], [], []>} : vector<16x128xbf16>, vector<128x256xbf16>, vector<16x256xf32> -> vector<16x256xf32>
    %c0_3 = arith.constant 0 : index
    %c0_4 = arith.constant 0 : index
    %3 = vector.load %arg4[%c0_3, %c0_4] : memref<1x256xf32, #tpu.memory_space<vmem>>, vector<1x256xf32>
    %4 = vector.broadcast %3 : vector<1x256xf32> to vector<16x256xf32>
    %5 = arith.addf %2, %4 : vector<16x256xf32>
    %6 = arith.truncf %5 : vector<16x256xf32> to vector<16x256xbf16>
    %c0_5 = arith.constant 0 : index
    %c0_6 = arith.constant 0 : index
    %7 = vector.load %arg5[%c0_5, %c0_6] : memref<16x256xbf16, #tpu.memory_space<vmem>>, vector<16x256xbf16>
    tpu.vector_store %arg5[%c0_5, %c0_6], %6 {strides = array<i32>} : memref<16x256xbf16, #tpu.memory_space<vmem>>, vector<16x256xbf16>,
    return
  }
  func.func @transform_0(%arg0: i32, %arg1: i32) -> (i32, i32) {
    %c0_i32 = arith.constant 0 : i32
    %c0_i32_0 = arith.constant 0 : i32
    return %arg0, %c0_i32 : i32, i32
  }
  func.func @transform_1(%arg0: i32, %arg1: i32) -> (i32, i32) {
    %c0_i32 = arith.constant 0 : i32
    %c0_i32_0 = arith.constant 0 : i32
    return %c0_i32, %arg1 : i32, i32
  }
  func.func @transform_2(%arg0: i32, %arg1: i32) -> (i32, i32) {
    %c0_i32 = arith.constant 0 : i32
    %c0_i32_0 = arith.constant 0 : i32
    return %c0_i32, %arg1 : i32, i32
  }
  func.func @transform_3(%arg0: i32, %arg1: i32) -> (i32, i32) {
    %c0_i32 = arith.constant 0 : i32
    return %arg0, %arg1 : i32, i32
  }
}

module attributes {stable_mosaic.version = 11 : i64} {
  func.func @_attn_ln_kernel(%arg0: i32, %arg1: i32, %arg2: memref<1x8x128xbf16, #tpu.memory_space<vmem>>, %arg3: memref<1x8x128xbf16, #tpu.memory_space<vmem>>, %arg4: memref<1x8x128xbf16, #tpu.memory_space<vmem>>, %arg5: memref<1x8x128xbf16, #tpu.memory_space<vmem>>, %arg6: memref<128x128xbf16, #tpu.memory_space<vmem>>, %arg7: memref<1x128xf32, #tpu.memory_space<vmem>>, %arg8: memref<1x128xf32, #tpu.memory_space<vmem>>, %arg9: memref<1x128xf32, #tpu.memory_space<vmem>>, %arg10: memref<1x8x128xbf16, #tpu.memory_space<vmem>>) attributes {dimension_semantics = [#tpu.dimension_semantics<parallel>, #tpu.dimension_semantics<parallel>], iteration_bounds = array<i64: 2, 1>, scalar_prefetch = 0 : i64, scratch_operands = 0 : i64, tpu.core_type = #tpu.core_type<tc>, window_params = [{transform_indices = @transform_0, window_bounds = array<i64: 1, 8, 128>}, {transform_indices = @transform_1, window_bounds = array<i64: 1, 8, 128>}, {transform_indices = @transform_2, window_bounds = array<i64: 1, 8, 128>}, {transform_indices = @transform_3, window_bounds = array<i64: 1, 8, 128>}, {pipeline_mode = #tpu.pipeline_mode<synchronous>, transform_indices = @transform_4, window_bounds = array<i64: 128, 128>}, {pipeline_mode = #tpu.pipeline_mode<synchronous>, transform_indices = @transform_5, window_bounds = array<i64: 1, 128>}, {pipeline_mode = #tpu.pipeline_mode<synchronous>, transform_indices = @transform_6, window_bounds = array<i64: 1, 128>}, {pipeline_mode = #tpu.pipeline_mode<synchronous>, transform_indices = @transform_7, window_bounds = array<i64: 1, 128>}, {transform_indices = @transform_8, window_bounds = array<i64: 1, 8, 128>}]} {
    %cst = arith.constant 0.000000e+00 : f32
    %0 = vector.broadcast %cst : f32 to vector<8x128xf32>
    %c0 = arith.constant 0 : index
    %c0_0 = arith.constant 0 : index
    %c0_1 = arith.constant 0 : index
    %1 = vector.load %arg2[%c0, %c0_0, %c0_1] : memref<1x8x128xbf16, #tpu.memory_space<vmem>>, vector<1x8x32xbf16>
    %2 = vector.shape_cast %1 : vector<1x8x32xbf16> to vector<8x32xbf16>
    %c0_2 = arith.constant 0 : index
    %c0_3 = arith.constant 0 : index
    %c0_4 = arith.constant 0 : index
    %3 = vector.load %arg3[%c0_2, %c0_3, %c0_4] : memref<1x8x128xbf16, #tpu.memory_space<vmem>>, vector<1x8x32xbf16>
    %4 = vector.shape_cast %3 : vector<1x8x32xbf16> to vector<8x32xbf16>
    %c0_5 = arith.constant 0 : index
    %c0_6 = arith.constant 0 : index
    %c0_7 = arith.constant 0 : index
    %5 = vector.load %arg4[%c0_5, %c0_6, %c0_7] : memref<1x8x128xbf16, #tpu.memory_space<vmem>>, vector<1x8x32xbf16>
    %6 = vector.shape_cast %5 : vector<1x8x32xbf16> to vector<8x32xbf16>
    %cst_8 = arith.constant dense<0.000000e+00> : vector<8x8xf32>
    %7 = tpu.matmul %2, %4, %cst_8 {dimension_numbers = #tpu.dot_dimension_numbers<[1], [1], [0], [0], [0, 0, 1, 0], [], []>} : vector<8x32xbf16>, vector<8x32xbf16>, vector<8x8xf32> -> vector<8x8xf32>
    %cst_9 = arith.constant 0.176776692 : f32
    %8 = vector.broadcast %cst_9 : f32 to vector<8x8xf32>
    %9 = arith.mulf %7, %8 : vector<8x8xf32>
    %cst_10 = arith.constant dense<0xFF800000> : vector<8xf32>
    %10 = vector.multi_reduction <maximumf>, %9, %cst_10 [1] : vector<8x8xf32> to vector<8xf32>
    %11 = vector.shape_cast %10 : vector<8xf32> to vector<8x1xf32>
    %12 = vector.broadcast %11 : vector<8x1xf32> to vector<8x8xf32>
    %13 = arith.subf %9, %12 : vector<8x8xf32>
    %14 = math.exp %13 : vector<8x8xf32>
    %cst_11 = arith.constant dense<0.000000e+00> : vector<8xf32>
    %15 = vector.multi_reduction <add>, %14, %cst_11 [1] : vector<8x8xf32> to vector<8xf32>
    %16 = vector.shape_cast %15 : vector<8xf32> to vector<8x1xf32>
    %17 = tpu.reciprocal %16 {approx = true} : vector<8x1xf32> -> vector<8x1xf32>
    %18 = vector.broadcast %17 : vector<8x1xf32> to vector<8x8xf32>
    %19 = arith.mulf %14, %18 : vector<8x8xf32>
    %20 = arith.truncf %19 : vector<8x8xf32> to vector<8x8xbf16>
    %cst_12 = arith.constant dense<0.000000e+00> : vector<8x32xf32>
    %21 = tpu.matmul %20, %6, %cst_12 {dimension_numbers = #tpu.dot_dimension_numbers<[1], [0], [0], [1], [0, 0, 1, 1], [], []>} : vector<8x8xbf16>, vector<8x32xbf16>, vector<8x32xf32> -> vector<8x32xf32>
    %c0_13 = arith.constant 0 : index
    %c0_14 = arith.constant 0 : index
    %22 = vector.load %arg6[%c0_13, %c0_14] : memref<128x128xbf16, #tpu.memory_space<vmem>>, vector<32x128xbf16>
    %23 = arith.truncf %21 : vector<8x32xf32> to vector<8x32xbf16>
    %cst_15 = arith.constant dense<0.000000e+00> : vector<8x128xf32>
    %24 = tpu.matmul %23, %22, %cst_15 {dimension_numbers = #tpu.dot_dimension_numbers<[1], [0], [0], [1], [0, 0, 1, 1], [], []>} : vector<8x32xbf16>, vector<32x128xbf16>, vector<8x128xf32> -> vector<8x128xf32>
    %25 = arith.addf %0, %24 : vector<8x128xf32>
    %c0_16 = arith.constant 0 : index
    %c0_17 = arith.constant 0 : index
    %c32 = arith.constant 32 : index
    %26 = vector.load %arg2[%c0_16, %c0_17, %c32] : memref<1x8x128xbf16, #tpu.memory_space<vmem>>, vector<1x8x32xbf16>
    %27 = vector.shape_cast %26 : vector<1x8x32xbf16> to vector<8x32xbf16>
    %c0_18 = arith.constant 0 : index
    %c0_19 = arith.constant 0 : index
    %c32_20 = arith.constant 32 : index
    %28 = vector.load %arg3[%c0_18, %c0_19, %c32_20] : memref<1x8x128xbf16, #tpu.memory_space<vmem>>, vector<1x8x32xbf16>
    %29 = vector.shape_cast %28 : vector<1x8x32xbf16> to vector<8x32xbf16>
    %c0_21 = arith.constant 0 : index
    %c0_22 = arith.constant 0 : index
    %c32_23 = arith.constant 32 : index
    %30 = vector.load %arg4[%c0_21, %c0_22, %c32_23] : memref<1x8x128xbf16, #tpu.memory_space<vmem>>, vector<1x8x32xbf16>
    %31 = vector.shape_cast %30 : vector<1x8x32xbf16> to vector<8x32xbf16>
    %cst_24 = arith.constant dense<0.000000e+00> : vector<8x8xf32>
    %32 = tpu.matmul %27, %29, %cst_24 {dimension_numbers = #tpu.dot_dimension_numbers<[1], [1], [0], [0], [0, 0, 1, 0], [], []>} : vector<8x32xbf16>, vector<8x32xbf16>, vector<8x8xf32> -> vector<8x8xf32>
    %cst_25 = arith.constant 0.176776692 : f32
    %33 = vector.broadcast %cst_25 : f32 to vector<8x8xf32>
    %34 = arith.mulf %32, %33 : vector<8x8xf32>
    %cst_26 = arith.constant dense<0xFF800000> : vector<8xf32>
    %35 = vector.multi_reduction <maximumf>, %34, %cst_26 [1] : vector<8x8xf32> to vector<8xf32>
    %36 = vector.shape_cast %35 : vector<8xf32> to vector<8x1xf32>
    %37 = vector.broadcast %36 : vector<8x1xf32> to vector<8x8xf32>
    %38 = arith.subf %34, %37 : vector<8x8xf32>
    %39 = math.exp %38 : vector<8x8xf32>
    %cst_27 = arith.constant dense<0.000000e+00> : vector<8xf32>
    %40 = vector.multi_reduction <add>, %39, %cst_27 [1] : vector<8x8xf32> to vector<8xf32>
    %41 = vector.shape_cast %40 : vector<8xf32> to vector<8x1xf32>
    %42 = tpu.reciprocal %41 {approx = true} : vector<8x1xf32> -> vector<8x1xf32>
    %43 = vector.broadcast %42 : vector<8x1xf32> to vector<8x8xf32>
    %44 = arith.mulf %39, %43 : vector<8x8xf32>
    %45 = arith.truncf %44 : vector<8x8xf32> to vector<8x8xbf16>
    %cst_28 = arith.constant dense<0.000000e+00> : vector<8x32xf32>
    %46 = tpu.matmul %45, %31, %cst_28 {dimension_numbers = #tpu.dot_dimension_numbers<[1], [0], [0], [1], [0, 0, 1, 1], [], []>} : vector<8x8xbf16>, vector<8x32xbf16>, vector<8x32xf32> -> vector<8x32xf32>
    %c32_29 = arith.constant 32 : index
    %c0_30 = arith.constant 0 : index
    %47 = vector.load %arg6[%c32_29, %c0_30] : memref<128x128xbf16, #tpu.memory_space<vmem>>, vector<32x128xbf16>
    %48 = arith.truncf %46 : vector<8x32xf32> to vector<8x32xbf16>
    %cst_31 = arith.constant dense<0.000000e+00> : vector<8x128xf32>
    %49 = tpu.matmul %48, %47, %cst_31 {dimension_numbers = #tpu.dot_dimension_numbers<[1], [0], [0], [1], [0, 0, 1, 1], [], []>} : vector<8x32xbf16>, vector<32x128xbf16>, vector<8x128xf32> -> vector<8x128xf32>
    %50 = arith.addf %25, %49 : vector<8x128xf32>
    %c0_32 = arith.constant 0 : index
    %c0_33 = arith.constant 0 : index
    %c64 = arith.constant 64 : index
    %51 = vector.load %arg2[%c0_32, %c0_33, %c64] : memref<1x8x128xbf16, #tpu.memory_space<vmem>>, vector<1x8x32xbf16>
    %52 = vector.shape_cast %51 : vector<1x8x32xbf16> to vector<8x32xbf16>
    %c0_34 = arith.constant 0 : index
    %c0_35 = arith.constant 0 : index
    %c64_36 = arith.constant 64 : index
    %53 = vector.load %arg3[%c0_34, %c0_35, %c64_36] : memref<1x8x128xbf16, #tpu.memory_space<vmem>>, vector<1x8x32xbf16>
    %54 = vector.shape_cast %53 : vector<1x8x32xbf16> to vector<8x32xbf16>
    %c0_37 = arith.constant 0 : index
    %c0_38 = arith.constant 0 : index
    %c64_39 = arith.constant 64 : index
    %55 = vector.load %arg4[%c0_37, %c0_38, %c64_39] : memref<1x8x128xbf16, #tpu.memory_space<vmem>>, vector<1x8x32xbf16>
    %56 = vector.shape_cast %55 : vector<1x8x32xbf16> to vector<8x32xbf16>
    %cst_40 = arith.constant dense<0.000000e+00> : vector<8x8xf32>
    %57 = tpu.matmul %52, %54, %cst_40 {dimension_numbers = #tpu.dot_dimension_numbers<[1], [1], [0], [0], [0, 0, 1, 0], [], []>} : vector<8x32xbf16>, vector<8x32xbf16>, vector<8x8xf32> -> vector<8x8xf32>
    %cst_41 = arith.constant 0.176776692 : f32
    %58 = vector.broadcast %cst_41 : f32 to vector<8x8xf32>
    %59 = arith.mulf %57, %58 : vector<8x8xf32>
    %cst_42 = arith.constant dense<0xFF800000> : vector<8xf32>
    %60 = vector.multi_reduction <maximumf>, %59, %cst_42 [1] : vector<8x8xf32> to vector<8xf32>
    %61 = vector.shape_cast %60 : vector<8xf32> to vector<8x1xf32>
    %62 = vector.broadcast %61 : vector<8x1xf32> to vector<8x8xf32>
    %63 = arith.subf %59, %62 : vector<8x8xf32>
    %64 = math.exp %63 : vector<8x8xf32>
    %cst_43 = arith.constant dense<0.000000e+00> : vector<8xf32>
    %65 = vector.multi_reduction <add>, %64, %cst_43 [1] : vector<8x8xf32> to vector<8xf32>
    %66 = vector.shape_cast %65 : vector<8xf32> to vector<8x1xf32>
    %67 = tpu.reciprocal %66 {approx = true} : vector<8x1xf32> -> vector<8x1xf32>
    %68 = vector.broadcast %67 : vector<8x1xf32> to vector<8x8xf32>
    %69 = arith.mulf %64, %68 : vector<8x8xf32>
    %70 = arith.truncf %69 : vector<8x8xf32> to vector<8x8xbf16>
    %cst_44 = arith.constant dense<0.000000e+00> : vector<8x32xf32>
    %71 = tpu.matmul %70, %56, %cst_44 {dimension_numbers = #tpu.dot_dimension_numbers<[1], [0], [0], [1], [0, 0, 1, 1], [], []>} : vector<8x8xbf16>, vector<8x32xbf16>, vector<8x32xf32> -> vector<8x32xf32>
    %c64_45 = arith.constant 64 : index
    %c0_46 = arith.constant 0 : index
    %72 = vector.load %arg6[%c64_45, %c0_46] : memref<128x128xbf16, #tpu.memory_space<vmem>>, vector<32x128xbf16>
    %73 = arith.truncf %71 : vector<8x32xf32> to vector<8x32xbf16>
    %cst_47 = arith.constant dense<0.000000e+00> : vector<8x128xf32>
    %74 = tpu.matmul %73, %72, %cst_47 {dimension_numbers = #tpu.dot_dimension_numbers<[1], [0], [0], [1], [0, 0, 1, 1], [], []>} : vector<8x32xbf16>, vector<32x128xbf16>, vector<8x128xf32> -> vector<8x128xf32>
    %75 = arith.addf %50, %74 : vector<8x128xf32>
    %c0_48 = arith.constant 0 : index
    %c0_49 = arith.constant 0 : index
    %c96 = arith.constant 96 : index
    %76 = vector.load %arg2[%c0_48, %c0_49, %c96] : memref<1x8x128xbf16, #tpu.memory_space<vmem>>, vector<1x8x32xbf16>
    %77 = vector.shape_cast %76 : vector<1x8x32xbf16> to vector<8x32xbf16>
    %c0_50 = arith.constant 0 : index
    %c0_51 = arith.constant 0 : index
    %c96_52 = arith.constant 96 : index
    %78 = vector.load %arg3[%c0_50, %c0_51, %c96_52] : memref<1x8x128xbf16, #tpu.memory_space<vmem>>, vector<1x8x32xbf16>
    %79 = vector.shape_cast %78 : vector<1x8x32xbf16> to vector<8x32xbf16>
    %c0_53 = arith.constant 0 : index
    %c0_54 = arith.constant 0 : index
    %c96_55 = arith.constant 96 : index
    %80 = vector.load %arg4[%c0_53, %c0_54, %c96_55] : memref<1x8x128xbf16, #tpu.memory_space<vmem>>, vector<1x8x32xbf16>
    %81 = vector.shape_cast %80 : vector<1x8x32xbf16> to vector<8x32xbf16>
    %cst_56 = arith.constant dense<0.000000e+00> : vector<8x8xf32>
    %82 = tpu.matmul %77, %79, %cst_56 {dimension_numbers = #tpu.dot_dimension_numbers<[1], [1], [0], [0], [0, 0, 1, 0], [], []>} : vector<8x32xbf16>, vector<8x32xbf16>, vector<8x8xf32> -> vector<8x8xf32>
    %cst_57 = arith.constant 0.176776692 : f32
    %83 = vector.broadcast %cst_57 : f32 to vector<8x8xf32>
    %84 = arith.mulf %82, %83 : vector<8x8xf32>
    %cst_58 = arith.constant dense<0xFF800000> : vector<8xf32>
    %85 = vector.multi_reduction <maximumf>, %84, %cst_58 [1] : vector<8x8xf32> to vector<8xf32>
    %86 = vector.shape_cast %85 : vector<8xf32> to vector<8x1xf32>
    %87 = vector.broadcast %86 : vector<8x1xf32> to vector<8x8xf32>
    %88 = arith.subf %84, %87 : vector<8x8xf32>
    %89 = math.exp %88 : vector<8x8xf32>
    %cst_59 = arith.constant dense<0.000000e+00> : vector<8xf32>
    %90 = vector.multi_reduction <add>, %89, %cst_59 [1] : vector<8x8xf32> to vector<8xf32>
    %91 = vector.shape_cast %90 : vector<8xf32> to vector<8x1xf32>
    %92 = tpu.reciprocal %91 {approx = true} : vector<8x1xf32> -> vector<8x1xf32>
    %93 = vector.broadcast %92 : vector<8x1xf32> to vector<8x8xf32>
    %94 = arith.mulf %89, %93 : vector<8x8xf32>
    %95 = arith.truncf %94 : vector<8x8xf32> to vector<8x8xbf16>
    %cst_60 = arith.constant dense<0.000000e+00> : vector<8x32xf32>
    %96 = tpu.matmul %95, %81, %cst_60 {dimension_numbers = #tpu.dot_dimension_numbers<[1], [0], [0], [1], [0, 0, 1, 1], [], []>} : vector<8x8xbf16>, vector<8x32xbf16>, vector<8x32xf32> -> vector<8x32xf32>
    %c96_61 = arith.constant 96 : index
    %c0_62 = arith.constant 0 : index
    %97 = vector.load %arg6[%c96_61, %c0_62] : memref<128x128xbf16, #tpu.memory_space<vmem>>, vector<32x128xbf16>
    %98 = arith.truncf %96 : vector<8x32xf32> to vector<8x32xbf16>
    %cst_63 = arith.constant dense<0.000000e+00> : vector<8x128xf32>
    %99 = tpu.matmul %98, %97, %cst_63 {dimension_numbers = #tpu.dot_dimension_numbers<[1], [0], [0], [1], [0, 0, 1, 1], [], []>} : vector<8x32xbf16>, vector<32x128xbf16>, vector<8x128xf32> -> vector<8x128xf32>
    %100 = arith.addf %75, %99 : vector<8x128xf32>
    %c0_64 = arith.constant 0 : index
    %c0_65 = arith.constant 0 : index
    %101 = vector.load %arg7[%c0_64, %c0_65] : memref<1x128xf32, #tpu.memory_space<vmem>>, vector<1x128xf32>
    %102 = vector.broadcast %101 : vector<1x128xf32> to vector<8x128xf32>
    %103 = arith.addf %100, %102 : vector<8x128xf32>
    %c0_66 = arith.constant 0 : index
    %c0_67 = arith.constant 0 : index
    %c0_68 = arith.constant 0 : index
    %104 = vector.load %arg5[%c0_66, %c0_67, %c0_68] : memref<1x8x128xbf16, #tpu.memory_space<vmem>>, vector<1x8x128xbf16>
    %105 = vector.shape_cast %104 : vector<1x8x128xbf16> to vector<8x128xbf16>
    %106 = arith.extf %105 : vector<8x128xbf16> to vector<8x128xf32>
    %107 = arith.addf %103, %106 : vector<8x128xf32>
    %cst_69 = arith.constant dense<0.000000e+00> : vector<8xf32>
    %108 = vector.multi_reduction <add>, %107, %cst_69 [1] : vector<8x128xf32> to vector<8xf32>
    %109 = vector.shape_cast %108 : vector<8xf32> to vector<8x1xf32>
    %cst_70 = arith.constant 1.280000e+02 : f32
    %110 = vector.broadcast %cst_70 : f32 to vector<8x1xf32>
    %111 = arith.divf %109, %110 : vector<8x1xf32>
    %112 = vector.broadcast %111 : vector<8x1xf32> to vector<8x128xf32>
    %113 = arith.subf %107, %112 : vector<8x128xf32>
    %114 = arith.mulf %113, %113 : vector<8x128xf32>
    %cst_71 = arith.constant dense<0.000000e+00> : vector<8xf32>
    %115 = vector.multi_reduction <add>, %114, %cst_71 [1] : vector<8x128xf32> to vector<8xf32>
    %116 = vector.shape_cast %115 : vector<8xf32> to vector<8x1xf32>
    %cst_72 = arith.constant 1.280000e+02 : f32
    %117 = vector.broadcast %cst_72 : f32 to vector<8x1xf32>
    %118 = arith.divf %116, %117 : vector<8x1xf32>
    %119 = vector.broadcast %111 : vector<8x1xf32> to vector<8x128xf32>
    %120 = arith.subf %107, %119 : vector<8x128xf32>
    %cst_73 = arith.constant 9.99999974E-6 : f32
    %121 = vector.broadcast %cst_73 : f32 to vector<8x1xf32>
    %122 = arith.addf %118, %121 : vector<8x1xf32>
    %123 = math.rsqrt %122 : vector<8x1xf32>
    %124 = vector.broadcast %123 : vector<8x1xf32> to vector<8x128xf32>
    %125 = arith.mulf %120, %124 : vector<8x128xf32>
    %c0_74 = arith.constant 0 : index
    %c0_75 = arith.constant 0 : index
    %126 = vector.load %arg8[%c0_74, %c0_75] : memref<1x128xf32, #tpu.memory_space<vmem>>, vector<1x128xf32>
    %127 = vector.broadcast %126 : vector<1x128xf32> to vector<8x128xf32>
    %128 = arith.mulf %125, %127 : vector<8x128xf32>
    %c0_76 = arith.constant 0 : index
    %c0_77 = arith.constant 0 : index
    %129 = vector.load %arg9[%c0_76, %c0_77] : memref<1x128xf32, #tpu.memory_space<vmem>>, vector<1x128xf32>
    %130 = vector.broadcast %129 : vector<1x128xf32> to vector<8x128xf32>
    %131 = arith.addf %128, %130 : vector<8x128xf32>
    %132 = arith.truncf %131 : vector<8x128xf32> to vector<8x128xbf16>
    %c0_78 = arith.constant 0 : index
    %c0_79 = arith.constant 0 : index
    %c0_80 = arith.constant 0 : index
    %133 = vector.load %arg10[%c0_78, %c0_79, %c0_80] : memref<1x8x128xbf16, #tpu.memory_space<vmem>>, vector<1x8x128xbf16>
    %134 = vector.shape_cast %133 : vector<1x8x128xbf16> to vector<8x128xbf16>
    %135 = vector.shape_cast %132 : vector<8x128xbf16> to vector<1x8x128xbf16>
    tpu.vector_store %arg10[%c0_78, %c0_79, %c0_80], %135 {strides = array<i32>} : memref<1x8x128xbf16, #tpu.memory_space<vmem>>, vector<1x8x128xbf16>,
    return
  }
  func.func @transform_0(%arg0: i32, %arg1: i32) -> (i32, i32, i32) {
    %c0_i32 = arith.constant 0 : i32
    %c0_i32_0 = arith.constant 0 : i32
    return %arg0, %arg1, %c0_i32 : i32, i32, i32
  }
  func.func @transform_1(%arg0: i32, %arg1: i32) -> (i32, i32, i32) {
    %c0_i32 = arith.constant 0 : i32
    %c0_i32_0 = arith.constant 0 : i32
    %c0_i32_1 = arith.constant 0 : i32
    return %arg0, %c0_i32, %c0_i32_0 : i32, i32, i32
  }
  func.func @transform_2(%arg0: i32, %arg1: i32) -> (i32, i32, i32) {
    %c0_i32 = arith.constant 0 : i32
    %c1_i32 = arith.constant 1 : i32
    %c0_i32_0 = arith.constant 0 : i32
    return %arg0, %c0_i32, %c1_i32 : i32, i32, i32
  }
  func.func @transform_3(%arg0: i32, %arg1: i32) -> (i32, i32, i32) {
    %c0_i32 = arith.constant 0 : i32
    %c0_i32_0 = arith.constant 0 : i32
    return %arg0, %arg1, %c0_i32 : i32, i32, i32
  }
  func.func @transform_4(%arg0: i32, %arg1: i32) -> (i32, i32) {
    %c0_i32 = arith.constant 0 : i32
    %c0_i32_0 = arith.constant 0 : i32
    %c0_i32_1 = arith.constant 0 : i32
    return %c0_i32, %c0_i32_0 : i32, i32
  }
  func.func @transform_5(%arg0: i32, %arg1: i32) -> (i32, i32) {
    %c0_i32 = arith.constant 0 : i32
    %c0_i32_0 = arith.constant 0 : i32
    %c0_i32_1 = arith.constant 0 : i32
    return %c0_i32, %c0_i32_0 : i32, i32
  }
  func.func @transform_6(%arg0: i32, %arg1: i32) -> (i32, i32) {
    %c0_i32 = arith.constant 0 : i32
    %c0_i32_0 = arith.constant 0 : i32
    %c0_i32_1 = arith.constant 0 : i32
    return %c0_i32, %c0_i32_0 : i32, i32
  }
  func.func @transform_7(%arg0: i32, %arg1: i32) -> (i32, i32) {
    %c0_i32 = arith.constant 0 : i32
    %c0_i32_0 = arith.constant 0 : i32
    %c0_i32_1 = arith.constant 0 : i32
    return %c0_i32, %c0_i32_0 : i32, i32
  }
  func.func @transform_8(%arg0: i32, %arg1: i32) -> (i32, i32, i32) {
    %c0_i32 = arith.constant 0 : i32
    %c0_i32_0 = arith.constant 0 : i32
    return %arg0, %arg1, %c0_i32 : i32, i32, i32
  }
}

module attributes {stable_mosaic.version = 11 : i64} {
  func.func @_matmul_bias_kernel(%arg0: i32, %arg1: i32, %arg2: memref<16x128xbf16, #tpu.memory_space<vmem>>, %arg3: memref<128x256xbf16, #tpu.memory_space<vmem>>, %arg4: memref<1x256xf32, #tpu.memory_space<vmem>>, %arg5: memref<16x256xf32, #tpu.memory_space<vmem>>) attributes {dimension_semantics = [#tpu.dimension_semantics<parallel>, #tpu.dimension_semantics<parallel>], iteration_bounds = array<i64: 1, 1>, scalar_prefetch = 0 : i64, scratch_operands = 0 : i64, tpu.core_type = #tpu.core_type<tc>, window_params = [{transform_indices = @transform_0, window_bounds = array<i64: 16, 128>}, {transform_indices = @transform_1, window_bounds = array<i64: 128, 256>}, {transform_indices = @transform_2, window_bounds = array<i64: 1, 256>}, {transform_indices = @transform_3, window_bounds = array<i64: 16, 256>}]} {
    %c0 = arith.constant 0 : index
    %c0_0 = arith.constant 0 : index
    %0 = vector.load %arg2[%c0, %c0_0] : memref<16x128xbf16, #tpu.memory_space<vmem>>, vector<16x128xbf16>
    %c0_1 = arith.constant 0 : index
    %c0_2 = arith.constant 0 : index
    %1 = vector.load %arg3[%c0_1, %c0_2] : memref<128x256xbf16, #tpu.memory_space<vmem>>, vector<128x256xbf16>
    %cst = arith.constant dense<0.000000e+00> : vector<16x256xf32>
    %2 = tpu.matmul %0, %1, %cst {dimension_numbers = #tpu.dot_dimension_numbers<[1], [0], [0], [1], [0, 0, 1, 1], [], []>} : vector<16x128xbf16>, vector<128x256xbf16>, vector<16x256xf32> -> vector<16x256xf32>
    %c0_3 = arith.constant 0 : index
    %c0_4 = arith.constant 0 : index
    %3 = vector.load %arg4[%c0_3, %c0_4] : memref<1x256xf32, #tpu.memory_space<vmem>>, vector<1x256xf32>
    %4 = vector.broadcast %3 : vector<1x256xf32> to vector<16x256xf32>
    %5 = arith.addf %2, %4 : vector<16x256xf32>
    %c0_5 = arith.constant 0 : index
    %c0_6 = arith.constant 0 : index
    %6 = vector.load %arg5[%c0_5, %c0_6] : memref<16x256xf32, #tpu.memory_space<vmem>>, vector<16x256xf32>
    tpu.vector_store %arg5[%c0_5, %c0_6], %5 {strides = array<i32>} : memref<16x256xf32, #tpu.memory_space<vmem>>, vector<16x256xf32>,
    return
  }
  func.func @transform_0(%arg0: i32, %arg1: i32) -> (i32, i32) {
    %c0_i32 = arith.constant 0 : i32
    %c0_i32_0 = arith.constant 0 : i32
    return %arg1, %c0_i32 : i32, i32
  }
  func.func @transform_1(%arg0: i32, %arg1: i32) -> (i32, i32) {
    %c0_i32 = arith.constant 0 : i32
    %c0_i32_0 = arith.constant 0 : i32
    return %c0_i32, %arg0 : i32, i32
  }
  func.func @transform_2(%arg0: i32, %arg1: i32) -> (i32, i32) {
    %c0_i32 = arith.constant 0 : i32
    %c0_i32_0 = arith.constant 0 : i32
    return %c0_i32, %arg0 : i32, i32
  }
  func.func @transform_3(%arg0: i32, %arg1: i32) -> (i32, i32) {
    %c0_i32 = arith.constant 0 : i32
    return %arg1, %arg0 : i32, i32
  }
}

</mosaic_0001>

<llo_original>
// kernel: translation_transformer_forward.30
$region0: #{translation_transformer_forward.30}
  #allocation0 [shape = 'u32[]', space=smem, size = 0x4, offset = 0x4, fixed_abs, tag = 'smem constant byte address 0x4 - core index']
  #allocation1 [shape = 'u32[144,128]{1,0:T(1,128)}', space=vmem, size = 0x12000, scoped, tag = 'internal scratch']
  %s0 = inlined_call_operand.vmem [shape: bf16[16,128], index: 0, kind: input, shape index: {}]
  %s1 = inlined_call_operand.vmem [shape: bf16[128,128], index: 1, kind: input, shape index: {}]
  %s2 = inlined_call_operand.vmem [shape: f32[1,128], index: 2, kind: input, shape index: {}]
  %s3 = inlined_call_operand.vmem [shape: bf16[16,128], index: 3, kind: output, shape index: {}]
  %s4 = sld [smem:[#allocation0]]
  $region22: #{translation_transformer_forward.30} parent=0
    _
  %s6 = ssub.s32 1, %s4
  %s7 = scalar_select 0, %s6, %s4
  // Predicated region
  $region2: #{translation_transformer_forward.30} parent=0 // pred_check
    _
  $region3: #{translation_transformer_forward.30} parent=0 // pred_check_branch
    %9 = sbr.rel (0) target = $region5
  $region4: #{translation_transformer_forward.30} parent=0 // pred_region
    _
  $region5: #{translation_transformer_forward.30} parent=0 // pred_fallthru
    _
  // Predicated region
  $region6: #{translation_transformer_forward.30} parent=0 // pred_check
    _
  $region7: #{translation_transformer_forward.30} parent=0 // pred_check_branch
    %11 = sbr.rel (0) target = $region9
  $region8: #{translation_transformer_forward.30} parent=0 // pred_region
    _
  $region9: #{translation_transformer_forward.30} parent=0 // pred_fallthru
    _
  // Predicated region
  $region10: #{translation_transformer_forward.30} parent=0 // pred_check
    _
  $region11: #{translation_transformer_forward.30} parent=0 // pred_check_branch
    %13 = sbr.rel (0) target = $region13
  $region12: #{translation_transformer_forward.30} parent=0 // pred_region
    _
  $region13: #{translation_transformer_forward.30} parent=0 // pred_fallthru
    _
  %v15 = vld [vmem:[%s0] sm:$0xf]
  %v16 = vld [vmem:[%s0 + $0x4] sm:$0xf]
  %v17 = vld [vmem:[%s1] sm:$0xf]
  %v18 = vld [vmem:[%s1 + $0x4] sm:$0xf]
  %v19 = vld [vmem:[%s1 + $0x8] sm:$0xf]
  %v20 = vld [vmem:[%s1 + $0xc] sm:$0xf]
  %v21 = vld [vmem:[%s1 + $0x10] sm:$0xf]
  %v22 = vld [vmem:[%s1 + $0x14] sm:$0xf]
  %v23 = vld [vmem:[%s1 + $0x18] sm:$0xf]
  %v24 = vld [vmem:[%s1 + $0x1c] sm:$0xf]
  %v25 = vld [vmem:[%s1 + $0x20] sm:$0xf]
  %v26 = vld [vmem:[%s1 + $0x24] sm:$0xf]
  %v27 = vld [vmem:[%s1 + $0x28] sm:$0xf]
  %v28 = vld [vmem:[%s1 + $0x2c] sm:$0xf]
  %v29 = vld [vmem:[%s1 + $0x30] sm:$0xf]
  %v30 = vld [vmem:[%s1 + $0x34] sm:$0xf]
  %v31 = vld [vmem:[%s1 + $0x38] sm:$0xf]
  %v32 = vld [vmem:[%s1 + $0x3c] sm:$0xf]
  %v33 = vld [vmem:[%s2] sm:$0x1]
  %v35 = vlaneseq
  %v36 = vshrl.u32 %v35, 7
  %v37 = vsub.s32 0, %v36
  %v38 = vrot.slane %v33, %v37
  %v42 = vunpack.c.l.b16 %v15
  %v43 = vunpack.c.l.b16 %v16
  %v44 = vpack.c.b16 %v43, %v42
  %v62 = vunpack.c.l.b16 %v17
  %v63 = vunpack.c.l.b16 %v18
  %v64 = vunpack.c.l.b16 %v19
  %v65 = vunpack.c.l.b16 %v20
  %v66 = vunpack.c.l.b16 %v21
  %v67 = vunpack.c.l.b16 %v22
  %v68 = vunpack.c.l.b16 %v23
  %v69 = vunpack.c.l.b16 %v24
  %v70 = vunpack.c.l.b16 %v25
  %v71 = vunpack.c.l.b16 %v26
  %v72 = vunpack.c.l.b16 %v27
  %v73 = vunpack.c.l.b16 %v28
  %v74 = vunpack.c.l.b16 %v29
  %v75 = vunpack.c.l.b16 %v30
  %v76 = vunpack.c.l.b16 %v31
  %v77 = vunpack.c.l.b16 %v32
  %v78 = vpack.c.b16 %v63, %v62
  %v79 = vpack.c.b16 %v65, %v64
  %v80 = vpack.c.b16 %v67, %v66
  %v81 = vpack.c.b16 %v69, %v68
  %v82 = vpack.c.b16 %v71, %v70
  %v83 = vpack.c.b16 %v73, %v72
  %v84 = vpack.c.b16 %v75, %v74
  %v85 = vpack.c.b16 %v77, %v76
  %94 = vmatprep.subr.bf16.mxu0 0
  %95 = vmatpush1.bf16.msra.mxu0 %v78
  %96 = vmatprep.subr.bf16.mxu0 0
  %97 = vmatpush1.bf16.msra.mxu0 %v79
  %98 = vmatprep.subr.bf16.mxu0 0
  %99 = vmatpush1.bf16.msra.mxu0 %v80
  %100 = vmatprep.subr.bf16.mxu0 0
  %101 = vmatpush1.bf16.msra.mxu0 %v81
  %102 = vmatprep.subr.bf16.mxu0 0
  %103 = vmatpush1.bf16.msra.mxu0 %v82
  %104 = vmatprep.subr.bf16.mxu0 0
  %105 = vmatpush1.bf16.msra.mxu0 %v83
  %106 = vmatprep.subr.bf16.mxu0 0
  %107 = vmatpush1.bf16.msra.mxu0 %v84
  %108 = vmatprep.subr.bf16.mxu0 0
  %109 = vmatpush1.bf16.msra.mxu0 %v85
  %110 = vmatprep.subr.bf16.mxu0 0
  %111 = vmatpush1.bf16.msra.mxu0 0
  %112 = vmatprep.subr.bf16.mxu0 0
  %113 = vmatpush1.bf16.msra.mxu0 0
  %114 = vmatprep.subr.bf16.mxu0 0
  %115 = vmatpush1.bf16.msra.mxu0 0
  %116 = vmatprep.subr.bf16.mxu0 0
  %117 = vmatpush1.bf16.msra.mxu0 0
  %118 = vmatprep.subr.bf16.mxu0 0
  %119 = vmatpush1.bf16.msra.mxu0 0
  %120 = vmatprep.subr.bf16.mxu0 0
  %121 = vmatpush1.bf16.msra.mxu0 0
  %122 = vmatprep.subr.bf16.mxu0 0
  %123 = vmatpush1.bf16.msra.mxu0 0
  %124 = vmatprep.subr.bf16.mxu0 0
  %125 = vmatpush1.bf16.msra.mxu0 0
  %126 = vmatprep.mubr.bf16.mxu0 0
  %127 = vmatmul.mubr.bf16.gmra.mrb[0].mxu0 %v44
  %v128 = vpop.f32.mrb[0].mxu0
  %v129 = vadd.f32 %v38, %v128
  %v130 = vpop.f32.mrb[0].mxu0
  %v131 = vpop.f32.mrb[0].mxu0
  %v132 = vadd.f32 %v38, %v131
  %v133 = vpop.f32.mrb[0].mxu0
  %134 = vdwg.mxu0
  %v135 = vpack.c.bf16 %v132, %v129
  %v137 = vunpack.c.l.b16 %v135
  %v138 = vunpack.c.h.b16 %v135
  %v139 = vpack.c.b16 %v137, %v137
  %v140 = vpack.c.b16 %v138, %v138
  %143 = vst [vmem:[%s3] sm:$0xf] %v139
  %144 = vst [vmem:[%s3 + $0x4] sm:$0xf] %v140
  // Predicated region
  $region14: #{translation_transformer_forward.30} parent=0 // pred_check
    _
  $region15: #{translation_transformer_forward.30} parent=0 // pred_check_branch
    %146 = sbr.rel (0) target = $region17
  $region16: #{translation_transformer_forward.30} parent=0 // pred_region
    _
  $region17: #{translation_transformer_forward.30} parent=0 // pred_fallthru
    _
  // Predicated region
  $region18: #{translation_transformer_forward.30} parent=0 // pred_check
    _
  $region19: #{translation_transformer_forward.30} parent=0 // pred_check_branch
    %148 = sbr.rel (0) target = $region21
  $region20: #{translation_transformer_forward.30} parent=0 // pred_region
    _
  $region21: #{translation_transformer_forward.30} parent=0 // pred_fallthru
    _

// kernel: translation_transformer_forward.29
$region0: #{translation_transformer_forward.29}
  #allocation0 [shape = 'u32[]', space=smem, size = 0x4, offset = 0x4, fixed_abs, tag = 'smem constant byte address 0x4 - core index']
  #allocation1 [shape = 'u32[144,128]{1,0:T(1,128)}', space=vmem, size = 0x12000, scoped, tag = 'internal scratch']
  %s0 = inlined_call_operand.vmem [shape: bf16[2,8,384], index: 0, kind: input, shape index: {}, may-alias: {0,1,2}]
  %s1 = inlined_call_operand.vmem [shape: bf16[2,8,384], index: 1, kind: input, shape index: {}, may-alias: {0,1,2}]
  %s2 = inlined_call_operand.vmem [shape: bf16[2,8,384], index: 2, kind: input, shape index: {}, may-alias: {0,1,2}]
  %s3 = inlined_call_operand.vmem [shape: bf16[2,8,128], index: 3, kind: input, shape index: {}]
  %s4 = inlined_call_operand.vmem [shape: bf16[128,128], index: 4, kind: input, shape index: {}]
  %s5 = inlined_call_operand.vmem [shape: f32[1,128], index: 5, kind: input, shape index: {}]
  %s6 = inlined_call_operand.vmem [shape: f32[1,128], index: 6, kind: input, shape index: {}]
  %s7 = inlined_call_operand.vmem [shape: f32[1,128], index: 7, kind: input, shape index: {}]
  %s8 = inlined_call_operand.vmem [shape: bf16[2,8,128], index: 8, kind: output, shape index: {}]
  %s9 = sld [smem:[#allocation0]]
  $region65: #{translation_transformer_forward.29} parent=0
    _
  %s11 = ssub.s32 1, %s9
  %s12 = scalar_select 0, %s11, %s9
  loop: start=0, step=1, limit=4
  $region2: #{translation_transformer_forward.29} parent=0 // loop_pre_header
    _
  $region3: #{translation_transformer_forward.29} parent=0 // loop_header
    %s14 = sphi 0, %s18
    %p15 = scmp.ge.s32.totalorder %s14, 4
    %s21 = sphi 0, %s33
    %s22 = sphi 0, %s29
    %s23 = sphi 0, %s21
    %s24 = sphi 0, %s22
    %s25 = sphi 0, %s23
    %s26 = sphi 0, %s24
    %s38 = sphi 0, %s40
    %s41 = sphi 0, %s38
    %s42 = sphi 0, %s41
    %s58 = sphi 0, %s42
    %s64 = sphi 0, %s66
    %s67 = sphi 0, %s64
    %s68 = sphi 0, %s67
    %s84 = sphi 0, %s68
    %s90 = sphi 0, %s92
    %s93 = sphi 0, %s90
    %s94 = sphi 0, %s93
    %s110 = sphi 0, %s94
    %s118 = sphi 0, %s120
    %s121 = sphi 0, %s118
    %s122 = sphi 0, %s121
    %s138 = sphi 0, %s122
    %s142 = sphi 0, %s142
    %s144 = sphi 0, %s142
    %s145 = sphi 0, %s144
    %s159 = sphi 0, %s145
    %s163 = sphi 0, %s163
    %s165 = sphi 0, %s163
    %s166 = sphi 0, %s165
    %s180 = sphi 0, %s166
    %s184 = sphi 0, %s184
    %s186 = sphi 0, %s184
    %s187 = sphi 0, %s186
    %s201 = sphi 0, %s187
    %s205 = sphi 0, %s205
    %s207 = sphi 0, %s205
    %s208 = sphi 0, %s207
    %s222 = sphi 0, %s208
    %s230 = sphi 0, %s232
    %s233 = sphi 0, %s230
    %s234 = sphi 0, %s233
    %s250 = sphi 0, %s234
  $region4: #{translation_transformer_forward.29} parent=0 // loop_header_branch
    %17 = sbr.rel (%p15) target = $region8
  $region5: #{translation_transformer_forward.29} parent=0 // loop_body
    %s19 = ssub.s32 %s14, 1
    %s20 = ssub.s32 %s14, 2
    %s27 = sadd.s32 1, %s22
    %p28 = scmp.ge.s32.totalorder %s27, 1
    %s29 = scalar_select %p28, 0, %s27
    %s30 = sadd.s32 1, %s21
    %s31 = scalar_select %p28, %s30, %s21
    %p32 = scmp.ge.s32.totalorder %s31, 2
    %s33 = scalar_select %p32, 0, %s31
    %s34 = ssub.s32 %s21, %s33
    %s35 = ssub.s32 %s22, %s29
    %s36 = sor.u32 %s34, %s35
    %p37 = scmp.eq.s32.totalorder %s36, 0
    %s39 = sadd.s32 %s38, 1
    %s40 = scalar_select %p37, %s38, %s39
    %p43 = pneg %p37
    %p44 = scmp.eq.s32.totalorder %s14, 1
    %p45 = por %p43, %p44
    %p46 = scmp.ne.s32.totalorder %s38, %s41
    %p47 = scmp.eq.s32.totalorder %s14, 0
    %p48 = por %p46, %p47
    %p49 = scmp.ne.s32.totalorder %s38, %s41
    %p50 = scmp.eq.s32.totalorder %s19, 1
    %p51 = por %p49, %p50
    %p52 = scmp.ne.s32.totalorder %s41, %s42
    %p53 = scmp.eq.s32.totalorder %s19, 0
    %p54 = por %p52, %p53
    %p55 = scmp.ne.s32.totalorder %s41, %s42
    %p56 = scmp.eq.s32.totalorder %s20, 1
    %p57 = por %p55, %p56
    %p59 = scmp.ne.s32.totalorder %s42, %s58
    %p60 = scmp.eq.s32.totalorder %s20, 0
    %p61 = por %p59, %p60
    %s62 = ssub.s32 %s21, %s33
    %p63 = scmp.eq.s32.totalorder %s62, 0
    %s65 = sadd.s32 %s64, 1
    %s66 = scalar_select %p63, %s64, %s65
    %p69 = pneg %p63
    %p70 = scmp.eq.s32.totalorder %s14, 1
    %p71 = por %p69, %p70
    %p72 = scmp.ne.s32.totalorder %s64, %s67
    %p73 = scmp.eq.s32.totalorder %s14, 0
    %p74 = por %p72, %p73
    %p75 = scmp.ne.s32.totalorder %s64, %s67
    %p76 = scmp.eq.s32.totalorder %s19, 1
    %p77 = por %p75, %p76
    %p78 = scmp.ne.s32.totalorder %s67, %s68
    %p79 = scmp.eq.s32.totalorder %s19, 0
    %p80 = por %p78, %p79
    %p81 = scmp.ne.s32.totalorder %s67, %s68
    %p82 = scmp.eq.s32.totalorder %s20, 1
    %p83 = por %p81, %p82
    %p85 = scmp.ne.s32.totalorder %s68, %s84
    %p86 = scmp.eq.s32.totalorder %s20, 0
    %p87 = por %p85, %p86
    %s88 = ssub.s32 %s21, %s33
    %p89 = scmp.eq.s32.totalorder %s88, 0
    %s91 = sadd.s32 %s90, 1
    %s92 = scalar_select %p89, %s90, %s91
    %p95 = pneg %p89
    %p96 = scmp.eq.s32.totalorder %s14, 1
    %p97 = por %p95, %p96
    %p98 = scmp.ne.s32.totalorder %s90, %s93
    %p99 = scmp.eq.s32.totalorder %s14, 0
    %p100 = por %p98, %p99
    %p101 = scmp.ne.s32.totalorder %s90, %s93
    %p102 = scmp.eq.s32.totalorder %s19, 1
    %p103 = por %p101, %p102
    %p104 = scmp.ne.s32.totalorder %s93, %s94
    %p105 = scmp.eq.s32.totalorder %s19, 0
    %p106 = por %p104, %p105
    %p107 = scmp.ne.s32.totalorder %s93, %s94
    %p108 = scmp.eq.s32.totalorder %s20, 1
    %p109 = por %p107, %p108
    %p111 = scmp.ne.s32.totalorder %s94, %s110
    %p112 = scmp.eq.s32.totalorder %s20, 0
    %p113 = por %p111, %p112
    %s114 = ssub.s32 %s21, %s33
    %s115 = ssub.s32 %s22, %s29
    %s116 = sor.u32 %s114, %s115
    %p117 = scmp.eq.s32.totalorder %s116, 0
    %s119 = sadd.s32 %s118, 1
    %s120 = scalar_select %p117, %s118, %s119
    %p123 = pneg %p117
    %p124 = scmp.eq.s32.totalorder %s14, 1
    %p125 = por %p123, %p124
    %p126 = scmp.ne.s32.totalorder %s118, %s121
    %p127 = scmp.eq.s32.totalorder %s14, 0
    %p128 = por %p126, %p127
    %p129 = scmp.ne.s32.totalorder %s118, %s121
    %p130 = scmp.eq.s32.totalorder %s19, 1
    %p131 = por %p129, %p130
    %p132 = scmp.ne.s32.totalorder %s121, %s122
    %p133 = scmp.eq.s32.totalorder %s19, 0
    %p134 = por %p132, %p133
    %p135 = scmp.ne.s32.totalorder %s121, %s122
    %p136 = scmp.eq.s32.totalorder %s20, 1
    %p137 = por %p135, %p136
    %p139 = scmp.ne.s32.totalorder %s122, %s138
    %p140 = scmp.eq.s32.totalorder %s20, 0
    %p141 = por %p139, %p140
    %s143 = sadd.s32 %s142, 1
    %p146 = scmp.eq.s32.totalorder %s14, 1
    %p147 = scmp.ne.s32.totalorder %s142, %s144
    %p148 = scmp.eq.s32.totalorder %s14, 0
    %p149 = por %p147, %p148
    %p150 = scmp.ne.s32.totalorder %s142, %s144
    %p151 = scmp.eq.s32.totalorder %s19, 1
    %p152 = por %p150, %p151
    %p153 = scmp.ne.s32.totalorder %s144, %s145
    %p154 = scmp.eq.s32.totalorder %s19, 0
    %p155 = por %p153, %p154
    %p156 = scmp.ne.s32.totalorder %s144, %s145
    %p157 = scmp.eq.s32.totalorder %s20, 1
    %p158 = por %p156, %p157
    %p160 = scmp.ne.s32.totalorder %s145, %s159
    %p161 = scmp.eq.s32.totalorder %s20, 0
    %p162 = por %p160, %p161
    %s164 = sadd.s32 %s163, 1
    %p167 = scmp.eq.s32.totalorder %s14, 1
    %p168 = scmp.ne.s32.totalorder %s163, %s165
    %p169 = scmp.eq.s32.totalorder %s14, 0
    %p170 = por %p168, %p169
    %p171 = scmp.ne.s32.totalorder %s163, %s165
    %p172 = scmp.eq.s32.totalorder %s19, 1
    %p173 = por %p171, %p172
    %p174 = scmp.ne.s32.totalorder %s165, %s166
    %p175 = scmp.eq.s32.totalorder %s19, 0
    %p176 = por %p174, %p175
    %p177 = scmp.ne.s32.totalorder %s165, %s166
    %p178 = scmp.eq.s32.totalorder %s20, 1
    %p179 = por %p177, %p178
    %p181 = scmp.ne.s32.totalorder %s166, %s180
    %p182 = scmp.eq.s32.totalorder %s20, 0
    %p183 = por %p181, %p182
    %s185 = sadd.s32 %s184, 1
    %p188 = scmp.eq.s32.totalorder %s14, 1
    %p189 = scmp.ne.s32.totalorder %s184, %s186
    %p190 = scmp.eq.s32.totalorder %s14, 0
    %p191 = por %p189, %p190
    %p192 = scmp.ne.s32.totalorder %s184, %s186
    %p193 = scmp.eq.s32.totalorder %s19, 1
    %p194 = por %p192, %p193
    %p195 = scmp.ne.s32.totalorder %s186, %s187
    %p196 = scmp.eq.s32.totalorder %s19, 0
    %p197 = por %p195, %p196
    %p198 = scmp.ne.s32.totalorder %s186, %s187
    %p199 = scmp.eq.s32.totalorder %s20, 1
    %p200 = por %p198, %p199
    %p202 = scmp.ne.s32.totalorder %s187, %s201
    %p203 = scmp.eq.s32.totalorder %s20, 0
    %p204 = por %p202, %p203
    %s206 = sadd.s32 %s205, 1
    %p209 = scmp.eq.s32.totalorder %s14, 1
    %p210 = scmp.ne.s32.totalorder %s205, %s207
    %p211 = scmp.eq.s32.totalorder %s14, 0
    %p212 = por %p210, %p211
    %p213 = scmp.ne.s32.totalorder %s205, %s207
    %p214 = scmp.eq.s32.totalorder %s19, 1
    %p215 = por %p213, %p214
    %p216 = scmp.ne.s32.totalorder %s207, %s208
    %p217 = scmp.eq.s32.totalorder %s19, 0
    %p218 = por %p216, %p217
    %p219 = scmp.ne.s32.totalorder %s207, %s208
    %p220 = scmp.eq.s32.totalorder %s20, 1
    %p221 = por %p219, %p220
    %p223 = scmp.ne.s32.totalorder %s208, %s222
    %p224 = scmp.eq.s32.totalorder %s20, 0
    %p225 = por %p223, %p224
    %s226 = ssub.s32 %s21, %s33
    %s227 = ssub.s32 %s22, %s29
    %s228 = sor.u32 %s226, %s227
    %p229 = scmp.eq.s32.totalorder %s228, 0
    %s231 = sadd.s32 %s230, 1
    %s232 = scalar_select %p229, %s230, %s231
    %p235 = pneg %p229
    %p236 = scmp.eq.s32.totalorder %s14, 1
    %p237 = por %p235, %p236
    %p238 = scmp.ne.s32.totalorder %s230, %s233
    %p239 = scmp.eq.s32.totalorder %s14, 0
    %p240 = por %p238, %p239
    %p241 = scmp.ne.s32.totalorder %s230, %s233
    %p242 = scmp.eq.s32.totalorder %s19, 1
    %p243 = por %p241, %p242
    %p244 = scmp.ne.s32.totalorder %s233, %s234
    %p245 = scmp.eq.s32.totalorder %s19, 0
    %p246 = por %p244, %p245
    %p247 = scmp.ne.s32.totalorder %s233, %s234
    %p248 = scmp.eq.s32.totalorder %s20, 1
    %p249 = por %p247, %p248
    %p251 = scmp.ne.s32.totalorder %s234, %s250
    %p252 = scmp.eq.s32.totalorder %s20, 0
    %p253 = por %p251, %p252
    %p254 = scmp.le.s32.totalorder 1, %s14
    %p255 = scmp.lt.s32.totalorder %s14, 3
    %p256 = pnand %p254, %p255
    %p257 = pneg %p256
    // Predicated region
    $region9: #{translation_transformer_forward.29} parent=5 // pred_check
      _
    $region10: #{translation_transformer_forward.29} parent=5 // pred_check_branch
      %259 = sbr.rel (%p256) target = $region12
    $region11: #{translation_transformer_forward.29} parent=5 // pred_region
      %s260 = ssub.s32 %s14, 1
      // Predicated region
      $region13: #{translation_transformer_forward.29} parent=11 // pred_check
        %p261 = pneg %p155
      $region14: #{translation_transformer_forward.29} parent=11 // pred_check_branch
        %263 = sbr.rel (%p261) target = $region16
      $region15: #{translation_transformer_forward.29} parent=11 // pred_region
        _
      $region16: #{translation_transformer_forward.29} parent=11 // pred_fallthru
        _
      // Predicated region
      $region17: #{translation_transformer_forward.29} parent=11 // pred_check
        %p264 = pneg %p176
      $region18: #{translation_transformer_forward.29} parent=11 // pred_check_branch
        %266 = sbr.rel (%p264) target = $region20
      $region19: #{translation_transformer_forward.29} parent=11 // pred_region
        _
      $region20: #{translation_transformer_forward.29} parent=11 // pred_fallthru
        _
      // Predicated region
      $region21: #{translation_transformer_forward.29} parent=11 // pred_check
        %p267 = pneg %p197
      $region22: #{translation_transformer_forward.29} parent=11 // pred_check_branch
        %269 = sbr.rel (%p267) target = $region24
      $region23: #{translation_transformer_forward.29} parent=11 // pred_region
        _
      $region24: #{translation_transformer_forward.29} parent=11 // pred_fallthru
        _
      // Predicated region
      $region25: #{translation_transformer_forward.29} parent=11 // pred_check
        %p270 = pneg %p218
      $region26: #{translation_transformer_forward.29} parent=11 // pred_check_branch
        %272 = sbr.rel (%p270) target = $region28
      $region27: #{translation_transformer_forward.29} parent=11 // pred_region
        _
      $region28: #{translation_transformer_forward.29} parent=11 // pred_fallthru
        _
    $region12: #{translation_transformer_forward.29} parent=5 // pred_fallthru
      _
    %p273 = scmp.lt.s32.totalorder %s14, 2
    // Predicated region
    $region29: #{translation_transformer_forward.29} parent=5 // pred_check
      %p274 = pneg %p273
    $region30: #{translation_transformer_forward.29} parent=5 // pred_check_branch
      %276 = sbr.rel (%p274) target = $region32
    $region31: #{translation_transformer_forward.29} parent=5 // pred_region
      // Predicated region
      $region33: #{translation_transformer_forward.29} parent=31 // pred_check
        %p277 = pneg %p48
      $region34: #{translation_transformer_forward.29} parent=31 // pred_check_branch
        %279 = sbr.rel (%p277) target = $region36
      $region35: #{translation_transformer_forward.29} parent=31 // pred_region
        %p280 = scmp.lt.s32.totalorder %s21, 1
        %s281 = scalar_select %p280, %s21, 1
        %p282 = scmp.lt.s32.totalorder %s22, 0
        %s283 = scalar_select %p282, %s22, 0
        %s284 = smul.addr %s283, 3
        %s285 = smul.addr %s281, 3
        %s286 = sadd.s32 %s284, %s285
        %s287 = smul.addr %s286, 4
        %s288 = scalar_lea.vmem %s0, %s287
      $region36: #{translation_transformer_forward.29} parent=31 // pred_fallthru
        _
      // Predicated region
      $region37: #{translation_transformer_forward.29} parent=31 // pred_check
        %p289 = pneg %p74
      $region38: #{translation_transformer_forward.29} parent=31 // pred_check_branch
        %291 = sbr.rel (%p289) target = $region40
      $region39: #{translation_transformer_forward.29} parent=31 // pred_region
        %p292 = scmp.lt.s32.totalorder %s21, 1
        %s293 = scalar_select %p292, %s21, 1
        %s294 = smul.addr %s293, 3
        %s295 = sadd.s32 1, %s294
        %s296 = smul.addr %s295, 4
        %s297 = scalar_lea.vmem %s1, %s296
      $region40: #{translation_transformer_forward.29} parent=31 // pred_fallthru
        _
      // Predicated region
      $region41: #{translation_transformer_forward.29} parent=31 // pred_check
        %p298 = pneg %p100
      $region42: #{translation_transformer_forward.29} parent=31 // pred_check_branch
        %300 = sbr.rel (%p298) target = $region44
      $region43: #{translation_transformer_forward.29} parent=31 // pred_region
        %p301 = scmp.lt.s32.totalorder %s21, 1
        %s302 = scalar_select %p301, %s21, 1
        %s303 = smul.addr %s302, 3
        %s304 = sadd.s32 2, %s303
        %s305 = smul.addr %s304, 4
        %s306 = scalar_lea.vmem %s2, %s305
      $region44: #{translation_transformer_forward.29} parent=31 // pred_fallthru
        _
      // Predicated region
      $region45: #{translation_transformer_forward.29} parent=31 // pred_check
        %p307 = pneg %p128
      $region46: #{translation_transformer_forward.29} parent=31 // pred_check_branch
        %309 = sbr.rel (%p307) target = $region48
      $region47: #{translation_transformer_forward.29} parent=31 // pred_region
        %p310 = scmp.lt.s32.totalorder %s21, 1
        %s311 = scalar_select %p310, %s21, 1
        %p312 = scmp.lt.s32.totalorder %s22, 0
        %s313 = scalar_select %p312, %s22, 0
        %s314 = sadd.s32 %s313, %s311
        %s315 = smul.addr %s314, 4
        %s316 = scalar_lea.vmem %s3, %s315
      $region48: #{translation_transformer_forward.29} parent=31 // pred_fallthru
        _
    $region32: #{translation_transformer_forward.29} parent=5 // pred_fallthru
      _
    %p317 = scmp.le.s32.totalorder 1, %s14
    %p318 = scmp.lt.s32.totalorder %s14, 3
    %p319 = pnand %p317, %p318
    %p320 = pneg %p319
    // Predicated region
    $region49: #{translation_transformer_forward.29} parent=5 // pred_check
      _
    $region50: #{translation_transformer_forward.29} parent=5 // pred_check_branch
      %322 = sbr.rel (%p319) target = $region52
    $region51: #{translation_transformer_forward.29} parent=5 // pred_region
      %s323 = ssub.s32 %s14, 1
      %p324 = scmp.lt.s32.totalorder %s23, 1
      %s325 = scalar_select %p324, %s23, 1
      %p326 = scmp.lt.s32.totalorder %s24, 0
      %s327 = scalar_select %p326, %s24, 0
      %s328 = smul.addr %s327, 3
      %s329 = smul.addr %s325, 3
      %s330 = sadd.s32 %s328, %s329
      %s331 = smul.addr %s330, 4
      %s332 = scalar_lea.vmem %s0, %s331
      %p333 = pneg %p54
      %p334 = pneg %p51
      %p335 = scmp.lt.s32.totalorder %s23, 1
      %s336 = scalar_select %p335, %s23, 1
      %s337 = smul.addr %s336, 3
      %s338 = sadd.s32 1, %s337
      %s339 = smul.addr %s338, 4
      %s340 = scalar_lea.vmem %s1, %s339
      %p341 = pneg %p80
      %p342 = pneg %p77
      %p343 = scmp.lt.s32.totalorder %s23, 1
      %s344 = scalar_select %p343, %s23, 1
      %s345 = smul.addr %s344, 3
      %s346 = sadd.s32 2, %s345
      %s347 = smul.addr %s346, 4
      %s348 = scalar_lea.vmem %s2, %s347
      %p349 = pneg %p106
      %p350 = pneg %p103
      %p351 = scmp.lt.s32.totalorder %s23, 1
      %s352 = scalar_select %p351, %s23, 1
      %p353 = scmp.lt.s32.totalorder %s24, 0
      %s354 = scalar_select %p353, %s24, 0
      %s355 = sadd.s32 %s354, %s352
      %s356 = smul.addr %s355, 4
      %s357 = scalar_lea.vmem %s3, %s356
      %p358 = pneg %p134
      %p359 = pneg %p131
      %p360 = pneg %p155
      %p361 = pneg %p152
      %p362 = pneg %p176
      %p363 = pneg %p173
      %p364 = pneg %p197
      %p365 = pneg %p194
      %p366 = pneg %p218
      %p367 = pneg %p215
      %p368 = pneg %p246
      %p369 = pneg %p243
      %p370 = scmp.lt.s32.totalorder %s23, 1
      %s371 = scalar_select %p370, %s23, 1
      %p372 = scmp.lt.s32.totalorder %s24, 0
      %s373 = scalar_select %p372, %s24, 0
      %s374 = sadd.s32 %s373, %s371
      %s375 = smul.addr %s374, 4
      %s376 = scalar_lea.vmem %s8, %s375
      %p377 = scmp.lt.s32.totalorder %s23, 1
      %s378 = scalar_select %p377, %s23, 1
      %p379 = scmp.lt.s32.totalorder %s24, 0
      %s380 = scalar_select %p379, %s24, 0
      %s381 = smul.addr %s380, 3
      %s382 = smul.addr %s378, 3
      %s383 = sadd.s32 %s381, %s382
      %s384 = smul.addr %s383, 4
      %s385 = scalar_lea.vmem %s0, %s384
      %p386 = scmp.lt.s32.totalorder %s23, 1
      %s387 = scalar_select %p386, %s23, 1
      %s388 = smul.addr %s387, 3
      %s389 = sadd.s32 1, %s388
      %s390 = smul.addr %s389, 4
      %s391 = scalar_lea.vmem %s1, %s390
      %p392 = scmp.lt.s32.totalorder %s23, 1
      %s393 = scalar_select %p392, %s23, 1
      %s394 = smul.addr %s393, 3
      %s395 = sadd.s32 2, %s394
      %s396 = smul.addr %s395, 4
      %s397 = scalar_lea.vmem %s2, %s396
      %p398 = scmp.lt.s32.totalorder %s23, 1
      %s399 = scalar_select %p398, %s23, 1
      %p400 = scmp.lt.s32.totalorder %s24, 0
      %s401 = scalar_select %p400, %s24, 0
      %s402 = sadd.s32 %s401, %s399
      %s403 = smul.addr %s402, 4
      %s404 = scalar_lea.vmem %s3, %s403
      %p405 = scmp.lt.s32.totalorder %s23, 1
      %s406 = scalar_select %p405, %s23, 1
      %p407 = scmp.lt.s32.totalorder %s24, 0
      %s408 = scalar_select %p407, %s24, 0
      %s409 = sadd.s32 %s408, %s406
      %s410 = smul.addr %s409, 4
      %s411 = scalar_lea.vmem %s8, %s410
      %v413 = vld [vmem:[%s385] sm:$0xf]
      %v414 = vld [vmem:[%s391] sm:$0xf]
      %v415 = vld [vmem:[%s397] sm:$0xf]
      %vm416 = vcmask 261120
      %v418 = vsel %vm416, %v413, 0
      %v421 = vsel %vm416, %v414, 0
      %423 = vmatprep.subr.bf16.mxu0 0
      %424 = vmatpush1.bf16.xpose.msra.mxu0 %v421
      %425 = vmatprep.subr.bf16.mxu0 0
      %426 = vmatpush1.bf16.xpose.msra.mxu0 0
      %427 = vmatprep.subr.bf16.mxu0 0
      %428 = vmatpush1.bf16.xpose.msra.mxu0 0
      %429 = vmatprep.subr.bf16.mxu0 0
      %430 = vmatpush1.bf16.xpose.msra.mxu0 0
      %431 = vmatprep.subr.bf16.mxu0 0
      %432 = vmatpush1.bf16.xpose.msra.mxu0 0
      %433 = vmatprep.subr.bf16.mxu0 0
      %434 = vmatpush1.bf16.xpose.msra.mxu0 0
      %435 = vmatprep.subr.bf16.mxu0 0
      %436 = vmatpush1.bf16.xpose.msra.mxu0 0
      %437 = vmatprep.subr.bf16.mxu0 0
      %438 = vmatpush1.bf16.xpose.msra.mxu0 0
      %439 = vmatprep.subr.bf16.mxu0 0
      %440 = vmatpush1.bf16.xpose.msra.mxu0 0
      %441 = vmatprep.subr.bf16.mxu0 0
      %442 = vmatpush1.bf16.xpose.msra.mxu0 0
      %443 = vmatprep.subr.bf16.mxu0 0
      %444 = vmatpush1.bf16.xpose.msra.mxu0 0
      %445 = vmatprep.subr.bf16.mxu0 0
      %446 = vmatpush1.bf16.xpose.msra.mxu0 0
      %447 = vmatprep.subr.bf16.mxu0 0
      %448 = vmatpush1.bf16.xpose.msra.mxu0 0
      %449 = vmatprep.subr.bf16.mxu0 0
      %450 = vmatpush1.bf16.xpose.msra.mxu0 0
      %451 = vmatprep.subr.bf16.mxu0 0
      %452 = vmatpush1.bf16.xpose.msra.mxu0 0
      %453 = vmatprep.subr.bf16.mxu0 0
      %454 = vmatpush1.bf16.xpose.msra.mxu0 0
      %455 = vmatprep.mubr.bf16.mxu0 0
      %456 = vmatmul.mubr.bf16.gmra.mrb[0].mxu0 %v418
      %v457 = vpop.f32.mrb[0].mxu0
      %v458 = vadd.f32 0.0, %v457
      %v459 = vpop.f32.mrb[0].mxu0
      %v460 = vpop.f32.mrb[0].mxu0
      %v461 = vpop.f32.mrb[0].mxu0
      %462 = vdwg.mxu0
      %v463 = vmul.f32 %v458, 0.17677669
      %vm464 = vcmask 64512
      %v465 = vsel %vm464, %v463, -inf
      %466 = vmax.xlane.f32.xlu0 %v465
      %v467 = vpop.xlane.xlu0 %466
      %v468 = vsub.f32 %v463, %v467
      %v469 = vmul.f32 %v468, 1.442695
      %v470 = vpow.pop %v469
      %v471 = vsel %vm464, %v470, 0.0
      %472 = vadd.xlane.f32.xlu0 %v471
      %v473 = vpop.xlane.xlu0 %472
      %v474 = vrcp.pop %v473
      %v475 = vmul.f32 %v470, %v474
      %v476 = vpack.c.bf16 %v475, %v475
      %v478 = vsel %vm464, %v476, 0
      %vm480 = vcmask 1043456
      %v482 = vsel %vm480, %v415, 0
      %484 = vmatprep.subr.bf16.mxu0 0
      %485 = vmatpush1.bf16.msra.mxu0 %v482
      %486 = vmatprep.subr.bf16.mxu0 0
      %487 = vmatpush1.bf16.msra.mxu0 0
      %488 = vmatprep.subr.bf16.mxu0 0
      %489 = vmatpush1.bf16.msra.mxu0 0
      %490 = vmatprep.subr.bf16.mxu0 0
      %491 = vmatpush1.bf16.msra.mxu0 0
      %492 = vmatprep.subr.bf16.mxu0 0
      %493 = vmatpush1.bf16.msra.mxu0 0
      %494 = vmatprep.subr.bf16.mxu0 0
      %495 = vmatpush1.bf16.msra.mxu0 0
      %496 = vmatprep.subr.bf16.mxu0 0
      %497 = vmatpush1.bf16.msra.mxu0 0
      %498 = vmatprep.subr.bf16.mxu0 0
      %499 = vmatpush1.bf16.msra.mxu0 0
      %500 = vmatprep.subr.bf16.mxu0 0
      %501 = vmatpush1.bf16.msra.mxu0 0
      %502 = vmatprep.subr.bf16.mxu0 0
      %503 = vmatpush1.bf16.msra.mxu0 0
      %504 = vmatprep.subr.bf16.mxu0 0
      %505 = vmatpush1.bf16.msra.mxu0 0
      %506 = vmatprep.subr.bf16.mxu0 0
      %507 = vmatpush1.bf16.msra.mxu0 0
      %508 = vmatprep.subr.bf16.mxu0 0
      %509 = vmatpush1.bf16.msra.mxu0 0
      %510 = vmatprep.subr.bf16.mxu0 0
      %511 = vmatpush1.bf16.msra.mxu0 0
      %512 = vmatprep.subr.bf16.mxu0 0
      %513 = vmatpush1.bf16.msra.mxu0 0
      %514 = vmatprep.subr.bf16.mxu0 0
      %515 = vmatpush1.bf16.msra.mxu0 0
      %516 = vmatprep.mubr.bf16.mxu0 0
      %517 = vmatmul.mubr.bf16.gmra.mrb[0].mxu0 %v478
      %v518 = vpop.f32.mrb[0].mxu0
      %v519 = vadd.f32 0.0, %v518
      %v520 = vpop.f32.mrb[0].mxu0
      %v521 = vpop.f32.mrb[0].mxu0
      %v522 = vpop.f32.mrb[0].mxu0
      %523 = vdwg.mxu0
      %v524 = vld [vmem:[%s4] sm:$0xf]
      %v525 = vld [vmem:[%s4 + $0x4] sm:$0xf]
      %v526 = vld [vmem:[%s4 + $0x8] sm:$0xf]
      %v527 = vld [vmem:[%s4 + $0xc] sm:$0xf]
      %v528 = vpack.c.bf16 %v519, %v519
      %v530 = vunpack.c.l.b16 %v413
      %v531 = vpack.c.b16 %v530, %v530
      %532 = vrot.lane.b32.xlu0 %v531, 96
      %v533 = vpop.permute.xlu0 %532
      %v535 = vunpack.c.l.b16 %v414
      %v536 = vpack.c.b16 %v535, %v535
      %537 = vrot.lane.b32.xlu0 %v536, 96
      %v538 = vpop.permute.xlu0 %537
      %v540 = vsel %vm416, %v533, 0
      %v543 = vsel %vm416, %v538, 0
      %545 = vmatprep.subr.bf16.mxu0 0
      %546 = vmatpush1.bf16.xpose.msra.mxu0 %v543
      %547 = vmatprep.subr.bf16.mxu0 0
      %548 = vmatpush1.bf16.xpose.msra.mxu0 0
      %549 = vmatprep.subr.bf16.mxu0 0
      %550 = vmatpush1.bf16.xpose.msra.mxu0 0
      %551 = vmatprep.subr.bf16.mxu0 0
      %552 = vmatpush1.bf16.xpose.msra.mxu0 0
      %553 = vmatprep.subr.bf16.mxu0 0
      %554 = vmatpush1.bf16.xpose.msra.mxu0 0
      %555 = vmatprep.subr.bf16.mxu0 0
      %556 = vmatpush1.bf16.xpose.msra.mxu0 0
      %557 = vmatprep.subr.bf16.mxu0 0
      %558 = vmatpush1.bf16.xpose.msra.mxu0 0
      %559 = vmatprep.subr.bf16.mxu0 0
      %560 = vmatpush1.bf16.xpose.msra.mxu0 0
      %561 = vmatprep.subr.bf16.mxu0 0
      %562 = vmatpush1.bf16.xpose.msra.mxu0 0
      %563 = vmatprep.subr.bf16.mxu0 0
      %564 = vmatpush1.bf16.xpose.msra.mxu0 0
      %565 = vmatprep.subr.bf16.mxu0 0
      %566 = vmatpush1.bf16.xpose.msra.mxu0 0
      %567 = vmatprep.subr.bf16.mxu0 0
      %568 = vmatpush1.bf16.xpose.msra.mxu0 0
      %569 = vmatprep.subr.bf16.mxu0 0
      %570 = vmatpush1.bf16.xpose.msra.mxu0 0
      %571 = vmatprep.subr.bf16.mxu0 0
      %572 = vmatpush1.bf16.xpose.msra.mxu0 0
      %573 = vmatprep.subr.bf16.mxu0 0
      %574 = vmatpush1.bf16.xpose.msra.mxu0 0
      %575 = vmatprep.subr.bf16.mxu0 0
      %576 = vmatpush1.bf16.xpose.msra.mxu0 0
      %577 = vmatprep.mubr.bf16.mxu0 0
      %578 = vmatmul.mubr.bf16.gmra.mrb[0].mxu0 %v540
      %v579 = vpop.f32.mrb[0].mxu0
      %v580 = vadd.f32 0.0, %v579
      %v581 = vpop.f32.mrb[0].mxu0
      %v582 = vpop.f32.mrb[0].mxu0
      %v583 = vpop.f32.mrb[0].mxu0
      %584 = vdwg.mxu0
      %v585 = vmul.f32 %v580, 0.17677669
      %v586 = vsel %vm464, %v585, -inf
      %587 = vmax.xlane.f32.xlu0 %v586
      %v588 = vpop.xlane.xlu0 %587
      %v589 = vsub.f32 %v585, %v588
      %v590 = vmul.f32 %v589, 1.442695
      %v591 = vpow.pop %v590
      %v592 = vsel %vm464, %v591, 0.0
      %593 = vadd.xlane.f32.xlu0 %v592
      %v594 = vpop.xlane.xlu0 %593
      %v595 = vrcp.pop %v594
      %v596 = vmul.f32 %v591, %v595
      %v597 = vpack.c.bf16 %v596, %v596
      %v599 = vunpack.c.l.b16 %v415
      %v600 = vpack.c.b16 %v599, %v599
      %601 = vrot.lane.b32.xlu0 %v600, 96
      %v602 = vpop.permute.xlu0 %601
      %v604 = vsel %vm464, %v597, 0
      %v607 = vsel %vm480, %v602, 0
      %609 = vmatprep.subr.bf16.mxu0 0
      %610 = vmatpush1.bf16.msra.mxu0 %v607
      %611 = vmatprep.subr.bf16.mxu0 0
      %612 = vmatpush1.bf16.msra.mxu0 0
      %613 = vmatprep.subr.bf16.mxu0 0
      %614 = vmatpush1.bf16.msra.mxu0 0
      %615 = vmatprep.subr.bf16.mxu0 0
      %616 = vmatpush1.bf16.msra.mxu0 0
      %617 = vmatprep.subr.bf16.mxu0 0
      %618 = vmatpush1.bf16.msra.mxu0 0
      %619 = vmatprep.subr.bf16.mxu0 0
      %620 = vmatpush1.bf16.msra.mxu0 0
      %621 = vmatprep.subr.bf16.mxu0 0
      %622 = vmatpush1.bf16.msra.mxu0 0
      %623 = vmatprep.subr.bf16.mxu0 0
      %624 = vmatpush1.bf16.msra.mxu0 0
      %625 = vmatprep.subr.bf16.mxu0 0
      %626 = vmatpush1.bf16.msra.mxu0 0
      %627 = vmatprep.subr.bf16.mxu0 0
      %628 = vmatpush1.bf16.msra.mxu0 0
      %629 = vmatprep.subr.bf16.mxu0 0
      %630 = vmatpush1.bf16.msra.mxu0 0
      %631 = vmatprep.subr.bf16.mxu0 0
      %632 = vmatpush1.bf16.msra.mxu0 0
      %633 = vmatprep.subr.bf16.mxu0 0
      %634 = vmatpush1.bf16.msra.mxu0 0
      %635 = vmatprep.subr.bf16.mxu0 0
      %636 = vmatpush1.bf16.msra.mxu0 0
      %637 = vmatprep.subr.bf16.mxu0 0
      %638 = vmatpush1.bf16.msra.mxu0 0
      %639 = vmatprep.subr.bf16.mxu0 0
      %640 = vmatpush1.bf16.msra.mxu0 0
      %641 = vmatprep.mubr.bf16.mxu0 0
      %642 = vmatmul.mubr.bf16.gmra.mrb[0].mxu0 %v604
      %v643 = vpop.f32.mrb[0].mxu0
      %v644 = vadd.f32 0.0, %v643
      %v645 = vpop.f32.mrb[0].mxu0
      %v646 = vpop.f32.mrb[0].mxu0
      %v647 = vpop.f32.mrb[0].mxu0
      %648 = vdwg.mxu0
      %v649 = vld [vmem:[%s4 + $0x10] sm:$0xf]
      %v650 = vld [vmem:[%s4 + $0x14] sm:$0xf]
      %v651 = vld [vmem:[%s4 + $0x18] sm:$0xf]
      %v652 = vld [vmem:[%s4 + $0x1c] sm:$0xf]
      %v653 = vpack.c.bf16 %v644, %v644
      %v658 = vunpack.c.l.b16 %v649
      %v659 = vunpack.c.l.b16 %v650
      %v660 = vunpack.c.l.b16 %v651
      %v661 = vunpack.c.l.b16 %v652
      %v662 = vpack.c.b16 %v659, %v658
      %v663 = vpack.c.b16 %v661, %v660
      %v667 = vsel %vm416, %v653, 0
      %669 = vmatprep.subr.bf16.mxu0 0
      %670 = vmatpush1.bf16.msra.mxu0 %v662
      %671 = vmatprep.subr.bf16.mxu0 0
      %672 = vmatpush1.bf16.msra.mxu0 %v663
      %673 = vmatprep.subr.bf16.mxu0 0
      %674 = vmatpush1.bf16.msra.mxu0 0
      %675 = vmatprep.subr.bf16.mxu0 0
      %676 = vmatpush1.bf16.msra.mxu0 0
      %677 = vmatprep.subr.bf16.mxu0 0
      %678 = vmatpush1.bf16.msra.mxu0 0
      %679 = vmatprep.subr.bf16.mxu0 0
      %680 = vmatpush1.bf16.msra.mxu0 0
      %681 = vmatprep.subr.bf16.mxu0 0
      %682 = vmatpush1.bf16.msra.mxu0 0
      %683 = vmatprep.subr.bf16.mxu0 0
      %684 = vmatpush1.bf16.msra.mxu0 0
      %685 = vmatprep.subr.bf16.mxu0 0
      %686 = vmatpush1.bf16.msra.mxu0 0
      %687 = vmatprep.subr.bf16.mxu0 0
      %688 = vmatpush1.bf16.msra.mxu0 0
      %689 = vmatprep.subr.bf16.mxu0 0
      %690 = vmatpush1.bf16.msra.mxu0 0
      %691 = vmatprep.subr.bf16.mxu0 0
      %692 = vmatpush1.bf16.msra.mxu0 0
      %693 = vmatprep.subr.bf16.mxu0 0
      %694 = vmatpush1.bf16.msra.mxu0 0
      %695 = vmatprep.subr.bf16.mxu0 0
      %696 = vmatpush1.bf16.msra.mxu0 0
      %697 = vmatprep.subr.bf16.mxu0 0
      %698 = vmatpush1.bf16.msra.mxu0 0
      %699 = vmatprep.subr.bf16.mxu0 0
      %700 = vmatpush1.bf16.msra.mxu0 0
      %701 = vmatprep.mubr.bf16.mxu0 0
      %702 = vmatmul.mubr.bf16.gmra.mrb[0].mxu0 %v667
      %v703 = vpop.f32.mrb[0].mxu0
      %v704 = vadd.f32 0.0, %v703
      %v705 = vpop.f32.mrb[0].mxu0
      %v706 = vpop.f32.mrb[0].mxu0
      %v707 = vpop.f32.mrb[0].mxu0
      %708 = vdwg.mxu0
      %v713 = vunpack.c.l.b16 %v524
      %v714 = vunpack.c.l.b16 %v525
      %v715 = vunpack.c.l.b16 %v526
      %v716 = vunpack.c.l.b16 %v527
      %v717 = vpack.c.b16 %v714, %v713
      %v718 = vpack.c.b16 %v716, %v715
      %v722 = vsel %vm416, %v528, 0
      %724 = vmatprep.subr.bf16.mxu0 0
      %725 = vmatpush1.bf16.msra.mxu0 %v717
      %726 = vmatprep.subr.bf16.mxu0 0
      %727 = vmatpush1.bf16.msra.mxu0 %v718
      %728 = vmatprep.subr.bf16.mxu0 0
      %729 = vmatpush1.bf16.msra.mxu0 0
      %730 = vmatprep.subr.bf16.mxu0 0
      %731 = vmatpush1.bf16.msra.mxu0 0
      %732 = vmatprep.subr.bf16.mxu0 0
      %733 = vmatpush1.bf16.msra.mxu0 0
      %734 = vmatprep.subr.bf16.mxu0 0
      %735 = vmatpush1.bf16.msra.mxu0 0
      %736 = vmatprep.subr.bf16.mxu0 0
      %737 = vmatpush1.bf16.msra.mxu0 0
      %738 = vmatprep.subr.bf16.mxu0 0
      %739 = vmatpush1.bf16.msra.mxu0 0
      %740 = vmatprep.subr.bf16.mxu0 0
      %741 = vmatpush1.bf16.msra.mxu0 0
      %742 = vmatprep.subr.bf16.mxu0 0
      %743 = vmatpush1.bf16.msra.mxu0 0
      %744 = vmatprep.subr.bf16.mxu0 0
      %745 = vmatpush1.bf16.msra.mxu0 0
      %746 = vmatprep.subr.bf16.mxu0 0
      %747 = vmatpush1.bf16.msra.mxu0 0
      %748 = vmatprep.subr.bf16.mxu0 0
      %749 = vmatpush1.bf16.msra.mxu0 0
      %750 = vmatprep.subr.bf16.mxu0 0
      %751 = vmatpush1.bf16.msra.mxu0 0
      %752 = vmatprep.subr.bf16.mxu0 0
      %753 = vmatpush1.bf16.msra.mxu0 0
      %754 = vmatprep.subr.bf16.mxu0 0
      %755 = vmatpush1.bf16.msra.mxu0 0
      %756 = vmatprep.mubr.bf16.mxu0 0
      %757 = vmatmul.mubr.bf16.gmra.mrb[0].mxu0 %v722
      %v758 = vpop.f32.mrb[0].mxu0
      %v759 = vadd.f32 %v704, %v758
      %v760 = vpop.f32.mrb[0].mxu0
      %v761 = vpop.f32.mrb[0].mxu0
      %v762 = vpop.f32.mrb[0].mxu0
      %763 = vdwg.mxu0
      %764 = vrot.lane.b32.xlu0 %v531, 64
      %v765 = vpop.permute.xlu0 %764
      %766 = vrot.lane.b32.xlu0 %v536, 64
      %v767 = vpop.permute.xlu0 %766
      %v769 = vsel %vm416, %v765, 0
      %v772 = vsel %vm416, %v767, 0
      %774 = vmatprep.subr.bf16.mxu0 0
      %775 = vmatpush1.bf16.xpose.msra.mxu0 %v772
      %776 = vmatprep.subr.bf16.mxu0 0
      %777 = vmatpush1.bf16.xpose.msra.mxu0 0
      %778 = vmatprep.subr.bf16.mxu0 0
      %779 = vmatpush1.bf16.xpose.msra.mxu0 0
      %780 = vmatprep.subr.bf16.mxu0 0
      %781 = vmatpush1.bf16.xpose.msra.mxu0 0
      %782 = vmatprep.subr.bf16.mxu0 0
      %783 = vmatpush1.bf16.xpose.msra.mxu0 0
      %784 = vmatprep.subr.bf16.mxu0 0
      %785 = vmatpush1.bf16.xpose.msra.mxu0 0
      %786 = vmatprep.subr.bf16.mxu0 0
      %787 = vmatpush1.bf16.xpose.msra.mxu0 0
      %788 = vmatprep.subr.bf16.mxu0 0
      %789 = vmatpush1.bf16.xpose.msra.mxu0 0
      %790 = vmatprep.subr.bf16.mxu0 0
      %791 = vmatpush1.bf16.xpose.msra.mxu0 0
      %792 = vmatprep.subr.bf16.mxu0 0
      %793 = vmatpush1.bf16.xpose.msra.mxu0 0
      %794 = vmatprep.subr.bf16.mxu0 0
      %795 = vmatpush1.bf16.xpose.msra.mxu0 0
      %796 = vmatprep.subr.bf16.mxu0 0
      %797 = vmatpush1.bf16.xpose.msra.mxu0 0
      %798 = vmatprep.subr.bf16.mxu0 0
      %799 = vmatpush1.bf16.xpose.msra.mxu0 0
      %800 = vmatprep.subr.bf16.mxu0 0
      %801 = vmatpush1.bf16.xpose.msra.mxu0 0
      %802 = vmatprep.subr.bf16.mxu0 0
      %803 = vmatpush1.bf16.xpose.msra.mxu0 0
      %804 = vmatprep.subr.bf16.mxu0 0
      %805 = vmatpush1.bf16.xpose.msra.mxu0 0
      %806 = vmatprep.mubr.bf16.mxu0 0
      %807 = vmatmul.mubr.bf16.gmra.mrb[0].mxu0 %v769
      %v808 = vpop.f32.mrb[0].mxu0
      %v809 = vadd.f32 0.0, %v808
      %v810 = vpop.f32.mrb[0].mxu0
      %v811 = vpop.f32.mrb[0].mxu0
      %v812 = vpop.f32.mrb[0].mxu0
      %813 = vdwg.mxu0
      %v814 = vmul.f32 %v809, 0.17677669
      %v815 = vsel %vm464, %v814, -inf
      %816 = vmax.xlane.f32.xlu0 %v815
      %v817 = vpop.xlane.xlu0 %816
      %v818 = vsub.f32 %v814, %v817
      %v819 = vmul.f32 %v818, 1.442695
      %v820 = vpow.pop %v819
      %v821 = vsel %vm464, %v820, 0.0
      %822 = vadd.xlane.f32.xlu0 %v821
      %v823 = vpop.xlane.xlu0 %822
      %v824 = vrcp.pop %v823
      %v825 = vmul.f32 %v820, %v824
      %v826 = vpack.c.bf16 %v825, %v825
      %827 = vrot.lane.b32.xlu0 %v600, 64
      %v828 = vpop.permute.xlu0 %827
      %v830 = vsel %vm464, %v826, 0
      %v833 = vsel %vm480, %v828, 0
      %835 = vmatprep.subr.bf16.mxu0 0
      %836 = vmatpush1.bf16.msra.mxu0 %v833
      %837 = vmatprep.subr.bf16.mxu0 0
      %838 = vmatpush1.bf16.msra.mxu0 0
      %839 = vmatprep.subr.bf16.mxu0 0
      %840 = vmatpush1.bf16.msra.mxu0 0
      %841 = vmatprep.subr.bf16.mxu0 0
      %842 = vmatpush1.bf16.msra.mxu0 0
      %843 = vmatprep.subr.bf16.mxu0 0
      %844 = vmatpush1.bf16.msra.mxu0 0
      %845 = vmatprep.subr.bf16.mxu0 0
      %846 = vmatpush1.bf16.msra.mxu0 0
      %847 = vmatprep.subr.bf16.mxu0 0
      %848 = vmatpush1.bf16.msra.mxu0 0
      %849 = vmatprep.subr.bf16.mxu0 0
      %850 = vmatpush1.bf16.msra.mxu0 0
      %851 = vmatprep.subr.bf16.mxu0 0
      %852 = vmatpush1.bf16.msra.mxu0 0
      %853 = vmatprep.subr.bf16.mxu0 0
      %854 = vmatpush1.bf16.msra.mxu0 0
      %855 = vmatprep.subr.bf16.mxu0 0
      %856 = vmatpush1.bf16.msra.mxu0 0
      %857 = vmatprep.subr.bf16.mxu0 0
      %858 = vmatpush1.bf16.msra.mxu0 0
      %859 = vmatprep.subr.bf16.mxu0 0
      %860 = vmatpush1.bf16.msra.mxu0 0
      %861 = vmatprep.subr.bf16.mxu0 0
      %862 = vmatpush1.bf16.msra.mxu0 0
      %863 = vmatprep.subr.bf16.mxu0 0
      %864 = vmatpush1.bf16.msra.mxu0 0
      %865 = vmatprep.subr.bf16.mxu0 0
      %866 = vmatpush1.bf16.msra.mxu0 0
      %867 = vmatprep.mubr.bf16.mxu0 0
      %868 = vmatmul.mubr.bf16.gmra.mrb[0].mxu0 %v830
      %v869 = vpop.f32.mrb[0].mxu0
      %v870 = vadd.f32 0.0, %v869
      %v871 = vpop.f32.mrb[0].mxu0
      %v872 = vpop.f32.mrb[0].mxu0
      %v873 = vpop.f32.mrb[0].mxu0
      %874 = vdwg.mxu0
      %v875 = vld [vmem:[%s4 + $0x20] sm:$0xf]
      %v876 = vld [vmem:[%s4 + $0x24] sm:$0xf]
      %v877 = vld [vmem:[%s4 + $0x28] sm:$0xf]
      %v878 = vld [vmem:[%s4 + $0x2c] sm:$0xf]
      %v879 = vpack.c.bf16 %v870, %v870
      %v884 = vunpack.c.l.b16 %v875
      %v885 = vunpack.c.l.b16 %v876
      %v886 = vunpack.c.l.b16 %v877
      %v887 = vunpack.c.l.b16 %v878
      %v888 = vpack.c.b16 %v885, %v884
      %v889 = vpack.c.b16 %v887, %v886
      %v893 = vsel %vm416, %v879, 0
      %895 = vmatprep.subr.bf16.mxu0 0
      %896 = vmatpush1.bf16.msra.mxu0 %v888
      %897 = vmatprep.subr.bf16.mxu0 0
      %898 = vmatpush1.bf16.msra.mxu0 %v889
      %899 = vmatprep.subr.bf16.mxu0 0
      %900 = vmatpush1.bf16.msra.mxu0 0
      %901 = vmatprep.subr.bf16.mxu0 0
      %902 = vmatpush1.bf16.msra.mxu0 0
      %903 = vmatprep.subr.bf16.mxu0 0
      %904 = vmatpush1.bf16.msra.mxu0 0
      %905 = vmatprep.subr.bf16.mxu0 0
      %906 = vmatpush1.bf16.msra.mxu0 0
      %907 = vmatprep.subr.bf16.mxu0 0
      %908 = vmatpush1.bf16.msra.mxu0 0
      %909 = vmatprep.subr.bf16.mxu0 0
      %910 = vmatpush1.bf16.msra.mxu0 0
      %911 = vmatprep.subr.bf16.mxu0 0
      %912 = vmatpush1.bf16.msra.mxu0 0
      %913 = vmatprep.subr.bf16.mxu0 0
      %914 = vmatpush1.bf16.msra.mxu0 0
      %915 = vmatprep.subr.bf16.mxu0 0
      %916 = vmatpush1.bf16.msra.mxu0 0
      %917 = vmatprep.subr.bf16.mxu0 0
      %918 = vmatpush1.bf16.msra.mxu0 0
      %919 = vmatprep.subr.bf16.mxu0 0
      %920 = vmatpush1.bf16.msra.mxu0 0
      %921 = vmatprep.subr.bf16.mxu0 0
      %922 = vmatpush1.bf16.msra.mxu0 0
      %923 = vmatprep.subr.bf16.mxu0 0
      %924 = vmatpush1.bf16.msra.mxu0 0
      %925 = vmatprep.subr.bf16.mxu0 0
      %926 = vmatpush1.bf16.msra.mxu0 0
      %927 = vmatprep.mubr.bf16.mxu0 0
      %928 = vmatmul.mubr.bf16.gmra.mrb[0].mxu0 %v893
      %v929 = vpop.f32.mrb[0].mxu0
      %v930 = vadd.f32 0.0, %v929
      %v931 = vpop.f32.mrb[0].mxu0
      %v932 = vpop.f32.mrb[0].mxu0
      %v933 = vpop.f32.mrb[0].mxu0
      %934 = vdwg.mxu0
      %v935 = vadd.f32 %v759, %v930
      %936 = vrot.lane.b32.xlu0 %v531, 32
      %v937 = vpop.permute.xlu0 %936
      %938 = vrot.lane.b32.xlu0 %v536, 32
      %v939 = vpop.permute.xlu0 %938
      %v941 = vsel %vm416, %v937, 0
      %v944 = vsel %vm416, %v939, 0
      %946 = vmatprep.subr.bf16.mxu0 0
      %947 = vmatpush1.bf16.xpose.msra.mxu0 %v944
      %948 = vmatprep.subr.bf16.mxu0 0
      %949 = vmatpush1.bf16.xpose.msra.mxu0 0
      %950 = vmatprep.subr.bf16.mxu0 0
      %951 = vmatpush1.bf16.xpose.msra.mxu0 0
      %952 = vmatprep.subr.bf16.mxu0 0
      %953 = vmatpush1.bf16.xpose.msra.mxu0 0
      %954 = vmatprep.subr.bf16.mxu0 0
      %955 = vmatpush1.bf16.xpose.msra.mxu0 0
      %956 = vmatprep.subr.bf16.mxu0 0
      %957 = vmatpush1.bf16.xpose.msra.mxu0 0
      %958 = vmatprep.subr.bf16.mxu0 0
      %959 = vmatpush1.bf16.xpose.msra.mxu0 0
      %960 = vmatprep.subr.bf16.mxu0 0
      %961 = vmatpush1.bf16.xpose.msra.mxu0 0
      %962 = vmatprep.subr.bf16.mxu0 0
      %963 = vmatpush1.bf16.xpose.msra.mxu0 0
      %964 = vmatprep.subr.bf16.mxu0 0
      %965 = vmatpush1.bf16.xpose.msra.mxu0 0
      %966 = vmatprep.subr.bf16.mxu0 0
      %967 = vmatpush1.bf16.xpose.msra.mxu0 0
      %968 = vmatprep.subr.bf16.mxu0 0
      %969 = vmatpush1.bf16.xpose.msra.mxu0 0
      %970 = vmatprep.subr.bf16.mxu0 0
      %971 = vmatpush1.bf16.xpose.msra.mxu0 0
      %972 = vmatprep.subr.bf16.mxu0 0
      %973 = vmatpush1.bf16.xpose.msra.mxu0 0
      %974 = vmatprep.subr.bf16.mxu0 0
      %975 = vmatpush1.bf16.xpose.msra.mxu0 0
      %976 = vmatprep.subr.bf16.mxu0 0
      %977 = vmatpush1.bf16.xpose.msra.mxu0 0
      %978 = vmatprep.mubr.bf16.mxu0 0
      %979 = vmatmul.mubr.bf16.gmra.mrb[0].mxu0 %v941
      %v980 = vpop.f32.mrb[0].mxu0
      %v981 = vadd.f32 0.0, %v980
      %v982 = vpop.f32.mrb[0].mxu0
      %v983 = vpop.f32.mrb[0].mxu0
      %v984 = vpop.f32.mrb[0].mxu0
      %985 = vdwg.mxu0
      %v986 = vmul.f32 %v981, 0.17677669
      %v987 = vsel %vm464, %v986, -inf
      %988 = vmax.xlane.f32.xlu0 %v987
      %v989 = vpop.xlane.xlu0 %988
      %v990 = vsub.f32 %v986, %v989
      %v991 = vmul.f32 %v990, 1.442695
      %v992 = vpow.pop %v991
      %v993 = vsel %vm464, %v992, 0.0
      %994 = vadd.xlane.f32.xlu0 %v993
      %v995 = vpop.xlane.xlu0 %994
      %v996 = vrcp.pop %v995
      %v997 = vmul.f32 %v992, %v996
      %v998 = vpack.c.bf16 %v997, %v997
      %999 = vrot.lane.b32.xlu0 %v600, 32
      %v1000 = vpop.permute.xlu0 %999
      %v1002 = vsel %vm464, %v998, 0
      %v1005 = vsel %vm480, %v1000, 0
      %1007 = vmatprep.subr.bf16.mxu0 0
      %1008 = vmatpush1.bf16.msra.mxu0 %v1005
      %1009 = vmatprep.subr.bf16.mxu0 0
      %1010 = vmatpush1.bf16.msra.mxu0 0
      %1011 = vmatprep.subr.bf16.mxu0 0
      %1012 = vmatpush1.bf16.msra.mxu0 0
      %1013 = vmatprep.subr.bf16.mxu0 0
      %1014 = vmatpush1.bf16.msra.mxu0 0
      %1015 = vmatprep.subr.bf16.mxu0 0
      %1016 = vmatpush1.bf16.msra.mxu0 0
      %1017 = vmatprep.subr.bf16.mxu0 0
      %1018 = vmatpush1.bf16.msra.mxu0 0
      %1019 = vmatprep.subr.bf16.mxu0 0
      %1020 = vmatpush1.bf16.msra.mxu0 0
      %1021 = vmatprep.subr.bf16.mxu0 0
      %1022 = vmatpush1.bf16.msra.mxu0 0
      %1023 = vmatprep.subr.bf16.mxu0 0
      %1024 = vmatpush1.bf16.msra.mxu0 0
      %1025 = vmatprep.subr.bf16.mxu0 0
      %1026 = vmatpush1.bf16.msra.mxu0 0
      %1027 = vmatprep.subr.bf16.mxu0 0
      %1028 = vmatpush1.bf16.msra.mxu0 0
      %1029 = vmatprep.subr.bf16.mxu0 0
      %1030 = vmatpush1.bf16.msra.mxu0 0
      %1031 = vmatprep.subr.bf16.mxu0 0
      %1032 = vmatpush1.bf16.msra.mxu0 0
      %1033 = vmatprep.subr.bf16.mxu0 0
      %1034 = vmatpush1.bf16.msra.mxu0 0
      %1035 = vmatprep.subr.bf16.mxu0 0
      %1036 = vmatpush1.bf16.msra.mxu0 0
      %1037 = vmatprep.subr.bf16.mxu0 0
      %1038 = vmatpush1.bf16.msra.mxu0 0
      %1039 = vmatprep.mubr.bf16.mxu0 0
      %1040 = vmatmul.mubr.bf16.gmra.mrb[0].mxu0 %v1002
      %v1041 = vpop.f32.mrb[0].mxu0
      %v1042 = vadd.f32 0.0, %v1041
      %v1043 = vpop.f32.mrb[0].mxu0
      %v1044 = vpop.f32.mrb[0].mxu0
      %v1045 = vpop.f32.mrb[0].mxu0
      %1046 = vdwg.mxu0
      %v1047 = vld [vmem:[%s4 + $0x30] sm:$0xf]
      %v1048 = vld [vmem:[%s4 + $0x34] sm:$0xf]
      %v1049 = vld [vmem:[%s4 + $0x38] sm:$0xf]
      %v1050 = vld [vmem:[%s4 + $0x3c] sm:$0xf]
      %v1051 = vpack.c.bf16 %v1042, %v1042
      %v1056 = vunpack.c.l.b16 %v1047
      %v1057 = vunpack.c.l.b16 %v1048
      %v1058 = vunpack.c.l.b16 %v1049
      %v1059 = vunpack.c.l.b16 %v1050
      %v1060 = vpack.c.b16 %v1057, %v1056
      %v1061 = vpack.c.b16 %v1059, %v1058
      %v1065 = vsel %vm416, %v1051, 0
      %1067 = vmatprep.subr.bf16.mxu0 0
      %1068 = vmatpush1.bf16.msra.mxu0 %v1060
      %1069 = vmatprep.subr.bf16.mxu0 0
      %1070 = vmatpush1.bf16.msra.mxu0 %v1061
      %1071 = vmatprep.subr.bf16.mxu0 0
      %1072 = vmatpush1.bf16.msra.mxu0 0
      %1073 = vmatprep.subr.bf16.mxu0 0
      %1074 = vmatpush1.bf16.msra.mxu0 0
      %1075 = vmatprep.subr.bf16.mxu0 0
      %1076 = vmatpush1.bf16.msra.mxu0 0
      %1077 = vmatprep.subr.bf16.mxu0 0
      %1078 = vmatpush1.bf16.msra.mxu0 0
      %1079 = vmatprep.subr.bf16.mxu0 0
      %1080 = vmatpush1.bf16.msra.mxu0 0
      %1081 = vmatprep.subr.bf16.mxu0 0
      %1082 = vmatpush1.bf16.msra.mxu0 0
      %1083 = vmatprep.subr.bf16.mxu0 0
      %1084 = vmatpush1.bf16.msra.mxu0 0
      %1085 = vmatprep.subr.bf16.mxu0 0
      %1086 = vmatpush1.bf16.msra.mxu0 0
      %1087 = vmatprep.subr.bf16.mxu0 0
      %1088 = vmatpush1.bf16.msra.mxu0 0
      %1089 = vmatprep.subr.bf16.mxu0 0
      %1090 = vmatpush1.bf16.msra.mxu0 0
      %1091 = vmatprep.subr.bf16.mxu0 0
      %1092 = vmatpush1.bf16.msra.mxu0 0
      %1093 = vmatprep.subr.bf16.mxu0 0
      %1094 = vmatpush1.bf16.msra.mxu0 0
      %1095 = vmatprep.subr.bf16.mxu0 0
      %1096 = vmatpush1.bf16.msra.mxu0 0
      %1097 = vmatprep.subr.bf16.mxu0 0
      %1098 = vmatpush1.bf16.msra.mxu0 0
      %1099 = vmatprep.mubr.bf16.mxu0 0
      %1100 = vmatmul.mubr.bf16.gmra.mrb[0].mxu0 %v1065
      %v1101 = vpop.f32.mrb[0].mxu0
      %v1102 = vadd.f32 0.0, %v1101
      %v1103 = vpop.f32.mrb[0].mxu0
      %v1104 = vpop.f32.mrb[0].mxu0
      %v1105 = vpop.f32.mrb[0].mxu0
      %1106 = vdwg.mxu0
      %v1107 = vadd.f32 %v935, %v1102
      %v1108 = vld [vmem:[%s5] sm:$0x1]
      %v1110 = vlaneseq
      %v1111 = vshrl.u32 %v1110, 7
      %v1112 = vsub.s32 0, %v1111
      %v1113 = vrot.slane %v1108, %v1112
      %v1115 = vadd.f32 %v1107, %v1113
      %v1116 = vld [vmem:[%s404] sm:$0xf]
      %v1117 = vunpack.c.l.bf16 %v1116
      %v1118 = vadd.f32 %v1115, %v1117
      %1119 = vadd.xlane.f32.xlu0 %v1118
      %v1120 = vpop.xlane.xlu0 %1119
      %v1121 = vrcp.pop 128.0
      %v1122 = vmul.f32 %v1120, %v1121
      %v1123 = vsub.f32 %v1118, %v1122
      %v1124 = vmul.f32 %v1123, %v1123
      %1125 = vadd.xlane.f32.xlu0 %v1124
      %v1126 = vpop.xlane.xlu0 %1125
      %v1127 = vmul.f32 %v1126, %v1121
      %v1128 = vadd.f32 %v1127, 1e-05
      %v1129 = vrsqrt.pop %v1128
      %v1130 = vmul.f32 %v1123, %v1129
      %v1131 = vld [vmem:[%s6] sm:$0x1]
      %v1133 = vlaneseq
      %v1134 = vshrl.u32 %v1133, 7
      %v1135 = vsub.s32 0, %v1134
      %v1136 = vrot.slane %v1131, %v1135
      %v1138 = vmul.f32 %v1130, %v1136
      %v1139 = vld [vmem:[%s7] sm:$0x1]
      %v1141 = vlaneseq
      %v1142 = vshrl.u32 %v1141, 7
      %v1143 = vsub.s32 0, %v1142
      %v1144 = vrot.slane %v1139, %v1143
      %v1146 = vadd.f32 %v1138, %v1144
      %v1147 = vpack.c.bf16 %v1146, %v1146
      %1148 = vst [vmem:[%s411] sm:$0xf] %v1147
      %p1149 = scmp.lt.s32.totalorder %s23, 1
      %s1150 = scalar_select %p1149, %s23, 1
      %p1151 = scmp.lt.s32.totalorder %s24, 0
      %s1152 = scalar_select %p1151, %s24, 0
      %s1153 = sadd.s32 %s1152, %s1150
      %s1154 = smul.addr %s1153, 4
      %s1155 = scalar_lea.vmem %s8, %s1154
      // Predicated region
      $region53: #{translation_transformer_forward.29} parent=51 // pred_check
        %p1156 = pneg %p243
      $region54: #{translation_transformer_forward.29} parent=51 // pred_check_branch
        %1158 = sbr.rel (%p1156) target = $region56
      $region55: #{translation_transformer_forward.29} parent=51 // pred_region
        _
      $region56: #{translation_transformer_forward.29} parent=51 // pred_fallthru
        _
    $region52: #{translation_transformer_forward.29} parent=5 // pred_fallthru
      _
    %p1159 = scmp.le.s32.totalorder 2, %s14
    // Predicated region
    $region57: #{translation_transformer_forward.29} parent=5 // pred_check
      %p1160 = pneg %p1159
    $region58: #{translation_transformer_forward.29} parent=5 // pred_check_branch
      %1162 = sbr.rel (%p1160) target = $region60
    $region59: #{translation_transformer_forward.29} parent=5 // pred_region
      %s1163 = ssub.s32 %s14, 2
      // Predicated region
      $region61: #{translation_transformer_forward.29} parent=59 // pred_check
        %p1164 = pneg %p249
      $region62: #{translation_transformer_forward.29} parent=59 // pred_check_branch
        %1166 = sbr.rel (%p1164) target = $region64
      $region63: #{translation_transformer_forward.29} parent=59 // pred_region
        %p1167 = scmp.lt.s32.totalorder %s25, 1
        %s1168 = scalar_select %p1167, %s25, 1
        %p1169 = scmp.lt.s32.totalorder %s26, 0
        %s1170 = scalar_select %p1169, %s26, 0
        %s1171 = sadd.s32 %s1170, %s1168
        %s1172 = smul.addr %s1171, 4
        %s1173 = scalar_lea.vmem %s8, %s1172
      $region64: #{translation_transformer_forward.29} parent=59 // pred_fallthru
        _
    $region60: #{translation_transformer_forward.29} parent=5 // pred_fallthru
      _
  $region6: #{translation_transformer_forward.29} parent=0 // loop_footer
    %s18 = sadd.s32 1, %s14
  $region7: #{translation_transformer_forward.29} parent=0 // loop_footer_branch
    %13 = sbr.rel target = $region3
  $region8: #{translation_transformer_forward.29} parent=0 // loop_exit
    _

// kernel: translation_transformer_forward.28
$region0: #{translation_transformer_forward.28}
  #allocation0 [shape = 'u32[]', space=smem, size = 0x4, offset = 0x4, fixed_abs, tag = 'smem constant byte address 0x4 - core index']
  #allocation1 [shape = 'u32[144,128]{1,0:T(1,128)}', space=vmem, size = 0x12000, scoped, tag = 'internal scratch']
  %s0 = inlined_call_operand.vmem [shape: bf16[16,128], index: 0, kind: input, shape index: {}]
  %s1 = inlined_call_operand.vmem [shape: bf16[128,384], index: 1, kind: input, shape index: {}]
  %s2 = inlined_call_operand.vmem [shape: f32[1,384], index: 2, kind: input, shape index: {}]
  %s3 = inlined_call_operand.vmem [shape: bf16[16,384], index: 3, kind: output, shape index: {}]
  %s4 = sld [smem:[#allocation0]]
  $region22: #{translation_transformer_forward.28} parent=0
    _
  %s6 = ssub.s32 1, %s4
  %s7 = scalar_select 0, %s6, %s4
  // Predicated region
  $region2: #{translation_transformer_forward.28} parent=0 // pred_check
    _
  $region3: #{translation_transformer_forward.28} parent=0 // pred_check_branch
    %9 = sbr.rel (0) target = $region5
  $region4: #{translation_transformer_forward.28} parent=0 // pred_region
    _
  $region5: #{translation_transformer_forward.28} parent=0 // pred_fallthru
    _
  // Predicated region
  $region6: #{translation_transformer_forward.28} parent=0 // pred_check
    _
  $region7: #{translation_transformer_forward.28} parent=0 // pred_check_branch
    %11 = sbr.rel (0) target = $region9
  $region8: #{translation_transformer_forward.28} parent=0 // pred_region
    _
  $region9: #{translation_transformer_forward.28} parent=0 // pred_fallthru
    _
  // Predicated region
  $region10: #{translation_transformer_forward.28} parent=0 // pred_check
    _
  $region11: #{translation_transformer_forward.28} parent=0 // pred_check_branch
    %13 = sbr.rel (0) target = $region13
  $region12: #{translation_transformer_forward.28} parent=0 // pred_region
    _
  $region13: #{translation_transformer_forward.28} parent=0 // pred_fallthru
    _
  %v15 = vld [vmem:[%s0] sm:$0xf]
  %v16 = vld [vmem:[%s0 + $0x4] sm:$0xf]
  %v17 = vld [vmem:[%s1] sm:$0xff]
  %v18 = vld [vmem:[%s1 + $0x8] sm:$0xf]
  %v19 = vld [vmem:[%s1 + $0xc] sm:$0xff]
  %v20 = vld [vmem:[%s1 + $0x14] sm:$0xf]
  %v21 = vld [vmem:[%s1 + $0x18] sm:$0xff]
  %v22 = vld [vmem:[%s1 + $0x20] sm:$0xf]
  %v23 = vld [vmem:[%s1 + $0x24] sm:$0xff]
  %v24 = vld [vmem:[%s1 + $0x2c] sm:$0xf]
  %v25 = vld [vmem:[%s1 + $0x30] sm:$0xff]
  %v26 = vld [vmem:[%s1 + $0x38] sm:$0xf]
  %v27 = vld [vmem:[%s1 + $0x3c] sm:$0xff]
  %v28 = vld [vmem:[%s1 + $0x44] sm:$0xf]
  %v29 = vld [vmem:[%s1 + $0x48] sm:$0xff]
  %v30 = vld [vmem:[%s1 + $0x50] sm:$0xf]
  %v31 = vld [vmem:[%s1 + $0x54] sm:$0xff]
  %v32 = vld [vmem:[%s1 + $0x5c] sm:$0xf]
  %v33 = vld [vmem:[%s1 + $0x60] sm:$0xff]
  %v34 = vld [vmem:[%s1 + $0x68] sm:$0xf]
  %v35 = vld [vmem:[%s1 + $0x6c] sm:$0xff]
  %v36 = vld [vmem:[%s1 + $0x74] sm:$0xf]
  %v37 = vld [vmem:[%s1 + $0x78] sm:$0xff]
  %v38 = vld [vmem:[%s1 + $0x80] sm:$0xf]
  %v39 = vld [vmem:[%s1 + $0x84] sm:$0xff]
  %v40 = vld [vmem:[%s1 + $0x8c] sm:$0xf]
  %v41 = vld [vmem:[%s1 + $0x90] sm:$0xff]
  %v42 = vld [vmem:[%s1 + $0x98] sm:$0xf]
  %v43 = vld [vmem:[%s1 + $0x9c] sm:$0xff]
  %v44 = vld [vmem:[%s1 + $0xa4] sm:$0xf]
  %v45 = vld [vmem:[%s1 + $0xa8] sm:$0xff]
  %v46 = vld [vmem:[%s1 + $0xb0] sm:$0xf]
  %v47 = vld [vmem:[%s1 + $0xb4] sm:$0xff]
  %v48 = vld [vmem:[%s1 + $0xbc] sm:$0xf]
  %v49 = vld [vmem:[%s2] sm:$0x7]
  %v51 = vlaneseq
  %v52 = vshrl.u32 %v51, 7
  %v53 = vsub.s32 0, %v52
  %v54 = vrot.slane %v49, %v53
  %v55 = vlaneseq
  %v56 = vshrl.u32 %v55, 7
  %v57 = vsub.s32 1, %v56
  %v58 = vrot.slane %v49, %v57
  %v59 = vlaneseq
  %v60 = vshrl.u32 %v59, 7
  %v61 = vsub.s32 2, %v60
  %v62 = vrot.slane %v49, %v61
  %v68 = vunpack.c.l.b16 %v15
  %v69 = vunpack.c.l.b16 %v16
  %v70 = vpack.c.b16 %v69, %v68
  %v104 = vunpack.c.l.b16 %v17
  %v105 = vunpack.c.h.b16 %v17
  %v106 = vunpack.c.l.b16 %v18
  %v107 = vunpack.c.l.b16 %v19
  %v108 = vunpack.c.h.b16 %v19
  %v109 = vunpack.c.l.b16 %v20
  %v110 = vunpack.c.l.b16 %v21
  %v111 = vunpack.c.h.b16 %v21
  %v112 = vunpack.c.l.b16 %v22
  %v113 = vunpack.c.l.b16 %v23
  %v114 = vunpack.c.h.b16 %v23
  %v115 = vunpack.c.l.b16 %v24
  %v116 = vunpack.c.l.b16 %v25
  %v117 = vunpack.c.h.b16 %v25
  %v118 = vunpack.c.l.b16 %v26
  %v119 = vunpack.c.l.b16 %v27
  %v120 = vunpack.c.h.b16 %v27
  %v121 = vunpack.c.l.b16 %v28
  %v122 = vunpack.c.l.b16 %v29
  %v123 = vunpack.c.h.b16 %v29
  %v124 = vunpack.c.l.b16 %v30
  %v125 = vunpack.c.l.b16 %v31
  %v126 = vunpack.c.h.b16 %v31
  %v127 = vunpack.c.l.b16 %v32
  %v128 = vunpack.c.l.b16 %v33
  %v129 = vunpack.c.h.b16 %v33
  %v130 = vunpack.c.l.b16 %v34
  %v131 = vunpack.c.l.b16 %v35
  %v132 = vunpack.c.h.b16 %v35
  %v133 = vunpack.c.l.b16 %v36
  %v134 = vunpack.c.l.b16 %v37
  %v135 = vunpack.c.h.b16 %v37
  %v136 = vunpack.c.l.b16 %v38
  %v137 = vunpack.c.l.b16 %v39
  %v138 = vunpack.c.h.b16 %v39
  %v139 = vunpack.c.l.b16 %v40
  %v140 = vunpack.c.l.b16 %v41
  %v141 = vunpack.c.h.b16 %v41
  %v142 = vunpack.c.l.b16 %v42
  %v143 = vunpack.c.l.b16 %v43
  %v144 = vunpack.c.h.b16 %v43
  %v145 = vunpack.c.l.b16 %v44
  %v146 = vunpack.c.l.b16 %v45
  %v147 = vunpack.c.h.b16 %v45
  %v148 = vunpack.c.l.b16 %v46
  %v149 = vunpack.c.l.b16 %v47
  %v150 = vunpack.c.h.b16 %v47
  %v151 = vunpack.c.l.b16 %v48
  %v152 = vpack.c.b16 %v107, %v104
  %v153 = vpack.c.b16 %v108, %v105
  %v154 = vpack.c.b16 %v109, %v106
  %v155 = vpack.c.b16 %v113, %v110
  %v156 = vpack.c.b16 %v114, %v111
  %v157 = vpack.c.b16 %v115, %v112
  %v158 = vpack.c.b16 %v119, %v116
  %v159 = vpack.c.b16 %v120, %v117
  %v160 = vpack.c.b16 %v121, %v118
  %v161 = vpack.c.b16 %v125, %v122
  %v162 = vpack.c.b16 %v126, %v123
  %v163 = vpack.c.b16 %v127, %v124
  %v164 = vpack.c.b16 %v131, %v128
  %v165 = vpack.c.b16 %v132, %v129
  %v166 = vpack.c.b16 %v133, %v130
  %v167 = vpack.c.b16 %v137, %v134
  %v168 = vpack.c.b16 %v138, %v135
  %v169 = vpack.c.b16 %v139, %v136
  %v170 = vpack.c.b16 %v143, %v140
  %v171 = vpack.c.b16 %v144, %v141
  %v172 = vpack.c.b16 %v145, %v142
  %v173 = vpack.c.b16 %v149, %v146
  %v174 = vpack.c.b16 %v150, %v147
  %v175 = vpack.c.b16 %v151, %v148
  %200 = vmatprep.subr.bf16.mxu0 %v153
  %201 = vmatpush1.bf16.msra.mxu0 %v152
  %202 = vmatprep.subr.bf16.mxu0 %v156
  %203 = vmatpush1.bf16.msra.mxu0 %v155
  %204 = vmatprep.subr.bf16.mxu0 %v159
  %205 = vmatpush1.bf16.msra.mxu0 %v158
  %206 = vmatprep.subr.bf16.mxu0 %v162
  %207 = vmatpush1.bf16.msra.mxu0 %v161
  %208 = vmatprep.subr.bf16.mxu0 %v165
  %209 = vmatpush1.bf16.msra.mxu0 %v164
  %210 = vmatprep.subr.bf16.mxu0 %v168
  %211 = vmatpush1.bf16.msra.mxu0 %v167
  %212 = vmatprep.subr.bf16.mxu0 %v171
  %213 = vmatpush1.bf16.msra.mxu0 %v170
  %214 = vmatprep.subr.bf16.mxu0 %v174
  %215 = vmatpush1.bf16.msra.mxu0 %v173
  %216 = vmatprep.subr.bf16.mxu0 0
  %217 = vmatpush1.bf16.msra.mxu0 0
  %218 = vmatprep.subr.bf16.mxu0 0
  %219 = vmatpush1.bf16.msra.mxu0 0
  %220 = vmatprep.subr.bf16.mxu0 0
  %221 = vmatpush1.bf16.msra.mxu0 0
  %222 = vmatprep.subr.bf16.mxu0 0
  %223 = vmatpush1.bf16.msra.mxu0 0
  %224 = vmatprep.subr.bf16.mxu0 0
  %225 = vmatpush1.bf16.msra.mxu0 0
  %226 = vmatprep.subr.bf16.mxu0 0
  %227 = vmatpush1.bf16.msra.mxu0 0
  %228 = vmatprep.subr.bf16.mxu0 0
  %229 = vmatpush1.bf16.msra.mxu0 0
  %230 = vmatprep.subr.bf16.mxu0 0
  %231 = vmatpush1.bf16.msra.mxu0 0
  %232 = vmatprep.mubr.bf16.mxu0 0
  %233 = vmatmul.mubr.bf16.gmra.mrb[0].mxu0 %v70
  %v234 = vpop.f32.mrb[0].mxu0
  %v235 = vadd.f32 %v54, %v234
  %v236 = vpop.f32.mrb[0].mxu0
  %v237 = vadd.f32 %v58, %v236
  %v238 = vpop.f32.mrb[0].mxu0
  %v239 = vadd.f32 %v54, %v238
  %v240 = vpop.f32.mrb[0].mxu0
  %v241 = vadd.f32 %v58, %v240
  %242 = vdwg.mxu0
  %243 = vmatprep.subr.bf16.mxu0 0
  %244 = vmatpush1.bf16.msra.mxu0 %v154
  %245 = vmatprep.subr.bf16.mxu0 0
  %246 = vmatpush1.bf16.msra.mxu0 %v157
  %247 = vmatprep.subr.bf16.mxu0 0
  %248 = vmatpush1.bf16.msra.mxu0 %v160
  %249 = vmatprep.subr.bf16.mxu0 0
  %250 = vmatpush1.bf16.msra.mxu0 %v163
  %251 = vmatprep.subr.bf16.mxu0 0
  %252 = vmatpush1.bf16.msra.mxu0 %v166
  %253 = vmatprep.subr.bf16.mxu0 0
  %254 = vmatpush1.bf16.msra.mxu0 %v169
  %255 = vmatprep.subr.bf16.mxu0 0
  %256 = vmatpush1.bf16.msra.mxu0 %v172
  %257 = vmatprep.subr.bf16.mxu0 0
  %258 = vmatpush1.bf16.msra.mxu0 %v175
  %259 = vmatprep.subr.bf16.mxu0 0
  %260 = vmatpush1.bf16.msra.mxu0 0
  %261 = vmatprep.subr.bf16.mxu0 0
  %262 = vmatpush1.bf16.msra.mxu0 0
  %263 = vmatprep.subr.bf16.mxu0 0
  %264 = vmatpush1.bf16.msra.mxu0 0
  %265 = vmatprep.subr.bf16.mxu0 0
  %266 = vmatpush1.bf16.msra.mxu0 0
  %267 = vmatprep.subr.bf16.mxu0 0
  %268 = vmatpush1.bf16.msra.mxu0 0
  %269 = vmatprep.subr.bf16.mxu0 0
  %270 = vmatpush1.bf16.msra.mxu0 0
  %271 = vmatprep.subr.bf16.mxu0 0
  %272 = vmatpush1.bf16.msra.mxu0 0
  %273 = vmatprep.subr.bf16.mxu0 0
  %274 = vmatpush1.bf16.msra.mxu0 0
  %275 = vmatprep.mubr.bf16.mxu0 0
  %276 = vmatmul.mubr.bf16.gmra.mrb[0].mxu0 %v70
  %v277 = vpop.f32.mrb[0].mxu0
  %v278 = vadd.f32 %v62, %v277
  %v279 = vpop.f32.mrb[0].mxu0
  %v280 = vpop.f32.mrb[0].mxu0
  %v281 = vadd.f32 %v62, %v280
  %v282 = vpop.f32.mrb[0].mxu0
  %283 = vdwg.mxu0
  %v284 = vpack.c.bf16 %v239, %v235
  %v285 = vpack.c.bf16 %v241, %v237
  %v286 = vpack.c.bf16 %v281, %v278
  %v290 = vunpack.c.l.b16 %v284
  %v291 = vunpack.c.l.b16 %v285
  %v292 = vunpack.c.l.b16 %v286
  %v293 = vunpack.c.h.b16 %v284
  %v294 = vunpack.c.h.b16 %v285
  %v295 = vunpack.c.h.b16 %v286
  %v296 = vpack.c.b16 %v291, %v290
  %v297 = vpack.c.b16 %v292, %v292
  %v298 = vpack.c.b16 %v294, %v293
  %v299 = vpack.c.b16 %v295, %v295
  %304 = vst [vmem:[%s3] sm:$0xff] %v296
  %305 = vst [vmem:[%s3 + $0x8] sm:$0xf] %v297
  %306 = vst [vmem:[%s3 + $0xc] sm:$0xff] %v298
  %307 = vst [vmem:[%s3 + $0x14] sm:$0xf] %v299
  // Predicated region
  $region14: #{translation_transformer_forward.28} parent=0 // pred_check
    _
  $region15: #{translation_transformer_forward.28} parent=0 // pred_check_branch
    %309 = sbr.rel (0) target = $region17
  $region16: #{translation_transformer_forward.28} parent=0 // pred_region
    _
  $region17: #{translation_transformer_forward.28} parent=0 // pred_fallthru
    _
  // Predicated region
  $region18: #{translation_transformer_forward.28} parent=0 // pred_check
    _
  $region19: #{translation_transformer_forward.28} parent=0 // pred_check_branch
    %311 = sbr.rel (0) target = $region21
  $region20: #{translation_transformer_forward.28} parent=0 // pred_region
    _
  $region21: #{translation_transformer_forward.28} parent=0 // pred_fallthru
    _

// kernel: translation_transformer_forward.23
$region0: #{translation_transformer_forward.23}
  #allocation0 [shape = 'u32[]', space=smem, size = 0x4, offset = 0x4, fixed_abs, tag = 'smem constant byte address 0x4 - core index']
  #allocation1 [shape = 'u32[144,128]{1,0:T(1,128)}', space=vmem, size = 0x12000, scoped, tag = 'internal scratch']
  %s0 = inlined_call_operand.vmem [shape: bf16[16,128], index: 0, kind: input, shape index: {}]
  %s1 = inlined_call_operand.vmem [shape: bf16[128,256], index: 1, kind: input, shape index: {}]
  %s2 = inlined_call_operand.vmem [shape: f32[1,256], index: 2, kind: input, shape index: {}]
  %s3 = inlined_call_operand.vmem [shape: bf16[256,128], index: 3, kind: input, shape index: {}]
  %s4 = inlined_call_operand.vmem [shape: f32[1,128], index: 4, kind: input, shape index: {}]
  %s5 = inlined_call_operand.vmem [shape: f32[1,128], index: 5, kind: input, shape index: {}]
  %s6 = inlined_call_operand.vmem [shape: f32[1,128], index: 6, kind: input, shape index: {}]
  %s7 = inlined_call_operand.vmem [shape: bf16[16,128], index: 7, kind: output, shape index: {}]
  %s8 = sld [smem:[#allocation0]]
  $region38: #{translation_transformer_forward.23} parent=0
    _
  %s10 = ssub.s32 1, %s8
  %s11 = scalar_select 0, %s10, %s8
  // Predicated region
  $region2: #{translation_transformer_forward.23} parent=0 // pred_check
    _
  $region3: #{translation_transformer_forward.23} parent=0 // pred_check_branch
    %13 = sbr.rel (0) target = $region5
  $region4: #{translation_transformer_forward.23} parent=0 // pred_region
    _
  $region5: #{translation_transformer_forward.23} parent=0 // pred_fallthru
    _
  // Predicated region
  $region6: #{translation_transformer_forward.23} parent=0 // pred_check
    _
  $region7: #{translation_transformer_forward.23} parent=0 // pred_check_branch
    %15 = sbr.rel (0) target = $region9
  $region8: #{translation_transformer_forward.23} parent=0 // pred_region
    _
  $region9: #{translation_transformer_forward.23} parent=0 // pred_fallthru
    _
  // Predicated region
  $region10: #{translation_transformer_forward.23} parent=0 // pred_check
    _
  $region11: #{translation_transformer_forward.23} parent=0 // pred_check_branch
    %17 = sbr.rel (0) target = $region13
  $region12: #{translation_transformer_forward.23} parent=0 // pred_region
    _
  $region13: #{translation_transformer_forward.23} parent=0 // pred_fallthru
    _
  // Predicated region
  $region14: #{translation_transformer_forward.23} parent=0 // pred_check
    _
  $region15: #{translation_transformer_forward.23} parent=0 // pred_check_branch
    %19 = sbr.rel (0) target = $region17
  $region16: #{translation_transformer_forward.23} parent=0 // pred_region
    _
  $region17: #{translation_transformer_forward.23} parent=0 // pred_fallthru
    _
  // Predicated region
  $region18: #{translation_transformer_forward.23} parent=0 // pred_check
    _
  $region19: #{translation_transformer_forward.23} parent=0 // pred_check_branch
    %21 = sbr.rel (0) target = $region21
  $region20: #{translation_transformer_forward.23} parent=0 // pred_region
    _
  $region21: #{translation_transformer_forward.23} parent=0 // pred_fallthru
    _
  // Predicated region
  $region22: #{translation_transformer_forward.23} parent=0 // pred_check
    _
  $region23: #{translation_transformer_forward.23} parent=0 // pred_check_branch
    %23 = sbr.rel (0) target = $region25
  $region24: #{translation_transformer_forward.23} parent=0 // pred_region
    _
  $region25: #{translation_transformer_forward.23} parent=0 // pred_fallthru
    _
  // Predicated region
  $region26: #{translation_transformer_forward.23} parent=0 // pred_check
    _
  $region27: #{translation_transformer_forward.23} parent=0 // pred_check_branch
    %25 = sbr.rel (0) target = $region29
  $region28: #{translation_transformer_forward.23} parent=0 // pred_region
    _
  $region29: #{translation_transformer_forward.23} parent=0 // pred_fallthru
    _
  %v27 = vld [vmem:[%s0] sm:$0xf]
  %v28 = vld [vmem:[%s0 + $0x4] sm:$0xf]
  %v29 = vld [vmem:[%s1] sm:$0xff]
  %v30 = vld [vmem:[%s1 + $0x8] sm:$0xff]
  %v31 = vld [vmem:[%s1 + $0x10] sm:$0xff]
  %v32 = vld [vmem:[%s1 + $0x18] sm:$0xff]
  %v33 = vld [vmem:[%s1 + $0x20] sm:$0xff]
  %v34 = vld [vmem:[%s1 + $0x28] sm:$0xff]
  %v35 = vld [vmem:[%s1 + $0x30] sm:$0xff]
  %v36 = vld [vmem:[%s1 + $0x38] sm:$0xff]
  %v37 = vld [vmem:[%s1 + $0x40] sm:$0xff]
  %v38 = vld [vmem:[%s1 + $0x48] sm:$0xff]
  %v39 = vld [vmem:[%s1 + $0x50] sm:$0xff]
  %v40 = vld [vmem:[%s1 + $0x58] sm:$0xff]
  %v41 = vld [vmem:[%s1 + $0x60] sm:$0xff]
  %v42 = vld [vmem:[%s1 + $0x68] sm:$0xff]
  %v43 = vld [vmem:[%s1 + $0x70] sm:$0xff]
  %v44 = vld [vmem:[%s1 + $0x78] sm:$0xff]
  %v45 = vld [vmem:[%s2] sm:$0x3]
  %v47 = vlaneseq
  %v48 = vshrl.u32 %v47, 7
  %v49 = vsub.s32 0, %v48
  %v50 = vrot.slane %v45, %v49
  %v51 = vlaneseq
  %v52 = vshrl.u32 %v51, 7
  %v53 = vsub.s32 1, %v52
  %v54 = vrot.slane %v45, %v53
  %v59 = vunpack.c.l.b16 %v27
  %v60 = vunpack.c.l.b16 %v28
  %v61 = vpack.c.b16 %v60, %v59
  %v79 = vunpack.c.l.b16 %v29
  %v80 = vunpack.c.h.b16 %v29
  %v81 = vunpack.c.l.b16 %v30
  %v82 = vunpack.c.h.b16 %v30
  %v83 = vunpack.c.l.b16 %v31
  %v84 = vunpack.c.h.b16 %v31
  %v85 = vunpack.c.l.b16 %v32
  %v86 = vunpack.c.h.b16 %v32
  %v87 = vunpack.c.l.b16 %v33
  %v88 = vunpack.c.h.b16 %v33
  %v89 = vunpack.c.l.b16 %v34
  %v90 = vunpack.c.h.b16 %v34
  %v91 = vunpack.c.l.b16 %v35
  %v92 = vunpack.c.h.b16 %v35
  %v93 = vunpack.c.l.b16 %v36
  %v94 = vunpack.c.h.b16 %v36
  %v95 = vunpack.c.l.b16 %v37
  %v96 = vunpack.c.h.b16 %v37
  %v97 = vunpack.c.l.b16 %v38
  %v98 = vunpack.c.h.b16 %v38
  %v99 = vunpack.c.l.b16 %v39
  %v100 = vunpack.c.h.b16 %v39
  %v101 = vunpack.c.l.b16 %v40
  %v102 = vunpack.c.h.b16 %v40
  %v103 = vunpack.c.l.b16 %v41
  %v104 = vunpack.c.h.b16 %v41
  %v105 = vunpack.c.l.b16 %v42
  %v106 = vunpack.c.h.b16 %v42
  %v107 = vunpack.c.l.b16 %v43
  %v108 = vunpack.c.h.b16 %v43
  %v109 = vunpack.c.l.b16 %v44
  %v110 = vunpack.c.h.b16 %v44
  %v111 = vpack.c.b16 %v81, %v79
  %v112 = vpack.c.b16 %v82, %v80
  %v113 = vpack.c.b16 %v85, %v83
  %v114 = vpack.c.b16 %v86, %v84
  %v115 = vpack.c.b16 %v89, %v87
  %v116 = vpack.c.b16 %v90, %v88
  %v117 = vpack.c.b16 %v93, %v91
  %v118 = vpack.c.b16 %v94, %v92
  %v119 = vpack.c.b16 %v97, %v95
  %v120 = vpack.c.b16 %v98, %v96
  %v121 = vpack.c.b16 %v101, %v99
  %v122 = vpack.c.b16 %v102, %v100
  %v123 = vpack.c.b16 %v105, %v103
  %v124 = vpack.c.b16 %v106, %v104
  %v125 = vpack.c.b16 %v109, %v107
  %v126 = vpack.c.b16 %v110, %v108
  %143 = vmatprep.subr.bf16.mxu0 %v112
  %144 = vmatpush1.bf16.msra.mxu0 %v111
  %145 = vmatprep.subr.bf16.mxu0 %v114
  %146 = vmatpush1.bf16.msra.mxu0 %v113
  %147 = vmatprep.subr.bf16.mxu0 %v116
  %148 = vmatpush1.bf16.msra.mxu0 %v115
  %149 = vmatprep.subr.bf16.mxu0 %v118
  %150 = vmatpush1.bf16.msra.mxu0 %v117
  %151 = vmatprep.subr.bf16.mxu0 %v120
  %152 = vmatpush1.bf16.msra.mxu0 %v119
  %153 = vmatprep.subr.bf16.mxu0 %v122
  %154 = vmatpush1.bf16.msra.mxu0 %v121
  %155 = vmatprep.subr.bf16.mxu0 %v124
  %156 = vmatpush1.bf16.msra.mxu0 %v123
  %157 = vmatprep.subr.bf16.mxu0 %v126
  %158 = vmatpush1.bf16.msra.mxu0 %v125
  %159 = vmatprep.subr.bf16.mxu0 0
  %160 = vmatpush1.bf16.msra.mxu0 0
  %161 = vmatprep.subr.bf16.mxu0 0
  %162 = vmatpush1.bf16.msra.mxu0 0
  %163 = vmatprep.subr.bf16.mxu0 0
  %164 = vmatpush1.bf16.msra.mxu0 0
  %165 = vmatprep.subr.bf16.mxu0 0
  %166 = vmatpush1.bf16.msra.mxu0 0
  %167 = vmatprep.subr.bf16.mxu0 0
  %168 = vmatpush1.bf16.msra.mxu0 0
  %169 = vmatprep.subr.bf16.mxu0 0
  %170 = vmatpush1.bf16.msra.mxu0 0
  %171 = vmatprep.subr.bf16.mxu0 0
  %172 = vmatpush1.bf16.msra.mxu0 0
  %173 = vmatprep.subr.bf16.mxu0 0
  %174 = vmatpush1.bf16.msra.mxu0 0
  %175 = vmatprep.mubr.bf16.mxu0 0
  %176 = vmatmul.mubr.bf16.gmra.mrb[0].mxu0 %v61
  %v177 = vpop.f32.mrb[0].mxu0
  %v178 = vadd.f32 %v50, %v177
  %v179 = vpop.f32.mrb[0].mxu0
  %v180 = vadd.f32 %v54, %v179
  %v181 = vpop.f32.mrb[0].mxu0
  %v182 = vadd.f32 %v50, %v181
  %v183 = vpop.f32.mrb[0].mxu0
  %v184 = vadd.f32 %v54, %v183
  %185 = vdwg.mxu0
  %v186 = vmax.f32 %v178, 0.0
  %v187 = vmax.f32 %v180, 0.0
  %v188 = vmax.f32 %v182, 0.0
  %v189 = vmax.f32 %v184, 0.0
  %v190 = vpack.c.bf16 %v188, %v186
  %v191 = vpack.c.bf16 %v189, %v187
  %v192 = vld [vmem:[%s3] sm:$0xf]
  %v193 = vld [vmem:[%s3 + $0x4] sm:$0xf]
  %v194 = vld [vmem:[%s3 + $0x8] sm:$0xf]
  %v195 = vld [vmem:[%s3 + $0xc] sm:$0xf]
  %v196 = vld [vmem:[%s3 + $0x10] sm:$0xf]
  %v197 = vld [vmem:[%s3 + $0x14] sm:$0xf]
  %v198 = vld [vmem:[%s3 + $0x18] sm:$0xf]
  %v199 = vld [vmem:[%s3 + $0x1c] sm:$0xf]
  %v200 = vld [vmem:[%s3 + $0x20] sm:$0xf]
  %v201 = vld [vmem:[%s3 + $0x24] sm:$0xf]
  %v202 = vld [vmem:[%s3 + $0x28] sm:$0xf]
  %v203 = vld [vmem:[%s3 + $0x2c] sm:$0xf]
  %v204 = vld [vmem:[%s3 + $0x30] sm:$0xf]
  %v205 = vld [vmem:[%s3 + $0x34] sm:$0xf]
  %v206 = vld [vmem:[%s3 + $0x38] sm:$0xf]
  %v207 = vld [vmem:[%s3 + $0x3c] sm:$0xf]
  %v208 = vld [vmem:[%s3 + $0x40] sm:$0xf]
  %v209 = vld [vmem:[%s3 + $0x44] sm:$0xf]
  %v210 = vld [vmem:[%s3 + $0x48] sm:$0xf]
  %v211 = vld [vmem:[%s3 + $0x4c] sm:$0xf]
  %v212 = vld [vmem:[%s3 + $0x50] sm:$0xf]
  %v213 = vld [vmem:[%s3 + $0x54] sm:$0xf]
  %v214 = vld [vmem:[%s3 + $0x58] sm:$0xf]
  %v215 = vld [vmem:[%s3 + $0x5c] sm:$0xf]
  %v216 = vld [vmem:[%s3 + $0x60] sm:$0xf]
  %v217 = vld [vmem:[%s3 + $0x64] sm:$0xf]
  %v218 = vld [vmem:[%s3 + $0x68] sm:$0xf]
  %v219 = vld [vmem:[%s3 + $0x6c] sm:$0xf]
  %v220 = vld [vmem:[%s3 + $0x70] sm:$0xf]
  %v221 = vld [vmem:[%s3 + $0x74] sm:$0xf]
  %v222 = vld [vmem:[%s3 + $0x78] sm:$0xf]
  %v223 = vld [vmem:[%s3 + $0x7c] sm:$0xf]
  %v224 = vld [vmem:[%s4] sm:$0x1]
  %v226 = vlaneseq
  %v227 = vshrl.u32 %v226, 7
  %v228 = vsub.s32 0, %v227
  %v229 = vrot.slane %v224, %v228
  %v263 = vunpack.c.l.b16 %v192
  %v264 = vunpack.c.l.b16 %v193
  %v265 = vunpack.c.l.b16 %v194
  %v266 = vunpack.c.l.b16 %v195
  %v267 = vunpack.c.l.b16 %v196
  %v268 = vunpack.c.l.b16 %v197
  %v269 = vunpack.c.l.b16 %v198
  %v270 = vunpack.c.l.b16 %v199
  %v271 = vunpack.c.l.b16 %v200
  %v272 = vunpack.c.l.b16 %v201
  %v273 = vunpack.c.l.b16 %v202
  %v274 = vunpack.c.l.b16 %v203
  %v275 = vunpack.c.l.b16 %v204
  %v276 = vunpack.c.l.b16 %v205
  %v277 = vunpack.c.l.b16 %v206
  %v278 = vunpack.c.l.b16 %v207
  %v279 = vunpack.c.l.b16 %v208
  %v280 = vunpack.c.l.b16 %v209
  %v281 = vunpack.c.l.b16 %v210
  %v282 = vunpack.c.l.b16 %v211
  %v283 = vunpack.c.l.b16 %v212
  %v284 = vunpack.c.l.b16 %v213
  %v285 = vunpack.c.l.b16 %v214
  %v286 = vunpack.c.l.b16 %v215
  %v287 = vunpack.c.l.b16 %v216
  %v288 = vunpack.c.l.b16 %v217
  %v289 = vunpack.c.l.b16 %v218
  %v290 = vunpack.c.l.b16 %v219
  %v291 = vunpack.c.l.b16 %v220
  %v292 = vunpack.c.l.b16 %v221
  %v293 = vunpack.c.l.b16 %v222
  %v294 = vunpack.c.l.b16 %v223
  %v295 = vpack.c.b16 %v264, %v263
  %v296 = vpack.c.b16 %v266, %v265
  %v297 = vpack.c.b16 %v268, %v267
  %v298 = vpack.c.b16 %v270, %v269
  %v299 = vpack.c.b16 %v272, %v271
  %v300 = vpack.c.b16 %v274, %v273
  %v301 = vpack.c.b16 %v276, %v275
  %v302 = vpack.c.b16 %v278, %v277
  %v303 = vpack.c.b16 %v280, %v279
  %v304 = vpack.c.b16 %v282, %v281
  %v305 = vpack.c.b16 %v284, %v283
  %v306 = vpack.c.b16 %v286, %v285
  %v307 = vpack.c.b16 %v288, %v287
  %v308 = vpack.c.b16 %v290, %v289
  %v309 = vpack.c.b16 %v292, %v291
  %v310 = vpack.c.b16 %v294, %v293
  %327 = vmatprep.subr.bf16.mxu0 0
  %328 = vmatpush1.bf16.msra.mxu0 %v295
  %329 = vmatprep.subr.bf16.mxu0 0
  %330 = vmatpush1.bf16.msra.mxu0 %v296
  %331 = vmatprep.subr.bf16.mxu0 0
  %332 = vmatpush1.bf16.msra.mxu0 %v297
  %333 = vmatprep.subr.bf16.mxu0 0
  %334 = vmatpush1.bf16.msra.mxu0 %v298
  %335 = vmatprep.subr.bf16.mxu0 0
  %336 = vmatpush1.bf16.msra.mxu0 %v299
  %337 = vmatprep.subr.bf16.mxu0 0
  %338 = vmatpush1.bf16.msra.mxu0 %v300
  %339 = vmatprep.subr.bf16.mxu0 0
  %340 = vmatpush1.bf16.msra.mxu0 %v301
  %341 = vmatprep.subr.bf16.mxu0 0
  %342 = vmatpush1.bf16.msra.mxu0 %v302
  %343 = vmatprep.subr.bf16.mxu0 0
  %344 = vmatpush1.bf16.msra.mxu0 %v303
  %345 = vmatprep.subr.bf16.mxu0 0
  %346 = vmatpush1.bf16.msra.mxu0 %v304
  %347 = vmatprep.subr.bf16.mxu0 0
  %348 = vmatpush1.bf16.msra.mxu0 %v305
  %349 = vmatprep.subr.bf16.mxu0 0
  %350 = vmatpush1.bf16.msra.mxu0 %v306
  %351 = vmatprep.subr.bf16.mxu0 0
  %352 = vmatpush1.bf16.msra.mxu0 %v307
  %353 = vmatprep.subr.bf16.mxu0 0
  %354 = vmatpush1.bf16.msra.mxu0 %v308
  %355 = vmatprep.subr.bf16.mxu0 0
  %356 = vmatpush1.bf16.msra.mxu0 %v309
  %357 = vmatprep.subr.bf16.mxu0 0
  %358 = vmatpush1.bf16.msra.mxu0 %v310
  %359 = vmatprep.mubr.bf16.mxu0 %v191
  %360 = vmatmul.mubr.bf16.gmra.mrb[0].mxu0 %v190
  %v361 = vpop.f32.mrb[0].mxu0
  %v362 = vadd.f32 %v229, %v361
  %v363 = vpop.f32.mrb[0].mxu0
  %v364 = vpop.f32.mrb[0].mxu0
  %v365 = vadd.f32 %v229, %v364
  %v366 = vpop.f32.mrb[0].mxu0
  %367 = vdwg.mxu0
  %v368 = vunpack.c.l.bf16 %v27
  %v369 = vunpack.c.l.bf16 %v28
  %v370 = vadd.f32 %v368, %v362
  %v371 = vadd.f32 %v369, %v365
  %372 = vadd.xlane.f32.xlu0 %v370
  %v373 = vpop.xlane.xlu0 %372
  %374 = vadd.xlane.f32.xlu0 %v371
  %v375 = vpop.xlane.xlu0 %374
  %v376 = vrcp.pop 128.0
  %v377 = vmul.f32 %v373, %v376
  %v378 = vmul.f32 %v375, %v376
  %v379 = vsub.f32 %v370, %v377
  %v380 = vsub.f32 %v371, %v378
  %v381 = vmul.f32 %v379, %v379
  %v382 = vmul.f32 %v380, %v380
  %383 = vadd.xlane.f32.xlu0 %v381
  %v384 = vpop.xlane.xlu0 %383
  %385 = vadd.xlane.f32.xlu0 %v382
  %v386 = vpop.xlane.xlu0 %385
  %v387 = vmul.f32 %v384, %v376
  %v388 = vmul.f32 %v386, %v376
  %v389 = vadd.f32 %v387, 1e-05
  %v390 = vadd.f32 %v388, 1e-05
  %v391 = vrsqrt.pop %v389
  %v392 = vrsqrt.pop %v390
  %v393 = vmul.f32 %v379, %v391
  %v394 = vmul.f32 %v380, %v392
  %v395 = vld [vmem:[%s5] sm:$0x1]
  %v397 = vlaneseq
  %v398 = vshrl.u32 %v397, 7
  %v399 = vsub.s32 0, %v398
  %v400 = vrot.slane %v395, %v399
  %v402 = vmul.f32 %v393, %v400
  %v403 = vmul.f32 %v394, %v400
  %v404 = vld [vmem:[%s6] sm:$0x1]
  %v406 = vlaneseq
  %v407 = vshrl.u32 %v406, 7
  %v408 = vsub.s32 0, %v407
  %v409 = vrot.slane %v404, %v408
  %v411 = vadd.f32 %v402, %v409
  %v412 = vadd.f32 %v403, %v409
  %v413 = vpack.c.bf16 %v412, %v411
  %v415 = vunpack.c.l.b16 %v413
  %v416 = vunpack.c.h.b16 %v413
  %v417 = vpack.c.b16 %v415, %v415
  %v418 = vpack.c.b16 %v416, %v416
  %421 = vst [vmem:[%s7] sm:$0xf] %v417
  %422 = vst [vmem:[%s7 + $0x4] sm:$0xf] %v418
  // Predicated region
  $region30: #{translation_transformer_forward.23} parent=0 // pred_check
    _
  $region31: #{translation_transformer_forward.23} parent=0 // pred_check_branch
    %424 = sbr.rel (0) target = $region33
  $region32: #{translation_transformer_forward.23} parent=0 // pred_region
    _
  $region33: #{translation_transformer_forward.23} parent=0 // pred_fallthru
    _
  // Predicated region
  $region34: #{translation_transformer_forward.23} parent=0 // pred_check
    _
  $region35: #{translation_transformer_forward.23} parent=0 // pred_check_branch
    %426 = sbr.rel (0) target = $region37
  $region36: #{translation_transformer_forward.23} parent=0 // pred_region
    _
  $region37: #{translation_transformer_forward.23} parent=0 // pred_fallthru
    _

// kernel: translation_transformer_forward.27
$region0: #{translation_transformer_forward.27}
  #allocation0 [shape = 'u32[]', space=smem, size = 0x4, offset = 0x4, fixed_abs, tag = 'smem constant byte address 0x4 - core index']
  #allocation1 [shape = 'u32[144,128]{1,0:T(1,128)}', space=vmem, size = 0x12000, scoped, tag = 'internal scratch']
  %s0 = inlined_call_operand.vmem [shape: bf16[16,128], index: 0, kind: input, shape index: {}]
  %s1 = inlined_call_operand.vmem [shape: f32[1,128], index: 1, kind: input, shape index: {}]
  %s2 = inlined_call_operand.vmem [shape: f32[1,128], index: 2, kind: input, shape index: {}]
  %s3 = inlined_call_operand.vmem [shape: bf16[16,128], index: 3, kind: output, shape index: {}]
  %s4 = sld [smem:[#allocation0]]
  $region22: #{translation_transformer_forward.27} parent=0
    _
  %s6 = ssub.s32 1, %s4
  %s7 = scalar_select 0, %s6, %s4
  // Predicated region
  $region2: #{translation_transformer_forward.27} parent=0 // pred_check
    _
  $region3: #{translation_transformer_forward.27} parent=0 // pred_check_branch
    %9 = sbr.rel (0) target = $region5
  $region4: #{translation_transformer_forward.27} parent=0 // pred_region
    _
  $region5: #{translation_transformer_forward.27} parent=0 // pred_fallthru
    _
  // Predicated region
  $region6: #{translation_transformer_forward.27} parent=0 // pred_check
    _
  $region7: #{translation_transformer_forward.27} parent=0 // pred_check_branch
    %11 = sbr.rel (0) target = $region9
  $region8: #{translation_transformer_forward.27} parent=0 // pred_region
    _
  $region9: #{translation_transformer_forward.27} parent=0 // pred_fallthru
    _
  // Predicated region
  $region10: #{translation_transformer_forward.27} parent=0 // pred_check
    _
  $region11: #{translation_transformer_forward.27} parent=0 // pred_check_branch
    %13 = sbr.rel (0) target = $region13
  $region12: #{translation_transformer_forward.27} parent=0 // pred_region
    _
  $region13: #{translation_transformer_forward.27} parent=0 // pred_fallthru
    _
  %v14 = vld [vmem:[%s0] sm:$0xf]
  %v15 = vld [vmem:[%s0 + $0x4] sm:$0xf]
  %v16 = vunpack.c.l.bf16 %v14
  %v17 = vunpack.c.l.bf16 %v15
  %18 = vadd.xlane.f32.xlu0 %v16
  %v19 = vpop.xlane.xlu0 %18
  %20 = vadd.xlane.f32.xlu0 %v17
  %v21 = vpop.xlane.xlu0 %20
  %v22 = vrcp.pop 128.0
  %v23 = vmul.f32 %v19, %v22
  %v24 = vmul.f32 %v21, %v22
  %v25 = vsub.f32 %v16, %v23
  %v26 = vsub.f32 %v17, %v24
  %v27 = vmul.f32 %v25, %v25
  %v28 = vmul.f32 %v26, %v26
  %29 = vadd.xlane.f32.xlu0 %v27
  %v30 = vpop.xlane.xlu0 %29
  %31 = vadd.xlane.f32.xlu0 %v28
  %v32 = vpop.xlane.xlu0 %31
  %v33 = vmul.f32 %v30, %v22
  %v34 = vmul.f32 %v32, %v22
  %v35 = vadd.f32 %v33, 1e-05
  %v36 = vadd.f32 %v34, 1e-05
  %v37 = vrsqrt.pop %v35
  %v38 = vrsqrt.pop %v36
  %v39 = vmul.f32 %v25, %v37
  %v40 = vmul.f32 %v26, %v38
  %v41 = vld [vmem:[%s1] sm:$0x1]
  %v43 = vlaneseq
  %v44 = vshrl.u32 %v43, 7
  %v45 = vsub.s32 0, %v44
  %v46 = vrot.slane %v41, %v45
  %v48 = vmul.f32 %v39, %v46
  %v49 = vmul.f32 %v40, %v46
  %v50 = vld [vmem:[%s2] sm:$0x1]
  %v52 = vlaneseq
  %v53 = vshrl.u32 %v52, 7
  %v54 = vsub.s32 0, %v53
  %v55 = vrot.slane %v50, %v54
  %v57 = vadd.f32 %v48, %v55
  %v58 = vadd.f32 %v49, %v55
  %v59 = vpack.c.bf16 %v58, %v57
  %v61 = vunpack.c.l.b16 %v59
  %v62 = vunpack.c.h.b16 %v59
  %v63 = vpack.c.b16 %v61, %v61
  %v64 = vpack.c.b16 %v62, %v62
  %67 = vst [vmem:[%s3] sm:$0xf] %v63
  %68 = vst [vmem:[%s3 + $0x4] sm:$0xf] %v64
  // Predicated region
  $region14: #{translation_transformer_forward.27} parent=0 // pred_check
    _
  $region15: #{translation_transformer_forward.27} parent=0 // pred_check_branch
    %70 = sbr.rel (0) target = $region17
  $region16: #{translation_transformer_forward.27} parent=0 // pred_region
    _
  $region17: #{translation_transformer_forward.27} parent=0 // pred_fallthru
    _
  // Predicated region
  $region18: #{translation_transformer_forward.27} parent=0 // pred_check
    _
  $region19: #{translation_transformer_forward.27} parent=0 // pred_check_branch
    %72 = sbr.rel (0) target = $region21
  $region20: #{translation_transformer_forward.27} parent=0 // pred_region
    _
  $region21: #{translation_transformer_forward.27} parent=0 // pred_fallthru
    _

// kernel: translation_transformer_forward.31
$region0: #{translation_transformer_forward.31}
  #allocation0 [shape = 'u32[]', space=smem, size = 0x4, offset = 0x4, fixed_abs, tag = 'smem constant byte address 0x4 - core index']
  #allocation1 [shape = 'u32[144,128]{1,0:T(1,128)}', space=vmem, size = 0x12000, scoped, tag = 'internal scratch']
  %s0 = inlined_call_operand.vmem [shape: bf16[16,128], index: 0, kind: input, shape index: {}]
  %s1 = inlined_call_operand.vmem [shape: bf16[128,256], index: 1, kind: input, shape index: {}]
  %s2 = inlined_call_operand.vmem [shape: f32[1,256], index: 2, kind: input, shape index: {}]
  %s3 = inlined_call_operand.vmem [shape: bf16[16,256], index: 3, kind: output, shape index: {}]
  %s4 = sld [smem:[#allocation0]]
  $region22: #{translation_transformer_forward.31} parent=0
    _
  %s6 = ssub.s32 1, %s4
  %s7 = scalar_select 0, %s6, %s4
  // Predicated region
  $region2: #{translation_transformer_forward.31} parent=0 // pred_check
    _
  $region3: #{translation_transformer_forward.31} parent=0 // pred_check_branch
    %9 = sbr.rel (0) target = $region5
  $region4: #{translation_transformer_forward.31} parent=0 // pred_region
    _
  $region5: #{translation_transformer_forward.31} parent=0 // pred_fallthru
    _
  // Predicated region
  $region6: #{translation_transformer_forward.31} parent=0 // pred_check
    _
  $region7: #{translation_transformer_forward.31} parent=0 // pred_check_branch
    %11 = sbr.rel (0) target = $region9
  $region8: #{translation_transformer_forward.31} parent=0 // pred_region
    _
  $region9: #{translation_transformer_forward.31} parent=0 // pred_fallthru
    _
  // Predicated region
  $region10: #{translation_transformer_forward.31} parent=0 // pred_check
    _
  $region11: #{translation_transformer_forward.31} parent=0 // pred_check_branch
    %13 = sbr.rel (0) target = $region13
  $region12: #{translation_transformer_forward.31} parent=0 // pred_region
    _
  $region13: #{translation_transformer_forward.31} parent=0 // pred_fallthru
    _
  %v15 = vld [vmem:[%s0] sm:$0xf]
  %v16 = vld [vmem:[%s0 + $0x4] sm:$0xf]
  %v17 = vld [vmem:[%s1] sm:$0xff]
  %v18 = vld [vmem:[%s1 + $0x8] sm:$0xff]
  %v19 = vld [vmem:[%s1 + $0x10] sm:$0xff]
  %v20 = vld [vmem:[%s1 + $0x18] sm:$0xff]
  %v21 = vld [vmem:[%s1 + $0x20] sm:$0xff]
  %v22 = vld [vmem:[%s1 + $0x28] sm:$0xff]
  %v23 = vld [vmem:[%s1 + $0x30] sm:$0xff]
  %v24 = vld [vmem:[%s1 + $0x38] sm:$0xff]
  %v25 = vld [vmem:[%s1 + $0x40] sm:$0xff]
  %v26 = vld [vmem:[%s1 + $0x48] sm:$0xff]
  %v27 = vld [vmem:[%s1 + $0x50] sm:$0xff]
  %v28 = vld [vmem:[%s1 + $0x58] sm:$0xff]
  %v29 = vld [vmem:[%s1 + $0x60] sm:$0xff]
  %v30 = vld [vmem:[%s1 + $0x68] sm:$0xff]
  %v31 = vld [vmem:[%s1 + $0x70] sm:$0xff]
  %v32 = vld [vmem:[%s1 + $0x78] sm:$0xff]
  %v33 = vld [vmem:[%s2] sm:$0x3]
  %v35 = vlaneseq
  %v36 = vshrl.u32 %v35, 7
  %v37 = vsub.s32 0, %v36
  %v38 = vrot.slane %v33, %v37
  %v39 = vlaneseq
  %v40 = vshrl.u32 %v39, 7
  %v41 = vsub.s32 1, %v40
  %v42 = vrot.slane %v33, %v41
  %v47 = vunpack.c.l.b16 %v15
  %v48 = vunpack.c.l.b16 %v16
  %v49 = vpack.c.b16 %v48, %v47
  %v67 = vunpack.c.l.b16 %v17
  %v68 = vunpack.c.h.b16 %v17
  %v69 = vunpack.c.l.b16 %v18
  %v70 = vunpack.c.h.b16 %v18
  %v71 = vunpack.c.l.b16 %v19
  %v72 = vunpack.c.h.b16 %v19
  %v73 = vunpack.c.l.b16 %v20
  %v74 = vunpack.c.h.b16 %v20
  %v75 = vunpack.c.l.b16 %v21
  %v76 = vunpack.c.h.b16 %v21
  %v77 = vunpack.c.l.b16 %v22
  %v78 = vunpack.c.h.b16 %v22
  %v79 = vunpack.c.l.b16 %v23
  %v80 = vunpack.c.h.b16 %v23
  %v81 = vunpack.c.l.b16 %v24
  %v82 = vunpack.c.h.b16 %v24
  %v83 = vunpack.c.l.b16 %v25
  %v84 = vunpack.c.h.b16 %v25
  %v85 = vunpack.c.l.b16 %v26
  %v86 = vunpack.c.h.b16 %v26
  %v87 = vunpack.c.l.b16 %v27
  %v88 = vunpack.c.h.b16 %v27
  %v89 = vunpack.c.l.b16 %v28
  %v90 = vunpack.c.h.b16 %v28
  %v91 = vunpack.c.l.b16 %v29
  %v92 = vunpack.c.h.b16 %v29
  %v93 = vunpack.c.l.b16 %v30
  %v94 = vunpack.c.h.b16 %v30
  %v95 = vunpack.c.l.b16 %v31
  %v96 = vunpack.c.h.b16 %v31
  %v97 = vunpack.c.l.b16 %v32
  %v98 = vunpack.c.h.b16 %v32
  %v99 = vpack.c.b16 %v69, %v67
  %v100 = vpack.c.b16 %v70, %v68
  %v101 = vpack.c.b16 %v73, %v71
  %v102 = vpack.c.b16 %v74, %v72
  %v103 = vpack.c.b16 %v77, %v75
  %v104 = vpack.c.b16 %v78, %v76
  %v105 = vpack.c.b16 %v81, %v79
  %v106 = vpack.c.b16 %v82, %v80
  %v107 = vpack.c.b16 %v85, %v83
  %v108 = vpack.c.b16 %v86, %v84
  %v109 = vpack.c.b16 %v89, %v87
  %v110 = vpack.c.b16 %v90, %v88
  %v111 = vpack.c.b16 %v93, %v91
  %v112 = vpack.c.b16 %v94, %v92
  %v113 = vpack.c.b16 %v97, %v95
  %v114 = vpack.c.b16 %v98, %v96
  %131 = vmatprep.subr.bf16.mxu0 %v100
  %132 = vmatpush1.bf16.msra.mxu0 %v99
  %133 = vmatprep.subr.bf16.mxu0 %v102
  %134 = vmatpush1.bf16.msra.mxu0 %v101
  %135 = vmatprep.subr.bf16.mxu0 %v104
  %136 = vmatpush1.bf16.msra.mxu0 %v103
  %137 = vmatprep.subr.bf16.mxu0 %v106
  %138 = vmatpush1.bf16.msra.mxu0 %v105
  %139 = vmatprep.subr.bf16.mxu0 %v108
  %140 = vmatpush1.bf16.msra.mxu0 %v107
  %141 = vmatprep.subr.bf16.mxu0 %v110
  %142 = vmatpush1.bf16.msra.mxu0 %v109
  %143 = vmatprep.subr.bf16.mxu0 %v112
  %144 = vmatpush1.bf16.msra.mxu0 %v111
  %145 = vmatprep.subr.bf16.mxu0 %v114
  %146 = vmatpush1.bf16.msra.mxu0 %v113
  %147 = vmatprep.subr.bf16.mxu0 0
  %148 = vmatpush1.bf16.msra.mxu0 0
  %149 = vmatprep.subr.bf16.mxu0 0
  %150 = vmatpush1.bf16.msra.mxu0 0
  %151 = vmatprep.subr.bf16.mxu0 0
  %152 = vmatpush1.bf16.msra.mxu0 0
  %153 = vmatprep.subr.bf16.mxu0 0
  %154 = vmatpush1.bf16.msra.mxu0 0
  %155 = vmatprep.subr.bf16.mxu0 0
  %156 = vmatpush1.bf16.msra.mxu0 0
  %157 = vmatprep.subr.bf16.mxu0 0
  %158 = vmatpush1.bf16.msra.mxu0 0
  %159 = vmatprep.subr.bf16.mxu0 0
  %160 = vmatpush1.bf16.msra.mxu0 0
  %161 = vmatprep.subr.bf16.mxu0 0
  %162 = vmatpush1.bf16.msra.mxu0 0
  %163 = vmatprep.mubr.bf16.mxu0 0
  %164 = vmatmul.mubr.bf16.gmra.mrb[0].mxu0 %v49
  %v165 = vpop.f32.mrb[0].mxu0
  %v166 = vadd.f32 %v38, %v165
  %v167 = vpop.f32.mrb[0].mxu0
  %v168 = vadd.f32 %v42, %v167
  %v169 = vpop.f32.mrb[0].mxu0
  %v170 = vadd.f32 %v38, %v169
  %v171 = vpop.f32.mrb[0].mxu0
  %v172 = vadd.f32 %v42, %v171
  %173 = vdwg.mxu0
  %v174 = vpack.c.bf16 %v170, %v166
  %v175 = vpack.c.bf16 %v172, %v168
  %v178 = vunpack.c.l.b16 %v174
  %v179 = vunpack.c.l.b16 %v175
  %v180 = vunpack.c.h.b16 %v174
  %v181 = vunpack.c.h.b16 %v175
  %v182 = vpack.c.b16 %v179, %v178
  %v183 = vpack.c.b16 %v181, %v180
  %186 = vst [vmem:[%s3] sm:$0xff] %v182
  %187 = vst [vmem:[%s3 + $0x8] sm:$0xff] %v183
  // Predicated region
  $region14: #{translation_transformer_forward.31} parent=0 // pred_check
    _
  $region15: #{translation_transformer_forward.31} parent=0 // pred_check_branch
    %189 = sbr.rel (0) target = $region17
  $region16: #{translation_transformer_forward.31} parent=0 // pred_region
    _
  $region17: #{translation_transformer_forward.31} parent=0 // pred_fallthru
    _
  // Predicated region
  $region18: #{translation_transformer_forward.31} parent=0 // pred_check
    _
  $region19: #{translation_transformer_forward.31} parent=0 // pred_check_branch
    %191 = sbr.rel (0) target = $region21
  $region20: #{translation_transformer_forward.31} parent=0 // pred_region
    _
  $region21: #{translation_transformer_forward.31} parent=0 // pred_fallthru
    _

// kernel: translation_transformer_forward.41
$region0: #{translation_transformer_forward.41}
  #allocation0 [shape = 'u32[]', space=smem, size = 0x4, offset = 0x4, fixed_abs, tag = 'smem constant byte address 0x4 - core index']
  #allocation1 [shape = 'u32[144,128]{1,0:T(1,128)}', space=vmem, size = 0x12000, scoped, tag = 'internal scratch']
  %s0 = inlined_call_operand.vmem [shape: bf16[16,128], index: 0, kind: input, shape index: {}]
  %s1 = inlined_call_operand.vmem [shape: bf16[128,256], index: 1, kind: input, shape index: {}]
  %s2 = inlined_call_operand.vmem [shape: f32[1,256], index: 2, kind: input, shape index: {}]
  %s3 = inlined_call_operand.hbm [shape: f32[16,256], index: 3, kind: output, shape index: {}]
  %s4 = sld [smem:[#allocation0]]
  $region22: #{translation_transformer_forward.41} parent=0
    _
  %s6 = ssub.s32 1, %s4
  %s7 = scalar_select 0, %s6, %s4
  $region1: #{translation_transformer_forward.41} parent=0
    #allocation2 [shape = 'u8[16384]{0}', space=vmem, size = 0x4000, scoped, tag = 'output window, operand 0, single buffered']
    #allocation3 [shape = 's32[1]{0}', space=sflag, size = 0x4, scoped, tag = 'scoped memory for translation_transformer_forward.41']
    %8 = vsyncpa [#allocation3], 0
    // Predicated region
    $region2: #{translation_transformer_forward.41} parent=1 // pred_check
      _
    $region3: #{translation_transformer_forward.41} parent=1 // pred_check_branch
      %10 = sbr.rel (0) target = $region5
    $region4: #{translation_transformer_forward.41} parent=1 // pred_region
      _
    $region5: #{translation_transformer_forward.41} parent=1 // pred_fallthru
      _
    // Predicated region
    $region6: #{translation_transformer_forward.41} parent=1 // pred_check
      _
    $region7: #{translation_transformer_forward.41} parent=1 // pred_check_branch
      %12 = sbr.rel (0) target = $region9
    $region8: #{translation_transformer_forward.41} parent=1 // pred_region
      _
    $region9: #{translation_transformer_forward.41} parent=1 // pred_fallthru
      _
    // Predicated region
    $region10: #{translation_transformer_forward.41} parent=1 // pred_check
      _
    $region11: #{translation_transformer_forward.41} parent=1 // pred_check_branch
      %14 = sbr.rel (0) target = $region13
    $region12: #{translation_transformer_forward.41} parent=1 // pred_region
      _
    $region13: #{translation_transformer_forward.41} parent=1 // pred_fallthru
      _
    %v16 = vld [vmem:[%s0] sm:$0xf]
    %v17 = vld [vmem:[%s0 + $0x4] sm:$0xf]
    %v18 = vld [vmem:[%s1] sm:$0xff]
    %v19 = vld [vmem:[%s1 + $0x8] sm:$0xff]
    %v20 = vld [vmem:[%s1 + $0x10] sm:$0xff]
    %v21 = vld [vmem:[%s1 + $0x18] sm:$0xff]
    %v22 = vld [vmem:[%s1 + $0x20] sm:$0xff]
    %v23 = vld [vmem:[%s1 + $0x28] sm:$0xff]
    %v24 = vld [vmem:[%s1 + $0x30] sm:$0xff]
    %v25 = vld [vmem:[%s1 + $0x38] sm:$0xff]
    %v26 = vld [vmem:[%s1 + $0x40] sm:$0xff]
    %v27 = vld [vmem:[%s1 + $0x48] sm:$0xff]
    %v28 = vld [vmem:[%s1 + $0x50] sm:$0xff]
    %v29 = vld [vmem:[%s1 + $0x58] sm:$0xff]
    %v30 = vld [vmem:[%s1 + $0x60] sm:$0xff]
    %v31 = vld [vmem:[%s1 + $0x68] sm:$0xff]
    %v32 = vld [vmem:[%s1 + $0x70] sm:$0xff]
    %v33 = vld [vmem:[%s1 + $0x78] sm:$0xff]
    %v34 = vld [vmem:[%s2] sm:$0x3]
    %v36 = vlaneseq
    %v37 = vshrl.u32 %v36, 7
    %v38 = vsub.s32 0, %v37
    %v39 = vrot.slane %v34, %v38
    %v40 = vlaneseq
    %v41 = vshrl.u32 %v40, 7
    %v42 = vsub.s32 1, %v41
    %v43 = vrot.slane %v34, %v42
    %v48 = vunpack.c.l.b16 %v16
    %v49 = vunpack.c.l.b16 %v17
    %v50 = vpack.c.b16 %v49, %v48
    %v68 = vunpack.c.l.b16 %v18
    %v69 = vunpack.c.h.b16 %v18
    %v70 = vunpack.c.l.b16 %v19
    %v71 = vunpack.c.h.b16 %v19
    %v72 = vunpack.c.l.b16 %v20
    %v73 = vunpack.c.h.b16 %v20
    %v74 = vunpack.c.l.b16 %v21
    %v75 = vunpack.c.h.b16 %v21
    %v76 = vunpack.c.l.b16 %v22
    %v77 = vunpack.c.h.b16 %v22
    %v78 = vunpack.c.l.b16 %v23
    %v79 = vunpack.c.h.b16 %v23
    %v80 = vunpack.c.l.b16 %v24
    %v81 = vunpack.c.h.b16 %v24
    %v82 = vunpack.c.l.b16 %v25
    %v83 = vunpack.c.h.b16 %v25
    %v84 = vunpack.c.l.b16 %v26
    %v85 = vunpack.c.h.b16 %v26
    %v86 = vunpack.c.l.b16 %v27
    %v87 = vunpack.c.h.b16 %v27
    %v88 = vunpack.c.l.b16 %v28
    %v89 = vunpack.c.h.b16 %v28
    %v90 = vunpack.c.l.b16 %v29
    %v91 = vunpack.c.h.b16 %v29
    %v92 = vunpack.c.l.b16 %v30
    %v93 = vunpack.c.h.b16 %v30
    %v94 = vunpack.c.l.b16 %v31
    %v95 = vunpack.c.h.b16 %v31
    %v96 = vunpack.c.l.b16 %v32
    %v97 = vunpack.c.h.b16 %v32
    %v98 = vunpack.c.l.b16 %v33
    %v99 = vunpack.c.h.b16 %v33
    %v100 = vpack.c.b16 %v70, %v68
    %v101 = vpack.c.b16 %v71, %v69
    %v102 = vpack.c.b16 %v74, %v72
    %v103 = vpack.c.b16 %v75, %v73
    %v104 = vpack.c.b16 %v78, %v76
    %v105 = vpack.c.b16 %v79, %v77
    %v106 = vpack.c.b16 %v82, %v80
    %v107 = vpack.c.b16 %v83, %v81
    %v108 = vpack.c.b16 %v86, %v84
    %v109 = vpack.c.b16 %v87, %v85
    %v110 = vpack.c.b16 %v90, %v88
    %v111 = vpack.c.b16 %v91, %v89
    %v112 = vpack.c.b16 %v94, %v92
    %v113 = vpack.c.b16 %v95, %v93
    %v114 = vpack.c.b16 %v98, %v96
    %v115 = vpack.c.b16 %v99, %v97
    %132 = vmatprep.subr.bf16.mxu0 %v101
    %133 = vmatpush1.bf16.msra.mxu0 %v100
    %134 = vmatprep.subr.bf16.mxu0 %v103
    %135 = vmatpush1.bf16.msra.mxu0 %v102
    %136 = vmatprep.subr.bf16.mxu0 %v105
    %137 = vmatpush1.bf16.msra.mxu0 %v104
    %138 = vmatprep.subr.bf16.mxu0 %v107
    %139 = vmatpush1.bf16.msra.mxu0 %v106
    %140 = vmatprep.subr.bf16.mxu0 %v109
    %141 = vmatpush1.bf16.msra.mxu0 %v108
    %142 = vmatprep.subr.bf16.mxu0 %v111
    %143 = vmatpush1.bf16.msra.mxu0 %v110
    %144 = vmatprep.subr.bf16.mxu0 %v113
    %145 = vmatpush1.bf16.msra.mxu0 %v112
    %146 = vmatprep.subr.bf16.mxu0 %v115
    %147 = vmatpush1.bf16.msra.mxu0 %v114
    %148 = vmatprep.subr.bf16.mxu0 0
    %149 = vmatpush1.bf16.msra.mxu0 0
    %150 = vmatprep.subr.bf16.mxu0 0
    %151 = vmatpush1.bf16.msra.mxu0 0
    %152 = vmatprep.subr.bf16.mxu0 0
    %153 = vmatpush1.bf16.msra.mxu0 0
    %154 = vmatprep.subr.bf16.mxu0 0
    %155 = vmatpush1.bf16.msra.mxu0 0
    %156 = vmatprep.subr.bf16.mxu0 0
    %157 = vmatpush1.bf16.msra.mxu0 0
    %158 = vmatprep.subr.bf16.mxu0 0
    %159 = vmatpush1.bf16.msra.mxu0 0
    %160 = vmatprep.subr.bf16.mxu0 0
    %161 = vmatpush1.bf16.msra.mxu0 0
    %162 = vmatprep.subr.bf16.mxu0 0
    %163 = vmatpush1.bf16.msra.mxu0 0
    %164 = vmatprep.mubr.bf16.mxu0 0
    %165 = vmatmul.mubr.bf16.gmra.mrb[0].mxu0 %v50
    %v166 = vpop.f32.mrb[0].mxu0
    %v167 = vadd.f32 %v39, %v166
    %v168 = vpop.f32.mrb[0].mxu0
    %v169 = vadd.f32 %v43, %v168
    %v170 = vpop.f32.mrb[0].mxu0
    %v171 = vadd.f32 %v39, %v170
    %v172 = vpop.f32.mrb[0].mxu0
    %v173 = vadd.f32 %v43, %v172
    %174 = vdwg.mxu0
    %175 = vst [vmem:[#allocation2] sm:$0xff] %v167
    %176 = vst [vmem:[#allocation2 + $0x8] sm:$0xff] %v169
    %177 = vst [vmem:[#allocation2 + $0x10] sm:$0xff] %v171
    %178 = vst [vmem:[#allocation2 + $0x18] sm:$0xff] %v173
    // Predicated region
    $region14: #{translation_transformer_forward.41} parent=1 // pred_check
      _
    $region15: #{translation_transformer_forward.41} parent=1 // pred_check_branch
      %180 = sbr.rel (0) target = $region17
    $region16: #{translation_transformer_forward.41} parent=1 // pred_region
      %s182 = ssub.s32 512, 512
      %183 = vsyncadd [#allocation3], %s182
      %s184 = sshll.u32 [#allocation2], 4
      %s185 = int_to_ptr.vmem [resolvable:$true] %s184
      %190 = dma.vmem_to_hbm [thread:$0]  %s185, 512, %s3, [#allocation3], 256, 256, 16
    $region17: #{translation_transformer_forward.41} parent=1 // pred_fallthru
      _
    // Predicated region
    $region18: #{translation_transformer_forward.41} parent=1 // pred_check
      _
    $region19: #{translation_transformer_forward.41} parent=1 // pred_check_branch
      %192 = sbr.rel (0) target = $region21
    $region20: #{translation_transformer_forward.41} parent=1 // pred_region
      %193 = dma.done [#allocation3], 512
    $region21: #{translation_transformer_forward.41} parent=1 // pred_fallthru
      _
    %194 = vsyncpa [#allocation3], 1

// kernel: translation_transformer_forward.32
$region0: #{translation_transformer_forward.32}
  #allocation0 [shape = 'u32[]', space=smem, size = 0x4, offset = 0x4, fixed_abs, tag = 'smem constant byte address 0x4 - core index']
  #allocation1 [shape = 'u32[144,128]{1,0:T(1,128)}', space=vmem, size = 0x12000, scoped, tag = 'internal scratch']
  %s0 = inlined_call_operand.vmem [shape: bf16[2,8,128], index: 0, kind: input, shape index: {}]
  %s1 = inlined_call_operand.vmem [shape: bf16[2,8,256], index: 1, kind: input, shape index: {}, may-alias: {1,2}]
  %s2 = inlined_call_operand.vmem [shape: bf16[2,8,256], index: 2, kind: input, shape index: {}, may-alias: {1,2}]
  %s3 = inlined_call_operand.vmem [shape: bf16[2,8,128], index: 3, kind: input, shape index: {}]
  %s4 = inlined_call_operand.vmem [shape: bf16[128,128], index: 4, kind: input, shape index: {}]
  %s5 = inlined_call_operand.vmem [shape: f32[1,128], index: 5, kind: input, shape index: {}]
  %s6 = inlined_call_operand.vmem [shape: f32[1,128], index: 6, kind: input, shape index: {}]
  %s7 = inlined_call_operand.vmem [shape: f32[1,128], index: 7, kind: input, shape index: {}]
  %s8 = inlined_call_operand.vmem [shape: bf16[2,8,128], index: 8, kind: output, shape index: {}]
  %s9 = sld [smem:[#allocation0]]
  $region65: #{translation_transformer_forward.32} parent=0
    _
  %s11 = ssub.s32 1, %s9
  %s12 = scalar_select 0, %s11, %s9
  loop: start=0, step=1, limit=4
  $region2: #{translation_transformer_forward.32} parent=0 // loop_pre_header
    _
  $region3: #{translation_transformer_forward.32} parent=0 // loop_header
    %s14 = sphi 0, %s18
    %p15 = scmp.ge.s32.totalorder %s14, 4
    %s21 = sphi 0, %s33
    %s22 = sphi 0, %s29
    %s23 = sphi 0, %s21
    %s24 = sphi 0, %s22
    %s25 = sphi 0, %s23
    %s26 = sphi 0, %s24
    %s38 = sphi 0, %s40
    %s41 = sphi 0, %s38
    %s42 = sphi 0, %s41
    %s58 = sphi 0, %s42
    %s64 = sphi 0, %s66
    %s67 = sphi 0, %s64
    %s68 = sphi 0, %s67
    %s84 = sphi 0, %s68
    %s90 = sphi 0, %s92
    %s93 = sphi 0, %s90
    %s94 = sphi 0, %s93
    %s110 = sphi 0, %s94
    %s118 = sphi 0, %s120
    %s121 = sphi 0, %s118
    %s122 = sphi 0, %s121
    %s138 = sphi 0, %s122
    %s142 = sphi 0, %s142
    %s144 = sphi 0, %s142
    %s145 = sphi 0, %s144
    %s159 = sphi 0, %s145
    %s163 = sphi 0, %s163
    %s165 = sphi 0, %s163
    %s166 = sphi 0, %s165
    %s180 = sphi 0, %s166
    %s184 = sphi 0, %s184
    %s186 = sphi 0, %s184
    %s187 = sphi 0, %s186
    %s201 = sphi 0, %s187
    %s205 = sphi 0, %s205
    %s207 = sphi 0, %s205
    %s208 = sphi 0, %s207
    %s222 = sphi 0, %s208
    %s230 = sphi 0, %s232
    %s233 = sphi 0, %s230
    %s234 = sphi 0, %s233
    %s250 = sphi 0, %s234
  $region4: #{translation_transformer_forward.32} parent=0 // loop_header_branch
    %17 = sbr.rel (%p15) target = $region8
  $region5: #{translation_transformer_forward.32} parent=0 // loop_body
    %s19 = ssub.s32 %s14, 1
    %s20 = ssub.s32 %s14, 2
    %s27 = sadd.s32 1, %s22
    %p28 = scmp.ge.s32.totalorder %s27, 1
    %s29 = scalar_select %p28, 0, %s27
    %s30 = sadd.s32 1, %s21
    %s31 = scalar_select %p28, %s30, %s21
    %p32 = scmp.ge.s32.totalorder %s31, 2
    %s33 = scalar_select %p32, 0, %s31
    %s34 = ssub.s32 %s21, %s33
    %s35 = ssub.s32 %s22, %s29
    %s36 = sor.u32 %s34, %s35
    %p37 = scmp.eq.s32.totalorder %s36, 0
    %s39 = sadd.s32 %s38, 1
    %s40 = scalar_select %p37, %s38, %s39
    %p43 = pneg %p37
    %p44 = scmp.eq.s32.totalorder %s14, 1
    %p45 = por %p43, %p44
    %p46 = scmp.ne.s32.totalorder %s38, %s41
    %p47 = scmp.eq.s32.totalorder %s14, 0
    %p48 = por %p46, %p47
    %p49 = scmp.ne.s32.totalorder %s38, %s41
    %p50 = scmp.eq.s32.totalorder %s19, 1
    %p51 = por %p49, %p50
    %p52 = scmp.ne.s32.totalorder %s41, %s42
    %p53 = scmp.eq.s32.totalorder %s19, 0
    %p54 = por %p52, %p53
    %p55 = scmp.ne.s32.totalorder %s41, %s42
    %p56 = scmp.eq.s32.totalorder %s20, 1
    %p57 = por %p55, %p56
    %p59 = scmp.ne.s32.totalorder %s42, %s58
    %p60 = scmp.eq.s32.totalorder %s20, 0
    %p61 = por %p59, %p60
    %s62 = ssub.s32 %s21, %s33
    %p63 = scmp.eq.s32.totalorder %s62, 0
    %s65 = sadd.s32 %s64, 1
    %s66 = scalar_select %p63, %s64, %s65
    %p69 = pneg %p63
    %p70 = scmp.eq.s32.totalorder %s14, 1
    %p71 = por %p69, %p70
    %p72 = scmp.ne.s32.totalorder %s64, %s67
    %p73 = scmp.eq.s32.totalorder %s14, 0
    %p74 = por %p72, %p73
    %p75 = scmp.ne.s32.totalorder %s64, %s67
    %p76 = scmp.eq.s32.totalorder %s19, 1
    %p77 = por %p75, %p76
    %p78 = scmp.ne.s32.totalorder %s67, %s68
    %p79 = scmp.eq.s32.totalorder %s19, 0
    %p80 = por %p78, %p79
    %p81 = scmp.ne.s32.totalorder %s67, %s68
    %p82 = scmp.eq.s32.totalorder %s20, 1
    %p83 = por %p81, %p82
    %p85 = scmp.ne.s32.totalorder %s68, %s84
    %p86 = scmp.eq.s32.totalorder %s20, 0
    %p87 = por %p85, %p86
    %s88 = ssub.s32 %s21, %s33
    %p89 = scmp.eq.s32.totalorder %s88, 0
    %s91 = sadd.s32 %s90, 1
    %s92 = scalar_select %p89, %s90, %s91
    %p95 = pneg %p89
    %p96 = scmp.eq.s32.totalorder %s14, 1
    %p97 = por %p95, %p96
    %p98 = scmp.ne.s32.totalorder %s90, %s93
    %p99 = scmp.eq.s32.totalorder %s14, 0
    %p100 = por %p98, %p99
    %p101 = scmp.ne.s32.totalorder %s90, %s93
    %p102 = scmp.eq.s32.totalorder %s19, 1
    %p103 = por %p101, %p102
    %p104 = scmp.ne.s32.totalorder %s93, %s94
    %p105 = scmp.eq.s32.totalorder %s19, 0
    %p106 = por %p104, %p105
    %p107 = scmp.ne.s32.totalorder %s93, %s94
    %p108 = scmp.eq.s32.totalorder %s20, 1
    %p109 = por %p107, %p108
    %p111 = scmp.ne.s32.totalorder %s94, %s110
    %p112 = scmp.eq.s32.totalorder %s20, 0
    %p113 = por %p111, %p112
    %s114 = ssub.s32 %s21, %s33
    %s115 = ssub.s32 %s22, %s29
    %s116 = sor.u32 %s114, %s115
    %p117 = scmp.eq.s32.totalorder %s116, 0
    %s119 = sadd.s32 %s118, 1
    %s120 = scalar_select %p117, %s118, %s119
    %p123 = pneg %p117
    %p124 = scmp.eq.s32.totalorder %s14, 1
    %p125 = por %p123, %p124
    %p126 = scmp.ne.s32.totalorder %s118, %s121
    %p127 = scmp.eq.s32.totalorder %s14, 0
    %p128 = por %p126, %p127
    %p129 = scmp.ne.s32.totalorder %s118, %s121
    %p130 = scmp.eq.s32.totalorder %s19, 1
    %p131 = por %p129, %p130
    %p132 = scmp.ne.s32.totalorder %s121, %s122
    %p133 = scmp.eq.s32.totalorder %s19, 0
    %p134 = por %p132, %p133
    %p135 = scmp.ne.s32.totalorder %s121, %s122
    %p136 = scmp.eq.s32.totalorder %s20, 1
    %p137 = por %p135, %p136
    %p139 = scmp.ne.s32.totalorder %s122, %s138
    %p140 = scmp.eq.s32.totalorder %s20, 0
    %p141 = por %p139, %p140
    %s143 = sadd.s32 %s142, 1
    %p146 = scmp.eq.s32.totalorder %s14, 1
    %p147 = scmp.ne.s32.totalorder %s142, %s144
    %p148 = scmp.eq.s32.totalorder %s14, 0
    %p149 = por %p147, %p148
    %p150 = scmp.ne.s32.totalorder %s142, %s144
    %p151 = scmp.eq.s32.totalorder %s19, 1
    %p152 = por %p150, %p151
    %p153 = scmp.ne.s32.totalorder %s144, %s145
    %p154 = scmp.eq.s32.totalorder %s19, 0
    %p155 = por %p153, %p154
    %p156 = scmp.ne.s32.totalorder %s144, %s145
    %p157 = scmp.eq.s32.totalorder %s20, 1
    %p158 = por %p156, %p157
    %p160 = scmp.ne.s32.totalorder %s145, %s159
    %p161 = scmp.eq.s32.totalorder %s20, 0
    %p162 = por %p160, %p161
    %s164 = sadd.s32 %s163, 1
    %p167 = scmp.eq.s32.totalorder %s14, 1
    %p168 = scmp.ne.s32.totalorder %s163, %s165
    %p169 = scmp.eq.s32.totalorder %s14, 0
    %p170 = por %p168, %p169
    %p171 = scmp.ne.s32.totalorder %s163, %s165
    %p172 = scmp.eq.s32.totalorder %s19, 1
    %p173 = por %p171, %p172
    %p174 = scmp.ne.s32.totalorder %s165, %s166
    %p175 = scmp.eq.s32.totalorder %s19, 0
    %p176 = por %p174, %p175
    %p177 = scmp.ne.s32.totalorder %s165, %s166
    %p178 = scmp.eq.s32.totalorder %s20, 1
    %p179 = por %p177, %p178
    %p181 = scmp.ne.s32.totalorder %s166, %s180
    %p182 = scmp.eq.s32.totalorder %s20, 0
    %p183 = por %p181, %p182
    %s185 = sadd.s32 %s184, 1
    %p188 = scmp.eq.s32.totalorder %s14, 1
    %p189 = scmp.ne.s32.totalorder %s184, %s186
    %p190 = scmp.eq.s32.totalorder %s14, 0
    %p191 = por %p189, %p190
    %p192 = scmp.ne.s32.totalorder %s184, %s186
    %p193 = scmp.eq.s32.totalorder %s19, 1
    %p194 = por %p192, %p193
    %p195 = scmp.ne.s32.totalorder %s186, %s187
    %p196 = scmp.eq.s32.totalorder %s19, 0
    %p197 = por %p195, %p196
    %p198 = scmp.ne.s32.totalorder %s186, %s187
    %p199 = scmp.eq.s32.totalorder %s20, 1
    %p200 = por %p198, %p199
    %p202 = scmp.ne.s32.totalorder %s187, %s201
    %p203 = scmp.eq.s32.totalorder %s20, 0
    %p204 = por %p202, %p203
    %s206 = sadd.s32 %s205, 1
    %p209 = scmp.eq.s32.totalorder %s14, 1
    %p210 = scmp.ne.s32.totalorder %s205, %s207
    %p211 = scmp.eq.s32.totalorder %s14, 0
    %p212 = por %p210, %p211
    %p213 = scmp.ne.s32.totalorder %s205, %s207
    %p214 = scmp.eq.s32.totalorder %s19, 1
    %p215 = por %p213, %p214
    %p216 = scmp.ne.s32.totalorder %s207, %s208
    %p217 = scmp.eq.s32.totalorder %s19, 0
    %p218 = por %p216, %p217
    %p219 = scmp.ne.s32.totalorder %s207, %s208
    %p220 = scmp.eq.s32.totalorder %s20, 1
    %p221 = por %p219, %p220
    %p223 = scmp.ne.s32.totalorder %s208, %s222
    %p224 = scmp.eq.s32.totalorder %s20, 0
    %p225 = por %p223, %p224
    %s226 = ssub.s32 %s21, %s33
    %s227 = ssub.s32 %s22, %s29
    %s228 = sor.u32 %s226, %s227
    %p229 = scmp.eq.s32.totalorder %s228, 0
    %s231 = sadd.s32 %s230, 1
    %s232 = scalar_select %p229, %s230, %s231
    %p235 = pneg %p229
    %p236 = scmp.eq.s32.totalorder %s14, 1
    %p237 = por %p235, %p236
    %p238 = scmp.ne.s32.totalorder %s230, %s233
    %p239 = scmp.eq.s32.totalorder %s14, 0
    %p240 = por %p238, %p239
    %p241 = scmp.ne.s32.totalorder %s230, %s233
    %p242 = scmp.eq.s32.totalorder %s19, 1
    %p243 = por %p241, %p242
    %p244 = scmp.ne.s32.totalorder %s233, %s234
    %p245 = scmp.eq.s32.totalorder %s19, 0
    %p246 = por %p244, %p245
    %p247 = scmp.ne.s32.totalorder %s233, %s234
    %p248 = scmp.eq.s32.totalorder %s20, 1
    %p249 = por %p247, %p248
    %p251 = scmp.ne.s32.totalorder %s234, %s250
    %p252 = scmp.eq.s32.totalorder %s20, 0
    %p253 = por %p251, %p252
    %p254 = scmp.le.s32.totalorder 1, %s14
    %p255 = scmp.lt.s32.totalorder %s14, 3
    %p256 = pnand %p254, %p255
    %p257 = pneg %p256
    // Predicated region
    $region9: #{translation_transformer_forward.32} parent=5 // pred_check
      _
    $region10: #{translation_transformer_forward.32} parent=5 // pred_check_branch
      %259 = sbr.rel (%p256) target = $region12
    $region11: #{translation_transformer_forward.32} parent=5 // pred_region
      %s260 = ssub.s32 %s14, 1
      // Predicated region
      $region13: #{translation_transformer_forward.32} parent=11 // pred_check
        %p261 = pneg %p155
      $region14: #{translation_transformer_forward.32} parent=11 // pred_check_branch
        %263 = sbr.rel (%p261) target = $region16
      $region15: #{translation_transformer_forward.32} parent=11 // pred_region
        _
      $region16: #{translation_transformer_forward.32} parent=11 // pred_fallthru
        _
      // Predicated region
      $region17: #{translation_transformer_forward.32} parent=11 // pred_check
        %p264 = pneg %p176
      $region18: #{translation_transformer_forward.32} parent=11 // pred_check_branch
        %266 = sbr.rel (%p264) target = $region20
      $region19: #{translation_transformer_forward.32} parent=11 // pred_region
        _
      $region20: #{translation_transformer_forward.32} parent=11 // pred_fallthru
        _
      // Predicated region
      $region21: #{translation_transformer_forward.32} parent=11 // pred_check
        %p267 = pneg %p197
      $region22: #{translation_transformer_forward.32} parent=11 // pred_check_branch
        %269 = sbr.rel (%p267) target = $region24
      $region23: #{translation_transformer_forward.32} parent=11 // pred_region
        _
      $region24: #{translation_transformer_forward.32} parent=11 // pred_fallthru
        _
      // Predicated region
      $region25: #{translation_transformer_forward.32} parent=11 // pred_check
        %p270 = pneg %p218
      $region26: #{translation_transformer_forward.32} parent=11 // pred_check_branch
        %272 = sbr.rel (%p270) target = $region28
      $region27: #{translation_transformer_forward.32} parent=11 // pred_region
        _
      $region28: #{translation_transformer_forward.32} parent=11 // pred_fallthru
        _
    $region12: #{translation_transformer_forward.32} parent=5 // pred_fallthru
      _
    %p273 = scmp.lt.s32.totalorder %s14, 2
    // Predicated region
    $region29: #{translation_transformer_forward.32} parent=5 // pred_check
      %p274 = pneg %p273
    $region30: #{translation_transformer_forward.32} parent=5 // pred_check_branch
      %276 = sbr.rel (%p274) target = $region32
    $region31: #{translation_transformer_forward.32} parent=5 // pred_region
      // Predicated region
      $region33: #{translation_transformer_forward.32} parent=31 // pred_check
        %p277 = pneg %p48
      $region34: #{translation_transformer_forward.32} parent=31 // pred_check_branch
        %279 = sbr.rel (%p277) target = $region36
      $region35: #{translation_transformer_forward.32} parent=31 // pred_region
        %p280 = scmp.lt.s32.totalorder %s21, 1
        %s281 = scalar_select %p280, %s21, 1
        %p282 = scmp.lt.s32.totalorder %s22, 0
        %s283 = scalar_select %p282, %s22, 0
        %s284 = sadd.s32 %s283, %s281
        %s285 = smul.addr %s284, 4
        %s286 = scalar_lea.vmem %s0, %s285
      $region36: #{translation_transformer_forward.32} parent=31 // pred_fallthru
        _
      // Predicated region
      $region37: #{translation_transformer_forward.32} parent=31 // pred_check
        %p287 = pneg %p74
      $region38: #{translation_transformer_forward.32} parent=31 // pred_check_branch
        %289 = sbr.rel (%p287) target = $region40
      $region39: #{translation_transformer_forward.32} parent=31 // pred_region
        %p290 = scmp.lt.s32.totalorder %s21, 1
        %s291 = scalar_select %p290, %s21, 1
        %s292 = smul.addr %s291, 2
        %s293 = smul.addr %s292, 4
        %s294 = scalar_lea.vmem %s1, %s293
      $region40: #{translation_transformer_forward.32} parent=31 // pred_fallthru
        _
      // Predicated region
      $region41: #{translation_transformer_forward.32} parent=31 // pred_check
        %p295 = pneg %p100
      $region42: #{translation_transformer_forward.32} parent=31 // pred_check_branch
        %297 = sbr.rel (%p295) target = $region44
      $region43: #{translation_transformer_forward.32} parent=31 // pred_region
        %p298 = scmp.lt.s32.totalorder %s21, 1
        %s299 = scalar_select %p298, %s21, 1
        %s300 = smul.addr %s299, 2
        %s301 = sadd.s32 1, %s300
        %s302 = smul.addr %s301, 4
        %s303 = scalar_lea.vmem %s2, %s302
      $region44: #{translation_transformer_forward.32} parent=31 // pred_fallthru
        _
      // Predicated region
      $region45: #{translation_transformer_forward.32} parent=31 // pred_check
        %p304 = pneg %p128
      $region46: #{translation_transformer_forward.32} parent=31 // pred_check_branch
        %306 = sbr.rel (%p304) target = $region48
      $region47: #{translation_transformer_forward.32} parent=31 // pred_region
        %p307 = scmp.lt.s32.totalorder %s21, 1
        %s308 = scalar_select %p307, %s21, 1
        %p309 = scmp.lt.s32.totalorder %s22, 0
        %s310 = scalar_select %p309, %s22, 0
        %s311 = sadd.s32 %s310, %s308
        %s312 = smul.addr %s311, 4
        %s313 = scalar_lea.vmem %s3, %s312
      $region48: #{translation_transformer_forward.32} parent=31 // pred_fallthru
        _
    $region32: #{translation_transformer_forward.32} parent=5 // pred_fallthru
      _
    %p314 = scmp.le.s32.totalorder 1, %s14
    %p315 = scmp.lt.s32.totalorder %s14, 3
    %p316 = pnand %p314, %p315
    %p317 = pneg %p316
    // Predicated region
    $region49: #{translation_transformer_forward.32} parent=5 // pred_check
      _
    $region50: #{translation_transformer_forward.32} parent=5 // pred_check_branch
      %319 = sbr.rel (%p316) target = $region52
    $region51: #{translation_transformer_forward.32} parent=5 // pred_region
      %s320 = ssub.s32 %s14, 1
      %p321 = scmp.lt.s32.totalorder %s23, 1
      %s322 = scalar_select %p321, %s23, 1
      %p323 = scmp.lt.s32.totalorder %s24, 0
      %s324 = scalar_select %p323, %s24, 0
      %s325 = sadd.s32 %s324, %s322
      %s326 = smul.addr %s325, 4
      %s327 = scalar_lea.vmem %s0, %s326
      %p328 = pneg %p54
      %p329 = pneg %p51
      %p330 = scmp.lt.s32.totalorder %s23, 1
      %s331 = scalar_select %p330, %s23, 1
      %s332 = smul.addr %s331, 2
      %s333 = smul.addr %s332, 4
      %s334 = scalar_lea.vmem %s1, %s333
      %p335 = pneg %p80
      %p336 = pneg %p77
      %p337 = scmp.lt.s32.totalorder %s23, 1
      %s338 = scalar_select %p337, %s23, 1
      %s339 = smul.addr %s338, 2
      %s340 = sadd.s32 1, %s339
      %s341 = smul.addr %s340, 4
      %s342 = scalar_lea.vmem %s2, %s341
      %p343 = pneg %p106
      %p344 = pneg %p103
      %p345 = scmp.lt.s32.totalorder %s23, 1
      %s346 = scalar_select %p345, %s23, 1
      %p347 = scmp.lt.s32.totalorder %s24, 0
      %s348 = scalar_select %p347, %s24, 0
      %s349 = sadd.s32 %s348, %s346
      %s350 = smul.addr %s349, 4
      %s351 = scalar_lea.vmem %s3, %s350
      %p352 = pneg %p134
      %p353 = pneg %p131
      %p354 = pneg %p155
      %p355 = pneg %p152
      %p356 = pneg %p176
      %p357 = pneg %p173
      %p358 = pneg %p197
      %p359 = pneg %p194
      %p360 = pneg %p218
      %p361 = pneg %p215
      %p362 = pneg %p246
      %p363 = pneg %p243
      %p364 = scmp.lt.s32.totalorder %s23, 1
      %s365 = scalar_select %p364, %s23, 1
      %p366 = scmp.lt.s32.totalorder %s24, 0
      %s367 = scalar_select %p366, %s24, 0
      %s368 = sadd.s32 %s367, %s365
      %s369 = smul.addr %s368, 4
      %s370 = scalar_lea.vmem %s8, %s369
      %p371 = scmp.lt.s32.totalorder %s23, 1
      %s372 = scalar_select %p371, %s23, 1
      %p373 = scmp.lt.s32.totalorder %s24, 0
      %s374 = scalar_select %p373, %s24, 0
      %s375 = sadd.s32 %s374, %s372
      %s376 = smul.addr %s375, 4
      %s377 = scalar_lea.vmem %s0, %s376
      %p378 = scmp.lt.s32.totalorder %s23, 1
      %s379 = scalar_select %p378, %s23, 1
      %s380 = smul.addr %s379, 2
      %s381 = smul.addr %s380, 4
      %s382 = scalar_lea.vmem %s1, %s381
      %p383 = scmp.lt.s32.totalorder %s23, 1
      %s384 = scalar_select %p383, %s23, 1
      %s385 = smul.addr %s384, 2
      %s386 = sadd.s32 1, %s385
      %s387 = smul.addr %s386, 4
      %s388 = scalar_lea.vmem %s2, %s387
      %p389 = scmp.lt.s32.totalorder %s23, 1
      %s390 = scalar_select %p389, %s23, 1
      %p391 = scmp.lt.s32.totalorder %s24, 0
      %s392 = scalar_select %p391, %s24, 0
      %s393 = sadd.s32 %s392, %s390
      %s394 = smul.addr %s393, 4
      %s395 = scalar_lea.vmem %s3, %s394
      %p396 = scmp.lt.s32.totalorder %s23, 1
      %s397 = scalar_select %p396, %s23, 1
      %p398 = scmp.lt.s32.totalorder %s24, 0
      %s399 = scalar_select %p398, %s24, 0
      %s400 = sadd.s32 %s399, %s397
      %s401 = smul.addr %s400, 4
      %s402 = scalar_lea.vmem %s8, %s401
      %v404 = vld [vmem:[%s377] sm:$0xf]
      %v405 = vld [vmem:[%s382] sm:$0xf]
      %v406 = vld [vmem:[%s388] sm:$0xf]
      %vm407 = vcmask 261120
      %v409 = vsel %vm407, %v404, 0
      %v412 = vsel %vm407, %v405, 0
      %414 = vmatprep.subr.bf16.mxu0 0
      %415 = vmatpush1.bf16.xpose.msra.mxu0 %v412
      %416 = vmatprep.subr.bf16.mxu0 0
      %417 = vmatpush1.bf16.xpose.msra.mxu0 0
      %418 = vmatprep.subr.bf16.mxu0 0
      %419 = vmatpush1.bf16.xpose.msra.mxu0 0
      %420 = vmatprep.subr.bf16.mxu0 0
      %421 = vmatpush1.bf16.xpose.msra.mxu0 0
      %422 = vmatprep.subr.bf16.mxu0 0
      %423 = vmatpush1.bf16.xpose.msra.mxu0 0
      %424 = vmatprep.subr.bf16.mxu0 0
      %425 = vmatpush1.bf16.xpose.msra.mxu0 0
      %426 = vmatprep.subr.bf16.mxu0 0
      %427 = vmatpush1.bf16.xpose.msra.mxu0 0
      %428 = vmatprep.subr.bf16.mxu0 0
      %429 = vmatpush1.bf16.xpose.msra.mxu0 0
      %430 = vmatprep.subr.bf16.mxu0 0
      %431 = vmatpush1.bf16.xpose.msra.mxu0 0
      %432 = vmatprep.subr.bf16.mxu0 0
      %433 = vmatpush1.bf16.xpose.msra.mxu0 0
      %434 = vmatprep.subr.bf16.mxu0 0
      %435 = vmatpush1.bf16.xpose.msra.mxu0 0
      %436 = vmatprep.subr.bf16.mxu0 0
      %437 = vmatpush1.bf16.xpose.msra.mxu0 0
      %438 = vmatprep.subr.bf16.mxu0 0
      %439 = vmatpush1.bf16.xpose.msra.mxu0 0
      %440 = vmatprep.subr.bf16.mxu0 0
      %441 = vmatpush1.bf16.xpose.msra.mxu0 0
      %442 = vmatprep.subr.bf16.mxu0 0
      %443 = vmatpush1.bf16.xpose.msra.mxu0 0
      %444 = vmatprep.subr.bf16.mxu0 0
      %445 = vmatpush1.bf16.xpose.msra.mxu0 0
      %446 = vmatprep.mubr.bf16.mxu0 0
      %447 = vmatmul.mubr.bf16.gmra.mrb[0].mxu0 %v409
      %v448 = vpop.f32.mrb[0].mxu0
      %v449 = vadd.f32 0.0, %v448
      %v450 = vpop.f32.mrb[0].mxu0
      %v451 = vpop.f32.mrb[0].mxu0
      %v452 = vpop.f32.mrb[0].mxu0
      %453 = vdwg.mxu0
      %v454 = vmul.f32 %v449, 0.17677669
      %vm455 = vcmask 64512
      %v456 = vsel %vm455, %v454, -inf
      %457 = vmax.xlane.f32.xlu0 %v456
      %v458 = vpop.xlane.xlu0 %457
      %v459 = vsub.f32 %v454, %v458
      %v460 = vmul.f32 %v459, 1.442695
      %v461 = vpow.pop %v460
      %v462 = vsel %vm455, %v461, 0.0
      %463 = vadd.xlane.f32.xlu0 %v462
      %v464 = vpop.xlane.xlu0 %463
      %v465 = vrcp.pop %v464
      %v466 = vmul.f32 %v461, %v465
      %v467 = vpack.c.bf16 %v466, %v466
      %v469 = vsel %vm455, %v467, 0
      %vm471 = vcmask 1043456
      %v473 = vsel %vm471, %v406, 0
      %475 = vmatprep.subr.bf16.mxu0 0
      %476 = vmatpush1.bf16.msra.mxu0 %v473
      %477 = vmatprep.subr.bf16.mxu0 0
      %478 = vmatpush1.bf16.msra.mxu0 0
      %479 = vmatprep.subr.bf16.mxu0 0
      %480 = vmatpush1.bf16.msra.mxu0 0
      %481 = vmatprep.subr.bf16.mxu0 0
      %482 = vmatpush1.bf16.msra.mxu0 0
      %483 = vmatprep.subr.bf16.mxu0 0
      %484 = vmatpush1.bf16.msra.mxu0 0
      %485 = vmatprep.subr.bf16.mxu0 0
      %486 = vmatpush1.bf16.msra.mxu0 0
      %487 = vmatprep.subr.bf16.mxu0 0
      %488 = vmatpush1.bf16.msra.mxu0 0
      %489 = vmatprep.subr.bf16.mxu0 0
      %490 = vmatpush1.bf16.msra.mxu0 0
      %491 = vmatprep.subr.bf16.mxu0 0
      %492 = vmatpush1.bf16.msra.mxu0 0
      %493 = vmatprep.subr.bf16.mxu0 0
      %494 = vmatpush1.bf16.msra.mxu0 0
      %495 = vmatprep.subr.bf16.mxu0 0
      %496 = vmatpush1.bf16.msra.mxu0 0
      %497 = vmatprep.subr.bf16.mxu0 0
      %498 = vmatpush1.bf16.msra.mxu0 0
      %499 = vmatprep.subr.bf16.mxu0 0
      %500 = vmatpush1.bf16.msra.mxu0 0
      %501 = vmatprep.subr.bf16.mxu0 0
      %502 = vmatpush1.bf16.msra.mxu0 0
      %503 = vmatprep.subr.bf16.mxu0 0
      %504 = vmatpush1.bf16.msra.mxu0 0
      %505 = vmatprep.subr.bf16.mxu0 0
      %506 = vmatpush1.bf16.msra.mxu0 0
      %507 = vmatprep.mubr.bf16.mxu0 0
      %508 = vmatmul.mubr.bf16.gmra.mrb[0].mxu0 %v469
      %v509 = vpop.f32.mrb[0].mxu0
      %v510 = vadd.f32 0.0, %v509
      %v511 = vpop.f32.mrb[0].mxu0
      %v512 = vpop.f32.mrb[0].mxu0
      %v513 = vpop.f32.mrb[0].mxu0
      %514 = vdwg.mxu0
      %v515 = vld [vmem:[%s4] sm:$0xf]
      %v516 = vld [vmem:[%s4 + $0x4] sm:$0xf]
      %v517 = vld [vmem:[%s4 + $0x8] sm:$0xf]
      %v518 = vld [vmem:[%s4 + $0xc] sm:$0xf]
      %v519 = vpack.c.bf16 %v510, %v510
      %v521 = vunpack.c.l.b16 %v404
      %v522 = vpack.c.b16 %v521, %v521
      %523 = vrot.lane.b32.xlu0 %v522, 96
      %v524 = vpop.permute.xlu0 %523
      %v526 = vunpack.c.l.b16 %v405
      %v527 = vpack.c.b16 %v526, %v526
      %528 = vrot.lane.b32.xlu0 %v527, 96
      %v529 = vpop.permute.xlu0 %528
      %v531 = vsel %vm407, %v524, 0
      %v534 = vsel %vm407, %v529, 0
      %536 = vmatprep.subr.bf16.mxu0 0
      %537 = vmatpush1.bf16.xpose.msra.mxu0 %v534
      %538 = vmatprep.subr.bf16.mxu0 0
      %539 = vmatpush1.bf16.xpose.msra.mxu0 0
      %540 = vmatprep.subr.bf16.mxu0 0
      %541 = vmatpush1.bf16.xpose.msra.mxu0 0
      %542 = vmatprep.subr.bf16.mxu0 0
      %543 = vmatpush1.bf16.xpose.msra.mxu0 0
      %544 = vmatprep.subr.bf16.mxu0 0
      %545 = vmatpush1.bf16.xpose.msra.mxu0 0
      %546 = vmatprep.subr.bf16.mxu0 0
      %547 = vmatpush1.bf16.xpose.msra.mxu0 0
      %548 = vmatprep.subr.bf16.mxu0 0
      %549 = vmatpush1.bf16.xpose.msra.mxu0 0
      %550 = vmatprep.subr.bf16.mxu0 0
      %551 = vmatpush1.bf16.xpose.msra.mxu0 0
      %552 = vmatprep.subr.bf16.mxu0 0
      %553 = vmatpush1.bf16.xpose.msra.mxu0 0
      %554 = vmatprep.subr.bf16.mxu0 0
      %555 = vmatpush1.bf16.xpose.msra.mxu0 0
      %556 = vmatprep.subr.bf16.mxu0 0
      %557 = vmatpush1.bf16.xpose.msra.mxu0 0
      %558 = vmatprep.subr.bf16.mxu0 0
      %559 = vmatpush1.bf16.xpose.msra.mxu0 0
      %560 = vmatprep.subr.bf16.mxu0 0
      %561 = vmatpush1.bf16.xpose.msra.mxu0 0
      %562 = vmatprep.subr.bf16.mxu0 0
      %563 = vmatpush1.bf16.xpose.msra.mxu0 0
      %564 = vmatprep.subr.bf16.mxu0 0
      %565 = vmatpush1.bf16.xpose.msra.mxu0 0
      %566 = vmatprep.subr.bf16.mxu0 0
      %567 = vmatpush1.bf16.xpose.msra.mxu0 0
      %568 = vmatprep.mubr.bf16.mxu0 0
      %569 = vmatmul.mubr.bf16.gmra.mrb[0].mxu0 %v531
      %v570 = vpop.f32.mrb[0].mxu0
      %v571 = vadd.f32 0.0, %v570
      %v572 = vpop.f32.mrb[0].mxu0
      %v573 = vpop.f32.mrb[0].mxu0
      %v574 = vpop.f32.mrb[0].mxu0
      %575 = vdwg.mxu0
      %v576 = vmul.f32 %v571, 0.17677669
      %v577 = vsel %vm455, %v576, -inf
      %578 = vmax.xlane.f32.xlu0 %v577
      %v579 = vpop.xlane.xlu0 %578
      %v580 = vsub.f32 %v576, %v579
      %v581 = vmul.f32 %v580, 1.442695
      %v582 = vpow.pop %v581
      %v583 = vsel %vm455, %v582, 0.0
      %584 = vadd.xlane.f32.xlu0 %v583
      %v585 = vpop.xlane.xlu0 %584
      %v586 = vrcp.pop %v585
      %v587 = vmul.f32 %v582, %v586
      %v588 = vpack.c.bf16 %v587, %v587
      %v590 = vunpack.c.l.b16 %v406
      %v591 = vpack.c.b16 %v590, %v590
      %592 = vrot.lane.b32.xlu0 %v591, 96
      %v593 = vpop.permute.xlu0 %592
      %v595 = vsel %vm455, %v588, 0
      %v598 = vsel %vm471, %v593, 0
      %600 = vmatprep.subr.bf16.mxu0 0
      %601 = vmatpush1.bf16.msra.mxu0 %v598
      %602 = vmatprep.subr.bf16.mxu0 0
      %603 = vmatpush1.bf16.msra.mxu0 0
      %604 = vmatprep.subr.bf16.mxu0 0
      %605 = vmatpush1.bf16.msra.mxu0 0
      %606 = vmatprep.subr.bf16.mxu0 0
      %607 = vmatpush1.bf16.msra.mxu0 0
      %608 = vmatprep.subr.bf16.mxu0 0
      %609 = vmatpush1.bf16.msra.mxu0 0
      %610 = vmatprep.subr.bf16.mxu0 0
      %611 = vmatpush1.bf16.msra.mxu0 0
      %612 = vmatprep.subr.bf16.mxu0 0
      %613 = vmatpush1.bf16.msra.mxu0 0
      %614 = vmatprep.subr.bf16.mxu0 0
      %615 = vmatpush1.bf16.msra.mxu0 0
      %616 = vmatprep.subr.bf16.mxu0 0
      %617 = vmatpush1.bf16.msra.mxu0 0
      %618 = vmatprep.subr.bf16.mxu0 0
      %619 = vmatpush1.bf16.msra.mxu0 0
      %620 = vmatprep.subr.bf16.mxu0 0
      %621 = vmatpush1.bf16.msra.mxu0 0
      %622 = vmatprep.subr.bf16.mxu0 0
      %623 = vmatpush1.bf16.msra.mxu0 0
      %624 = vmatprep.subr.bf16.mxu0 0
      %625 = vmatpush1.bf16.msra.mxu0 0
      %626 = vmatprep.subr.bf16.mxu0 0
      %627 = vmatpush1.bf16.msra.mxu0 0
      %628 = vmatprep.subr.bf16.mxu0 0
      %629 = vmatpush1.bf16.msra.mxu0 0
      %630 = vmatprep.subr.bf16.mxu0 0
      %631 = vmatpush1.bf16.msra.mxu0 0
      %632 = vmatprep.mubr.bf16.mxu0 0
      %633 = vmatmul.mubr.bf16.gmra.mrb[0].mxu0 %v595
      %v634 = vpop.f32.mrb[0].mxu0
      %v635 = vadd.f32 0.0, %v634
      %v636 = vpop.f32.mrb[0].mxu0
      %v637 = vpop.f32.mrb[0].mxu0
      %v638 = vpop.f32.mrb[0].mxu0
      %639 = vdwg.mxu0
      %v640 = vld [vmem:[%s4 + $0x10] sm:$0xf]
      %v641 = vld [vmem:[%s4 + $0x14] sm:$0xf]
      %v642 = vld [vmem:[%s4 + $0x18] sm:$0xf]
      %v643 = vld [vmem:[%s4 + $0x1c] sm:$0xf]
      %v644 = vpack.c.bf16 %v635, %v635
      %v649 = vunpack.c.l.b16 %v640
      %v650 = vunpack.c.l.b16 %v641
      %v651 = vunpack.c.l.b16 %v642
      %v652 = vunpack.c.l.b16 %v643
      %v653 = vpack.c.b16 %v650, %v649
      %v654 = vpack.c.b16 %v652, %v651
      %v658 = vsel %vm407, %v644, 0
      %660 = vmatprep.subr.bf16.mxu0 0
      %661 = vmatpush1.bf16.msra.mxu0 %v653
      %662 = vmatprep.subr.bf16.mxu0 0
      %663 = vmatpush1.bf16.msra.mxu0 %v654
      %664 = vmatprep.subr.bf16.mxu0 0
      %665 = vmatpush1.bf16.msra.mxu0 0
      %666 = vmatprep.subr.bf16.mxu0 0
      %667 = vmatpush1.bf16.msra.mxu0 0
      %668 = vmatprep.subr.bf16.mxu0 0
      %669 = vmatpush1.bf16.msra.mxu0 0
      %670 = vmatprep.subr.bf16.mxu0 0
      %671 = vmatpush1.bf16.msra.mxu0 0
      %672 = vmatprep.subr.bf16.mxu0 0
      %673 = vmatpush1.bf16.msra.mxu0 0
      %674 = vmatprep.subr.bf16.mxu0 0
      %675 = vmatpush1.bf16.msra.mxu0 0
      %676 = vmatprep.subr.bf16.mxu0 0
      %677 = vmatpush1.bf16.msra.mxu0 0
      %678 = vmatprep.subr.bf16.mxu0 0
      %679 = vmatpush1.bf16.msra.mxu0 0
      %680 = vmatprep.subr.bf16.mxu0 0
      %681 = vmatpush1.bf16.msra.mxu0 0
      %682 = vmatprep.subr.bf16.mxu0 0
      %683 = vmatpush1.bf16.msra.mxu0 0
      %684 = vmatprep.subr.bf16.mxu0 0
      %685 = vmatpush1.bf16.msra.mxu0 0
      %686 = vmatprep.subr.bf16.mxu0 0
      %687 = vmatpush1.bf16.msra.mxu0 0
      %688 = vmatprep.subr.bf16.mxu0 0
      %689 = vmatpush1.bf16.msra.mxu0 0
      %690 = vmatprep.subr.bf16.mxu0 0
      %691 = vmatpush1.bf16.msra.mxu0 0
      %692 = vmatprep.mubr.bf16.mxu0 0
      %693 = vmatmul.mubr.bf16.gmra.mrb[0].mxu0 %v658
      %v694 = vpop.f32.mrb[0].mxu0
      %v695 = vadd.f32 0.0, %v694
      %v696 = vpop.f32.mrb[0].mxu0
      %v697 = vpop.f32.mrb[0].mxu0
      %v698 = vpop.f32.mrb[0].mxu0
      %699 = vdwg.mxu0
      %v704 = vunpack.c.l.b16 %v515
      %v705 = vunpack.c.l.b16 %v516
      %v706 = vunpack.c.l.b16 %v517
      %v707 = vunpack.c.l.b16 %v518
      %v708 = vpack.c.b16 %v705, %v704
      %v709 = vpack.c.b16 %v707, %v706
      %v713 = vsel %vm407, %v519, 0
      %715 = vmatprep.subr.bf16.mxu0 0
      %716 = vmatpush1.bf16.msra.mxu0 %v708
      %717 = vmatprep.subr.bf16.mxu0 0
      %718 = vmatpush1.bf16.msra.mxu0 %v709
      %719 = vmatprep.subr.bf16.mxu0 0
      %720 = vmatpush1.bf16.msra.mxu0 0
      %721 = vmatprep.subr.bf16.mxu0 0
      %722 = vmatpush1.bf16.msra.mxu0 0
      %723 = vmatprep.subr.bf16.mxu0 0
      %724 = vmatpush1.bf16.msra.mxu0 0
      %725 = vmatprep.subr.bf16.mxu0 0
      %726 = vmatpush1.bf16.msra.mxu0 0
      %727 = vmatprep.subr.bf16.mxu0 0
      %728 = vmatpush1.bf16.msra.mxu0 0
      %729 = vmatprep.subr.bf16.mxu0 0
      %730 = vmatpush1.bf16.msra.mxu0 0
      %731 = vmatprep.subr.bf16.mxu0 0
      %732 = vmatpush1.bf16.msra.mxu0 0
      %733 = vmatprep.subr.bf16.mxu0 0
      %734 = vmatpush1.bf16.msra.mxu0 0
      %735 = vmatprep.subr.bf16.mxu0 0
      %736 = vmatpush1.bf16.msra.mxu0 0
      %737 = vmatprep.subr.bf16.mxu0 0
      %738 = vmatpush1.bf16.msra.mxu0 0
      %739 = vmatprep.subr.bf16.mxu0 0
      %740 = vmatpush1.bf16.msra.mxu0 0
      %741 = vmatprep.subr.bf16.mxu0 0
      %742 = vmatpush1.bf16.msra.mxu0 0
      %743 = vmatprep.subr.bf16.mxu0 0
      %744 = vmatpush1.bf16.msra.mxu0 0
      %745 = vmatprep.subr.bf16.mxu0 0
      %746 = vmatpush1.bf16.msra.mxu0 0
      %747 = vmatprep.mubr.bf16.mxu0 0
      %748 = vmatmul.mubr.bf16.gmra.mrb[0].mxu0 %v713
      %v749 = vpop.f32.mrb[0].mxu0
      %v750 = vadd.f32 %v695, %v749
      %v751 = vpop.f32.mrb[0].mxu0
      %v752 = vpop.f32.mrb[0].mxu0
      %v753 = vpop.f32.mrb[0].mxu0
      %754 = vdwg.mxu0
      %755 = vrot.lane.b32.xlu0 %v522, 64
      %v756 = vpop.permute.xlu0 %755
      %757 = vrot.lane.b32.xlu0 %v527, 64
      %v758 = vpop.permute.xlu0 %757
      %v760 = vsel %vm407, %v756, 0
      %v763 = vsel %vm407, %v758, 0
      %765 = vmatprep.subr.bf16.mxu0 0
      %766 = vmatpush1.bf16.xpose.msra.mxu0 %v763
      %767 = vmatprep.subr.bf16.mxu0 0
      %768 = vmatpush1.bf16.xpose.msra.mxu0 0
      %769 = vmatprep.subr.bf16.mxu0 0
      %770 = vmatpush1.bf16.xpose.msra.mxu0 0
      %771 = vmatprep.subr.bf16.mxu0 0
      %772 = vmatpush1.bf16.xpose.msra.mxu0 0
      %773 = vmatprep.subr.bf16.mxu0 0
      %774 = vmatpush1.bf16.xpose.msra.mxu0 0
      %775 = vmatprep.subr.bf16.mxu0 0
      %776 = vmatpush1.bf16.xpose.msra.mxu0 0
      %777 = vmatprep.subr.bf16.mxu0 0
      %778 = vmatpush1.bf16.xpose.msra.mxu0 0
      %779 = vmatprep.subr.bf16.mxu0 0
      %780 = vmatpush1.bf16.xpose.msra.mxu0 0
      %781 = vmatprep.subr.bf16.mxu0 0
      %782 = vmatpush1.bf16.xpose.msra.mxu0 0
      %783 = vmatprep.subr.bf16.mxu0 0
      %784 = vmatpush1.bf16.xpose.msra.mxu0 0
      %785 = vmatprep.subr.bf16.mxu0 0
      %786 = vmatpush1.bf16.xpose.msra.mxu0 0
      %787 = vmatprep.subr.bf16.mxu0 0
      %788 = vmatpush1.bf16.xpose.msra.mxu0 0
      %789 = vmatprep.subr.bf16.mxu0 0
      %790 = vmatpush1.bf16.xpose.msra.mxu0 0
      %791 = vmatprep.subr.bf16.mxu0 0
      %792 = vmatpush1.bf16.xpose.msra.mxu0 0
      %793 = vmatprep.subr.bf16.mxu0 0
      %794 = vmatpush1.bf16.xpose.msra.mxu0 0
      %795 = vmatprep.subr.bf16.mxu0 0
      %796 = vmatpush1.bf16.xpose.msra.mxu0 0
      %797 = vmatprep.mubr.bf16.mxu0 0
      %798 = vmatmul.mubr.bf16.gmra.mrb[0].mxu0 %v760
      %v799 = vpop.f32.mrb[0].mxu0
      %v800 = vadd.f32 0.0, %v799
      %v801 = vpop.f32.mrb[0].mxu0
      %v802 = vpop.f32.mrb[0].mxu0
      %v803 = vpop.f32.mrb[0].mxu0
      %804 = vdwg.mxu0
      %v805 = vmul.f32 %v800, 0.17677669
      %v806 = vsel %vm455, %v805, -inf
      %807 = vmax.xlane.f32.xlu0 %v806
      %v808 = vpop.xlane.xlu0 %807
      %v809 = vsub.f32 %v805, %v808
      %v810 = vmul.f32 %v809, 1.442695
      %v811 = vpow.pop %v810
      %v812 = vsel %vm455, %v811, 0.0
      %813 = vadd.xlane.f32.xlu0 %v812
      %v814 = vpop.xlane.xlu0 %813
      %v815 = vrcp.pop %v814
      %v816 = vmul.f32 %v811, %v815
      %v817 = vpack.c.bf16 %v816, %v816
      %818 = vrot.lane.b32.xlu0 %v591, 64
      %v819 = vpop.permute.xlu0 %818
      %v821 = vsel %vm455, %v817, 0
      %v824 = vsel %vm471, %v819, 0
      %826 = vmatprep.subr.bf16.mxu0 0
      %827 = vmatpush1.bf16.msra.mxu0 %v824
      %828 = vmatprep.subr.bf16.mxu0 0
      %829 = vmatpush1.bf16.msra.mxu0 0
      %830 = vmatprep.subr.bf16.mxu0 0
      %831 = vmatpush1.bf16.msra.mxu0 0
      %832 = vmatprep.subr.bf16.mxu0 0
      %833 = vmatpush1.bf16.msra.mxu0 0
      %834 = vmatprep.subr.bf16.mxu0 0
      %835 = vmatpush1.bf16.msra.mxu0 0
      %836 = vmatprep.subr.bf16.mxu0 0
      %837 = vmatpush1.bf16.msra.mxu0 0
      %838 = vmatprep.subr.bf16.mxu0 0
      %839 = vmatpush1.bf16.msra.mxu0 0
      %840 = vmatprep.subr.bf16.mxu0 0
      %841 = vmatpush1.bf16.msra.mxu0 0
      %842 = vmatprep.subr.bf16.mxu0 0
      %843 = vmatpush1.bf16.msra.mxu0 0
      %844 = vmatprep.subr.bf16.mxu0 0
      %845 = vmatpush1.bf16.msra.mxu0 0
      %846 = vmatprep.subr.bf16.mxu0 0
      %847 = vmatpush1.bf16.msra.mxu0 0
      %848 = vmatprep.subr.bf16.mxu0 0
      %849 = vmatpush1.bf16.msra.mxu0 0
      %850 = vmatprep.subr.bf16.mxu0 0
      %851 = vmatpush1.bf16.msra.mxu0 0
      %852 = vmatprep.subr.bf16.mxu0 0
      %853 = vmatpush1.bf16.msra.mxu0 0
      %854 = vmatprep.subr.bf16.mxu0 0
      %855 = vmatpush1.bf16.msra.mxu0 0
      %856 = vmatprep.subr.bf16.mxu0 0
      %857 = vmatpush1.bf16.msra.mxu0 0
      %858 = vmatprep.mubr.bf16.mxu0 0
      %859 = vmatmul.mubr.bf16.gmra.mrb[0].mxu0 %v821
      %v860 = vpop.f32.mrb[0].mxu0
      %v861 = vadd.f32 0.0, %v860
      %v862 = vpop.f32.mrb[0].mxu0
      %v863 = vpop.f32.mrb[0].mxu0
      %v864 = vpop.f32.mrb[0].mxu0
      %865 = vdwg.mxu0
      %v866 = vld [vmem:[%s4 + $0x20] sm:$0xf]
      %v867 = vld [vmem:[%s4 + $0x24] sm:$0xf]
      %v868 = vld [vmem:[%s4 + $0x28] sm:$0xf]
      %v869 = vld [vmem:[%s4 + $0x2c] sm:$0xf]
      %v870 = vpack.c.bf16 %v861, %v861
      %v875 = vunpack.c.l.b16 %v866
      %v876 = vunpack.c.l.b16 %v867
      %v877 = vunpack.c.l.b16 %v868
      %v878 = vunpack.c.l.b16 %v869
      %v879 = vpack.c.b16 %v876, %v875
      %v880 = vpack.c.b16 %v878, %v877
      %v884 = vsel %vm407, %v870, 0
      %886 = vmatprep.subr.bf16.mxu0 0
      %887 = vmatpush1.bf16.msra.mxu0 %v879
      %888 = vmatprep.subr.bf16.mxu0 0
      %889 = vmatpush1.bf16.msra.mxu0 %v880
      %890 = vmatprep.subr.bf16.mxu0 0
      %891 = vmatpush1.bf16.msra.mxu0 0
      %892 = vmatprep.subr.bf16.mxu0 0
      %893 = vmatpush1.bf16.msra.mxu0 0
      %894 = vmatprep.subr.bf16.mxu0 0
      %895 = vmatpush1.bf16.msra.mxu0 0
      %896 = vmatprep.subr.bf16.mxu0 0
      %897 = vmatpush1.bf16.msra.mxu0 0
      %898 = vmatprep.subr.bf16.mxu0 0
      %899 = vmatpush1.bf16.msra.mxu0 0
      %900 = vmatprep.subr.bf16.mxu0 0
      %901 = vmatpush1.bf16.msra.mxu0 0
      %902 = vmatprep.subr.bf16.mxu0 0
      %903 = vmatpush1.bf16.msra.mxu0 0
      %904 = vmatprep.subr.bf16.mxu0 0
      %905 = vmatpush1.bf16.msra.mxu0 0
      %906 = vmatprep.subr.bf16.mxu0 0
      %907 = vmatpush1.bf16.msra.mxu0 0
      %908 = vmatprep.subr.bf16.mxu0 0
      %909 = vmatpush1.bf16.msra.mxu0 0
      %910 = vmatprep.subr.bf16.mxu0 0
      %911 = vmatpush1.bf16.msra.mxu0 0
      %912 = vmatprep.subr.bf16.mxu0 0
      %913 = vmatpush1.bf16.msra.mxu0 0
      %914 = vmatprep.subr.bf16.mxu0 0
      %915 = vmatpush1.bf16.msra.mxu0 0
      %916 = vmatprep.subr.bf16.mxu0 0
      %917 = vmatpush1.bf16.msra.mxu0 0
      %918 = vmatprep.mubr.bf16.mxu0 0
      %919 = vmatmul.mubr.bf16.gmra.mrb[0].mxu0 %v884
      %v920 = vpop.f32.mrb[0].mxu0
      %v921 = vadd.f32 0.0, %v920
      %v922 = vpop.f32.mrb[0].mxu0
      %v923 = vpop.f32.mrb[0].mxu0
      %v924 = vpop.f32.mrb[0].mxu0
      %925 = vdwg.mxu0
      %v926 = vadd.f32 %v750, %v921
      %927 = vrot.lane.b32.xlu0 %v522, 32
      %v928 = vpop.permute.xlu0 %927
      %929 = vrot.lane.b32.xlu0 %v527, 32
      %v930 = vpop.permute.xlu0 %929
      %v932 = vsel %vm407, %v928, 0
      %v935 = vsel %vm407, %v930, 0
      %937 = vmatprep.subr.bf16.mxu0 0
      %938 = vmatpush1.bf16.xpose.msra.mxu0 %v935
      %939 = vmatprep.subr.bf16.mxu0 0
      %940 = vmatpush1.bf16.xpose.msra.mxu0 0
      %941 = vmatprep.subr.bf16.mxu0 0
      %942 = vmatpush1.bf16.xpose.msra.mxu0 0
      %943 = vmatprep.subr.bf16.mxu0 0
      %944 = vmatpush1.bf16.xpose.msra.mxu0 0
      %945 = vmatprep.subr.bf16.mxu0 0
      %946 = vmatpush1.bf16.xpose.msra.mxu0 0
      %947 = vmatprep.subr.bf16.mxu0 0
      %948 = vmatpush1.bf16.xpose.msra.mxu0 0
      %949 = vmatprep.subr.bf16.mxu0 0
      %950 = vmatpush1.bf16.xpose.msra.mxu0 0
      %951 = vmatprep.subr.bf16.mxu0 0
      %952 = vmatpush1.bf16.xpose.msra.mxu0 0
      %953 = vmatprep.subr.bf16.mxu0 0
      %954 = vmatpush1.bf16.xpose.msra.mxu0 0
      %955 = vmatprep.subr.bf16.mxu0 0
      %956 = vmatpush1.bf16.xpose.msra.mxu0 0
      %957 = vmatprep.subr.bf16.mxu0 0
      %958 = vmatpush1.bf16.xpose.msra.mxu0 0
      %959 = vmatprep.subr.bf16.mxu0 0
      %960 = vmatpush1.bf16.xpose.msra.mxu0 0
      %961 = vmatprep.subr.bf16.mxu0 0
      %962 = vmatpush1.bf16.xpose.msra.mxu0 0
      %963 = vmatprep.subr.bf16.mxu0 0
      %964 = vmatpush1.bf16.xpose.msra.mxu0 0
      %965 = vmatprep.subr.bf16.mxu0 0
      %966 = vmatpush1.bf16.xpose.msra.mxu0 0
      %967 = vmatprep.subr.bf16.mxu0 0
      %968 = vmatpush1.bf16.xpose.msra.mxu0 0
      %969 = vmatprep.mubr.bf16.mxu0 0
      %970 = vmatmul.mubr.bf16.gmra.mrb[0].mxu0 %v932
      %v971 = vpop.f32.mrb[0].mxu0
      %v972 = vadd.f32 0.0, %v971
      %v973 = vpop.f32.mrb[0].mxu0
      %v974 = vpop.f32.mrb[0].mxu0
      %v975 = vpop.f32.mrb[0].mxu0
      %976 = vdwg.mxu0
      %v977 = vmul.f32 %v972, 0.17677669
      %v978 = vsel %vm455, %v977, -inf
      %979 = vmax.xlane.f32.xlu0 %v978
      %v980 = vpop.xlane.xlu0 %979
      %v981 = vsub.f32 %v977, %v980
      %v982 = vmul.f32 %v981, 1.442695
      %v983 = vpow.pop %v982
      %v984 = vsel %vm455, %v983, 0.0
      %985 = vadd.xlane.f32.xlu0 %v984
      %v986 = vpop.xlane.xlu0 %985
      %v987 = vrcp.pop %v986
      %v988 = vmul.f32 %v983, %v987
      %v989 = vpack.c.bf16 %v988, %v988
      %990 = vrot.lane.b32.xlu0 %v591, 32
      %v991 = vpop.permute.xlu0 %990
      %v993 = vsel %vm455, %v989, 0
      %v996 = vsel %vm471, %v991, 0
      %998 = vmatprep.subr.bf16.mxu0 0
      %999 = vmatpush1.bf16.msra.mxu0 %v996
      %1000 = vmatprep.subr.bf16.mxu0 0
      %1001 = vmatpush1.bf16.msra.mxu0 0
      %1002 = vmatprep.subr.bf16.mxu0 0
      %1003 = vmatpush1.bf16.msra.mxu0 0
      %1004 = vmatprep.subr.bf16.mxu0 0
      %1005 = vmatpush1.bf16.msra.mxu0 0
      %1006 = vmatprep.subr.bf16.mxu0 0
      %1007 = vmatpush1.bf16.msra.mxu0 0
      %1008 = vmatprep.subr.bf16.mxu0 0
      %1009 = vmatpush1.bf16.msra.mxu0 0
      %1010 = vmatprep.subr.bf16.mxu0 0
      %1011 = vmatpush1.bf16.msra.mxu0 0
      %1012 = vmatprep.subr.bf16.mxu0 0
      %1013 = vmatpush1.bf16.msra.mxu0 0
      %1014 = vmatprep.subr.bf16.mxu0 0
      %1015 = vmatpush1.bf16.msra.mxu0 0
      %1016 = vmatprep.subr.bf16.mxu0 0
      %1017 = vmatpush1.bf16.msra.mxu0 0
      %1018 = vmatprep.subr.bf16.mxu0 0
      %1019 = vmatpush1.bf16.msra.mxu0 0
      %1020 = vmatprep.subr.bf16.mxu0 0
      %1021 = vmatpush1.bf16.msra.mxu0 0
      %1022 = vmatprep.subr.bf16.mxu0 0
      %1023 = vmatpush1.bf16.msra.mxu0 0
      %1024 = vmatprep.subr.bf16.mxu0 0
      %1025 = vmatpush1.bf16.msra.mxu0 0
      %1026 = vmatprep.subr.bf16.mxu0 0
      %1027 = vmatpush1.bf16.msra.mxu0 0
      %1028 = vmatprep.subr.bf16.mxu0 0
      %1029 = vmatpush1.bf16.msra.mxu0 0
      %1030 = vmatprep.mubr.bf16.mxu0 0
      %1031 = vmatmul.mubr.bf16.gmra.mrb[0].mxu0 %v993
      %v1032 = vpop.f32.mrb[0].mxu0
      %v1033 = vadd.f32 0.0, %v1032
      %v1034 = vpop.f32.mrb[0].mxu0
      %v1035 = vpop.f32.mrb[0].mxu0
      %v1036 = vpop.f32.mrb[0].mxu0
      %1037 = vdwg.mxu0
      %v1038 = vld [vmem:[%s4 + $0x30] sm:$0xf]
      %v1039 = vld [vmem:[%s4 + $0x34] sm:$0xf]
      %v1040 = vld [vmem:[%s4 + $0x38] sm:$0xf]
      %v1041 = vld [vmem:[%s4 + $0x3c] sm:$0xf]
      %v1042 = vpack.c.bf16 %v1033, %v1033
      %v1047 = vunpack.c.l.b16 %v1038
      %v1048 = vunpack.c.l.b16 %v1039
      %v1049 = vunpack.c.l.b16 %v1040
      %v1050 = vunpack.c.l.b16 %v1041
      %v1051 = vpack.c.b16 %v1048, %v1047
      %v1052 = vpack.c.b16 %v1050, %v1049
      %v1056 = vsel %vm407, %v1042, 0
      %1058 = vmatprep.subr.bf16.mxu0 0
      %1059 = vmatpush1.bf16.msra.mxu0 %v1051
      %1060 = vmatprep.subr.bf16.mxu0 0
      %1061 = vmatpush1.bf16.msra.mxu0 %v1052
      %1062 = vmatprep.subr.bf16.mxu0 0
      %1063 = vmatpush1.bf16.msra.mxu0 0
      %1064 = vmatprep.subr.bf16.mxu0 0
      %1065 = vmatpush1.bf16.msra.mxu0 0
      %1066 = vmatprep.subr.bf16.mxu0 0
      %1067 = vmatpush1.bf16.msra.mxu0 0
      %1068 = vmatprep.subr.bf16.mxu0 0
      %1069 = vmatpush1.bf16.msra.mxu0 0
      %1070 = vmatprep.subr.bf16.mxu0 0
      %1071 = vmatpush1.bf16.msra.mxu0 0
      %1072 = vmatprep.subr.bf16.mxu0 0
      %1073 = vmatpush1.bf16.msra.mxu0 0
      %1074 = vmatprep.subr.bf16.mxu0 0
      %1075 = vmatpush1.bf16.msra.mxu0 0
      %1076 = vmatprep.subr.bf16.mxu0 0
      %1077 = vmatpush1.bf16.msra.mxu0 0
      %1078 = vmatprep.subr.bf16.mxu0 0
      %1079 = vmatpush1.bf16.msra.mxu0 0
      %1080 = vmatprep.subr.bf16.mxu0 0
      %1081 = vmatpush1.bf16.msra.mxu0 0
      %1082 = vmatprep.subr.bf16.mxu0 0
      %1083 = vmatpush1.bf16.msra.mxu0 0
      %1084 = vmatprep.subr.bf16.mxu0 0
      %1085 = vmatpush1.bf16.msra.mxu0 0
      %1086 = vmatprep.subr.bf16.mxu0 0
      %1087 = vmatpush1.bf16.msra.mxu0 0
      %1088 = vmatprep.subr.bf16.mxu0 0
      %1089 = vmatpush1.bf16.msra.mxu0 0
      %1090 = vmatprep.mubr.bf16.mxu0 0
      %1091 = vmatmul.mubr.bf16.gmra.mrb[0].mxu0 %v1056
      %v1092 = vpop.f32.mrb[0].mxu0
      %v1093 = vadd.f32 0.0, %v1092
      %v1094 = vpop.f32.mrb[0].mxu0
      %v1095 = vpop.f32.mrb[0].mxu0
      %v1096 = vpop.f32.mrb[0].mxu0
      %1097 = vdwg.mxu0
      %v1098 = vadd.f32 %v926, %v1093
      %v1099 = vld [vmem:[%s5] sm:$0x1]
      %v1101 = vlaneseq
      %v1102 = vshrl.u32 %v1101, 7
      %v1103 = vsub.s32 0, %v1102
      %v1104 = vrot.slane %v1099, %v1103
      %v1106 = vadd.f32 %v1098, %v1104
      %v1107 = vld [vmem:[%s395] sm:$0xf]
      %v1108 = vunpack.c.l.bf16 %v1107
      %v1109 = vadd.f32 %v1106, %v1108
      %1110 = vadd.xlane.f32.xlu0 %v1109
      %v1111 = vpop.xlane.xlu0 %1110
      %v1112 = vrcp.pop 128.0
      %v1113 = vmul.f32 %v1111, %v1112
      %v1114 = vsub.f32 %v1109, %v1113
      %v1115 = vmul.f32 %v1114, %v1114
      %1116 = vadd.xlane.f32.xlu0 %v1115
      %v1117 = vpop.xlane.xlu0 %1116
      %v1118 = vmul.f32 %v1117, %v1112
      %v1119 = vadd.f32 %v1118, 1e-05
      %v1120 = vrsqrt.pop %v1119
      %v1121 = vmul.f32 %v1114, %v1120
      %v1122 = vld [vmem:[%s6] sm:$0x1]
      %v1124 = vlaneseq
      %v1125 = vshrl.u32 %v1124, 7
      %v1126 = vsub.s32 0, %v1125
      %v1127 = vrot.slane %v1122, %v1126
      %v1129 = vmul.f32 %v1121, %v1127
      %v1130 = vld [vmem:[%s7] sm:$0x1]
      %v1132 = vlaneseq
      %v1133 = vshrl.u32 %v1132, 7
      %v1134 = vsub.s32 0, %v1133
      %v1135 = vrot.slane %v1130, %v1134
      %v1137 = vadd.f32 %v1129, %v1135
      %v1138 = vpack.c.bf16 %v1137, %v1137
      %1139 = vst [vmem:[%s402] sm:$0xf] %v1138
      %p1140 = scmp.lt.s32.totalorder %s23, 1
      %s1141 = scalar_select %p1140, %s23, 1
      %p1142 = scmp.lt.s32.totalorder %s24, 0
      %s1143 = scalar_select %p1142, %s24, 0
      %s1144 = sadd.s32 %s1143, %s1141
      %s1145 = smul.addr %s1144, 4
      %s1146 = scalar_lea.vmem %s8, %s1145
      // Predicated region
      $region53: #{translation_transformer_forward.32} parent=51 // pred_check
        %p1147 = pneg %p243
      $region54: #{translation_transformer_forward.32} parent=51 // pred_check_branch
        %1149 = sbr.rel (%p1147) target = $region56
      $region55: #{translation_transformer_forward.32} parent=51 // pred_region
        _
      $region56: #{translation_transformer_forward.32} parent=51 // pred_fallthru
        _
    $region52: #{translation_transformer_forward.32} parent=5 // pred_fallthru
      _
    %p1150 = scmp.le.s32.totalorder 2, %s14
    // Predicated region
    $region57: #{translation_transformer_forward.32} parent=5 // pred_check
      %p1151 = pneg %p1150
    $region58: #{translation_transformer_forward.32} parent=5 // pred_check_branch
      %1153 = sbr.rel (%p1151) target = $region60
    $region59: #{translation_transformer_forward.32} parent=5 // pred_region
      %s1154 = ssub.s32 %s14, 2
      // Predicated region
      $region61: #{translation_transformer_forward.32} parent=59 // pred_check
        %p1155 = pneg %p249
      $region62: #{translation_transformer_forward.32} parent=59 // pred_check_branch
        %1157 = sbr.rel (%p1155) target = $region64
      $region63: #{translation_transformer_forward.32} parent=59 // pred_region
        %p1158 = scmp.lt.s32.totalorder %s25, 1
        %s1159 = scalar_select %p1158, %s25, 1
        %p1160 = scmp.lt.s32.totalorder %s26, 0
        %s1161 = scalar_select %p1160, %s26, 0
        %s1162 = sadd.s32 %s1161, %s1159
        %s1163 = smul.addr %s1162, 4
        %s1164 = scalar_lea.vmem %s8, %s1163
      $region64: #{translation_transformer_forward.32} parent=59 // pred_fallthru
        _
    $region60: #{translation_transformer_forward.32} parent=5 // pred_fallthru
      _
  $region6: #{translation_transformer_forward.32} parent=0 // loop_footer
    %s18 = sadd.s32 1, %s14
  $region7: #{translation_transformer_forward.32} parent=0 // loop_footer_branch
    %13 = sbr.rel target = $region3
  $region8: #{translation_transformer_forward.32} parent=0 // loop_exit
    _

</llo_original>
